<compile_context>
chip_gen: v7x
topology: tpu7x:2x2x1
jax: 0.10.0
libtpu: 0.0.40
codegen_flags: <defaults>
</compile_context>

<pallas_src>
import math
import numpy as np
import jax
import jax.numpy as jnp
from jax.experimental import pallas as pl
from jax.experimental.pallas import tpu as pltpu


# ----------------------------- fused Pallas kernel -----------------------------

def _drnseg_head_kernel(x_ref, w_ref, b_ref, uhT_ref, uw_ref,
                        lsm_ref, seg_ref, y_scr, xc_scr):
    """Per-batch fused head: seg 1x1 conv -> separable bilinear up -> log-softmax.

    x_ref   : (1, Cin, H*W)   input feature map (flat spatial)
    w_ref   : (C, Cin)        seg conv weight
    b_ref   : (C, 1)          seg conv bias
    uhT_ref : (OH, H)         Uh^T upsampling matrix (rows)
    uw_ref  : (W, OW)         Uw  upsampling matrix (cols)
    lsm_ref : (1, C, OH, OW)  log-softmax output
    seg_ref : (1, C, H*W)     seg conv output (pre-upsample)
    y_scr   : VMEM (C, OH, OW) f32 scratch (upsampled logits)
    xc_scr  : VMEM (H, W)      f32 scratch (one class, image layout)
    """
    C, _Cin = w_ref.shape
    OH, H = uhT_ref.shape
    W, OW = uw_ref.shape

    # --- seg 1x1 conv: lane-dense [C, H*W] = wseg @ x_n + b (MXU, f32 acc) ---
    xn = x_ref[0]                                                    # (Cin, H*W)
    s = jnp.dot(w_ref[...], xn, preferred_element_type=jnp.float32) + b_ref[...]
    seg_ref[0] = s.astype(seg_ref.dtype)

    # --- per-class separable bilinear upsample: Yc = Uh^T @ Xc @ Uw ---
    uhT = uhT_ref[...]                                               # (OH, H)
    uw = uw_ref[...]                                                 # (W, OW)
    for c in range(C):
        # Stage Xc = s[c] viewed as (H, W) via static row stores (reshape-free).
        for h in range(H):
            xc_scr[pl.ds(h, 1), :] = s[c:c + 1, h * W:(h + 1) * W]
        bc = jnp.dot(uhT, xc_scr[...], preferred_element_type=jnp.float32)   # (OH, W)
        y_scr[c] = jnp.dot(bc, uw, preferred_element_type=jnp.float32)       # (OH, OW)

    # --- log-softmax over classes (leading axis of y_scr), OH-chunked ---
    rows = OH
    for cand in (64, 32, 16, 8):
        if OH % cand == 0:
            rows = cand
            break
    for r0 in range(0, OH, rows):
        sl = pl.ds(r0, rows)
        m = y_scr[0, sl, :]
        for c in range(1, C):
            m = jnp.maximum(m, y_scr[c, sl, :])
        ssum = jnp.exp(y_scr[0, sl, :] - m)
        for c in range(1, C):
            ssum = ssum + jnp.exp(y_scr[c, sl, :] - m)
        denom = m + jnp.log(ssum)
        for c in range(C):
            lsm_ref[0, c, sl, :] = (y_scr[c, sl, :] - denom).astype(lsm_ref.dtype)


# ----------------------------- parameter setup -----------------------------

def bilinear_up_matrix(n_in, kernel=16, stride=8, pad=4):
    """1-D upsampling matrix U [n_in, n_out] equivalent to the (separable)
    fixed bilinear ConvTranspose2d weights produced by fill_up_weights."""
    f = math.ceil(kernel / 2)
    c = (2 * f - 1 - f % 2) / (2.0 * f)
    w1d = np.array([1 - abs(i / f - c) for i in range(kernel)], dtype=np.float32)
    n_out = (n_in - 1) * stride - 2 * pad + kernel
    U = np.zeros((n_in, n_out), dtype=np.float32)
    for i in range(n_in):
        for oi in range(n_out):
            k = oi + pad - stride * i
            if 0 <= k < kernel:
                U[i, oi] = w1d[k]
    return jnp.asarray(U)


# ----------------------------- DRNSeg forward -----------------------------

def drnseg_forward(x, wseg, bseg, uh, uw):
    N, Cin, H, W = x.shape
    C = wseg.shape[0]
    OH, OW = uh.shape[1], uw.shape[1]
    HW = H * W

    xf = x.reshape(N, Cin, HW)          # free (contiguous) reshape
    uhT = uh.T                          # (OH, H), tiny one-time transpose
    b2 = bseg.reshape(C, 1)

    cost = pl.CostEstimate(
        flops=(2 * N * C * Cin * HW
               + N * C * (2 * OH * H * W + 2 * OH * W * OW)
               + 5 * N * C * OH * OW),
        transcendentals=N * C * OH * OW + N * OH * OW,
        bytes_accessed=4 * (N * Cin * HW + C * Cin + C + OH * H + W * OW
                            + N * C * HW + N * C * OH * OW),
    )

    lsm, seg_flat = pl.pallas_call(
        _drnseg_head_kernel,
        out_shape=(
            jax.ShapeDtypeStruct((N, C, OH, OW), x.dtype),   # log_softmax(up(seg(x)))
            jax.ShapeDtypeStruct((N, C, HW), x.dtype),       # seg(x) (flat spatial)
        ),
        grid_spec=pltpu.PrefetchScalarGridSpec(
            num_scalar_prefetch=0,
            grid=(N,),
            in_specs=[
                pl.BlockSpec((1, Cin, HW), lambda n: (n, 0, 0)),   # x (per batch)
                pl.BlockSpec((C, Cin), lambda n: (0, 0)),          # wseg (resident)
                pl.BlockSpec((C, 1), lambda n: (0, 0)),            # bias (resident)
                pl.BlockSpec((OH, H), lambda n: (0, 0)),           # Uh^T (resident)
                pl.BlockSpec((W, OW), lambda n: (0, 0)),           # Uw   (resident)
            ],
            out_specs=[
                pl.BlockSpec((1, C, OH, OW), lambda n: (n, 0, 0, 0)),
                pl.BlockSpec((1, C, HW), lambda n: (n, 0, 0)),
            ],
            scratch_shapes=[
                pltpu.VMEM((C, OH, OW), jnp.float32),   # upsampled logits
                pltpu.VMEM((H, W), jnp.float32),        # one class in (H, W) layout
            ],
        ),
        compiler_params=pltpu.CompilerParams(
            dimension_semantics=("parallel",),          # v7x: shard batch over 2 TCs
            vmem_limit_bytes=48 * 1024 * 1024,
        ),
        cost_estimate=cost,
    )(xf, wseg, b2, uhT, uw)

    x_seg = seg_flat.reshape(N, C, H, W)                # free reshape back to NCHW
    # forward returns (log_softmax(up(seg(x))), seg(x))
    return lsm, x_seg


# ----------------------------- main -----------------------------

if __name__ == "__main__":
    key = jax.random.PRNGKey(0)
    N, Cin, H, W = 2, 16, 16, 16      # x = DRN backbone feature map (NCHW)
    classes = 4

    k1, k2, k3 = jax.random.split(key, 3)
    x = jax.random.normal(k1, (N, Cin, H, W), dtype=jnp.float32)

    # seg conv init: weight ~ N(0, sqrt(2/n)), n = kh*kw*out_channels
    n_fan = 1 * 1 * classes
    wseg = jax.random.normal(k2, (classes, Cin), dtype=jnp.float32) * math.sqrt(2.0 / n_fan)
    # bias is zero-initialized in the module; use a small nonzero bias here so the
    # bias path of the kernel is actually exercised by the reference check.
    bseg = 0.1 * jax.random.normal(k3, (classes,), dtype=jnp.float32)

    # fixed bilinear upsampling matrices (from fill_up_weights, separable)
    uh = bilinear_up_matrix(H)      # [H, 8H]
    uw = bilinear_up_matrix(W)      # [W, 8W]

    lsm, x_seg = jax.jit(drnseg_forward)(x, wseg, bseg, uh, uw)
    jax.block_until_ready((lsm, x_seg))

    assert lsm.shape == (N, classes, 8 * H, 8 * W)
    assert x_seg.shape == (N, classes, H, W)

    # pure-JAX reference check
    ref_s = jnp.einsum("nchw,oc->nohw", x, wseg) + bseg[None, :, None, None]
    ref_y = jnp.einsum("nchw,hH,wW->ncHW", ref_s, uh, uw)
    ref_lsm = jax.nn.log_softmax(ref_y, axis=1)
    assert jnp.allclose(x_seg, ref_s, atol=1e-4, rtol=1e-4)
    assert jnp.allclose(lsm, ref_lsm, atol=1e-4, rtol=1e-4)

    print("KERNEL_OK")
</pallas_src>

<mosaic_0001>
module attributes {stable_mosaic.version = 11 : i64} {
  func.func @_drnseg_head_kernel(%arg0: i32, %arg1: memref<1x16x256xf32, #tpu.memory_space<vmem>>, %arg2: memref<4x16xf32, #tpu.memory_space<vmem>>, %arg3: memref<4x1xf32, #tpu.memory_space<vmem>>, %arg4: memref<128x16xf32, #tpu.memory_space<vmem>>, %arg5: memref<16x128xf32, #tpu.memory_space<vmem>>, %arg6: memref<1x4x128x128xf32, #tpu.memory_space<vmem>>, %arg7: memref<1x4x256xf32, #tpu.memory_space<vmem>>, %arg8: memref<4x128x128xf32, #tpu.memory_space<vmem>>, %arg9: memref<16x16xf32, #tpu.memory_space<vmem>>) attributes {dimension_semantics = [#tpu.dimension_semantics<parallel>], iteration_bounds = array<i64: 2>, scalar_prefetch = 0 : i64, scratch_operands = 2 : i64, tpu.core_type = #tpu.core_type<tc>, window_params = [{transform_indices = @transform_0, window_bounds = array<i64: 1, 16, 256>}, {pipeline_mode = #tpu.pipeline_mode<synchronous>, transform_indices = @transform_1, window_bounds = array<i64: 4, 16>}, {pipeline_mode = #tpu.pipeline_mode<synchronous>, transform_indices = @transform_2, window_bounds = array<i64: 4, 1>}, {pipeline_mode = #tpu.pipeline_mode<synchronous>, transform_indices = @transform_3, window_bounds = array<i64: 128, 16>}, {pipeline_mode = #tpu.pipeline_mode<synchronous>, transform_indices = @transform_4, window_bounds = array<i64: 16, 128>}, {transform_indices = @transform_5, window_bounds = array<i64: 1, 4, 128, 128>}, {transform_indices = @transform_6, window_bounds = array<i64: 1, 4, 256>}]} {
    %c0 = arith.constant 0 : index
    %c0_0 = arith.constant 0 : index
    %c0_1 = arith.constant 0 : index
    %0 = vector.load %arg1[%c0, %c0_0, %c0_1] : memref<1x16x256xf32, #tpu.memory_space<vmem>>, vector<1x16x256xf32>
    %1 = vector.shape_cast %0 : vector<1x16x256xf32> to vector<16x256xf32>
    %c0_2 = arith.constant 0 : index
    %c0_3 = arith.constant 0 : index
    %2 = vector.load %arg2[%c0_2, %c0_3] : memref<4x16xf32, #tpu.memory_space<vmem>>, vector<4x16xf32>
    %cst = arith.constant dense<0.000000e+00> : vector<4x256xf32>
    %3 = tpu.matmul %2, %1, %cst {dimension_numbers = #tpu.dot_dimension_numbers<[1], [0], [0], [1], [0, 0, 1, 1], [], []>} : vector<4x16xf32>, vector<16x256xf32>, vector<4x256xf32> -> vector<4x256xf32>
    %c0_4 = arith.constant 0 : index
    %c0_5 = arith.constant 0 : index
    %4 = vector.load %arg3[%c0_4, %c0_5] : memref<4x1xf32, #tpu.memory_space<vmem>>, vector<4x1xf32>
    %5 = vector.broadcast %4 : vector<4x1xf32> to vector<4x256xf32>
    %6 = arith.addf %3, %5 : vector<4x256xf32>
    %c0_6 = arith.constant 0 : index
    %c0_7 = arith.constant 0 : index
    %c0_8 = arith.constant 0 : index
    %7 = vector.load %arg7[%c0_6, %c0_7, %c0_8] : memref<1x4x256xf32, #tpu.memory_space<vmem>>, vector<1x4x256xf32>
    %8 = vector.shape_cast %7 : vector<1x4x256xf32> to vector<4x256xf32>
    %9 = vector.shape_cast %6 : vector<4x256xf32> to vector<1x4x256xf32>
    tpu.vector_store %arg7[%c0_6, %c0_7, %c0_8], %9 {strides = array<i32>} : memref<1x4x256xf32, #tpu.memory_space<vmem>>, vector<1x4x256xf32>,
    %c0_9 = arith.constant 0 : index
    %c0_10 = arith.constant 0 : index
    %10 = vector.load %arg4[%c0_9, %c0_10] : memref<128x16xf32, #tpu.memory_space<vmem>>, vector<128x16xf32>
    %c0_11 = arith.constant 0 : index
    %c0_12 = arith.constant 0 : index
    %11 = vector.load %arg5[%c0_11, %c0_12] : memref<16x128xf32, #tpu.memory_space<vmem>>, vector<16x128xf32>
    %12 = vector.extract_strided_slice %6 {offsets = [0, 0], sizes = [1, 16], strides = [1, 1]} : vector<4x256xf32> to vector<1x16xf32>
    %c0_13 = arith.constant 0 : index
    %c0_14 = arith.constant 0 : index
    %13 = vector.load %arg9[%c0_13, %c0_14] : memref<16x16xf32, #tpu.memory_space<vmem>>, vector<1x16xf32>
    tpu.vector_store %arg9[%c0_13, %c0_14], %12 {strides = array<i32>} : memref<16x16xf32, #tpu.memory_space<vmem>>, vector<1x16xf32>,
    %14 = vector.extract_strided_slice %6 {offsets = [0, 16], sizes = [1, 16], strides = [1, 1]} : vector<4x256xf32> to vector<1x16xf32>
    %c1 = arith.constant 1 : index
    %c0_15 = arith.constant 0 : index
    %15 = vector.load %arg9[%c1, %c0_15] : memref<16x16xf32, #tpu.memory_space<vmem>>, vector<1x16xf32>
    tpu.vector_store %arg9[%c1, %c0_15], %14 {strides = array<i32>} : memref<16x16xf32, #tpu.memory_space<vmem>>, vector<1x16xf32>,
    %16 = vector.extract_strided_slice %6 {offsets = [0, 32], sizes = [1, 16], strides = [1, 1]} : vector<4x256xf32> to vector<1x16xf32>
    %c2 = arith.constant 2 : index
    %c0_16 = arith.constant 0 : index
    %17 = vector.load %arg9[%c2, %c0_16] : memref<16x16xf32, #tpu.memory_space<vmem>>, vector<1x16xf32>
    tpu.vector_store %arg9[%c2, %c0_16], %16 {strides = array<i32>} : memref<16x16xf32, #tpu.memory_space<vmem>>, vector<1x16xf32>,
    %18 = vector.extract_strided_slice %6 {offsets = [0, 48], sizes = [1, 16], strides = [1, 1]} : vector<4x256xf32> to vector<1x16xf32>
    %c3 = arith.constant 3 : index
    %c0_17 = arith.constant 0 : index
    %19 = vector.load %arg9[%c3, %c0_17] : memref<16x16xf32, #tpu.memory_space<vmem>>, vector<1x16xf32>
    tpu.vector_store %arg9[%c3, %c0_17], %18 {strides = array<i32>} : memref<16x16xf32, #tpu.memory_space<vmem>>, vector<1x16xf32>,
    %20 = vector.extract_strided_slice %6 {offsets = [0, 64], sizes = [1, 16], strides = [1, 1]} : vector<4x256xf32> to vector<1x16xf32>
    %c4 = arith.constant 4 : index
    %c0_18 = arith.constant 0 : index
    %21 = vector.load %arg9[%c4, %c0_18] : memref<16x16xf32, #tpu.memory_space<vmem>>, vector<1x16xf32>
    tpu.vector_store %arg9[%c4, %c0_18], %20 {strides = array<i32>} : memref<16x16xf32, #tpu.memory_space<vmem>>, vector<1x16xf32>,
    %22 = vector.extract_strided_slice %6 {offsets = [0, 80], sizes = [1, 16], strides = [1, 1]} : vector<4x256xf32> to vector<1x16xf32>
    %c5 = arith.constant 5 : index
    %c0_19 = arith.constant 0 : index
    %23 = vector.load %arg9[%c5, %c0_19] : memref<16x16xf32, #tpu.memory_space<vmem>>, vector<1x16xf32>
    tpu.vector_store %arg9[%c5, %c0_19], %22 {strides = array<i32>} : memref<16x16xf32, #tpu.memory_space<vmem>>, vector<1x16xf32>,
    %24 = vector.extract_strided_slice %6 {offsets = [0, 96], sizes = [1, 16], strides = [1, 1]} : vector<4x256xf32> to vector<1x16xf32>
    %c6 = arith.constant 6 : index
    %c0_20 = arith.constant 0 : index
    %25 = vector.load %arg9[%c6, %c0_20] : memref<16x16xf32, #tpu.memory_space<vmem>>, vector<1x16xf32>
    tpu.vector_store %arg9[%c6, %c0_20], %24 {strides = array<i32>} : memref<16x16xf32, #tpu.memory_space<vmem>>, vector<1x16xf32>,
    %26 = vector.extract_strided_slice %6 {offsets = [0, 112], sizes = [1, 16], strides = [1, 1]} : vector<4x256xf32> to vector<1x16xf32>
    %c7 = arith.constant 7 : index
    %c0_21 = arith.constant 0 : index
    %27 = vector.load %arg9[%c7, %c0_21] : memref<16x16xf32, #tpu.memory_space<vmem>>, vector<1x16xf32>
    tpu.vector_store %arg9[%c7, %c0_21], %26 {strides = array<i32>} : memref<16x16xf32, #tpu.memory_space<vmem>>, vector<1x16xf32>,
    %28 = vector.extract_strided_slice %6 {offsets = [0, 128], sizes = [1, 16], strides = [1, 1]} : vector<4x256xf32> to vector<1x16xf32>
    %c8 = arith.constant 8 : index
    %c0_22 = arith.constant 0 : index
    %29 = vector.load %arg9[%c8, %c0_22] : memref<16x16xf32, #tpu.memory_space<vmem>>, vector<1x16xf32>
    tpu.vector_store %arg9[%c8, %c0_22], %28 {strides = array<i32>} : memref<16x16xf32, #tpu.memory_space<vmem>>, vector<1x16xf32>,
    %30 = vector.extract_strided_slice %6 {offsets = [0, 144], sizes = [1, 16], strides = [1, 1]} : vector<4x256xf32> to vector<1x16xf32>
    %c9 = arith.constant 9 : index
    %c0_23 = arith.constant 0 : index
    %31 = vector.load %arg9[%c9, %c0_23] : memref<16x16xf32, #tpu.memory_space<vmem>>, vector<1x16xf32>
    tpu.vector_store %arg9[%c9, %c0_23], %30 {strides = array<i32>} : memref<16x16xf32, #tpu.memory_space<vmem>>, vector<1x16xf32>,
    %32 = vector.extract_strided_slice %6 {offsets = [0, 160], sizes = [1, 16], strides = [1, 1]} : vector<4x256xf32> to vector<1x16xf32>
    %c10 = arith.constant 10 : index
    %c0_24 = arith.constant 0 : index
    %33 = vector.load %arg9[%c10, %c0_24] : memref<16x16xf32, #tpu.memory_space<vmem>>, vector<1x16xf32>
    tpu.vector_store %arg9[%c10, %c0_24], %32 {strides = array<i32>} : memref<16x16xf32, #tpu.memory_space<vmem>>, vector<1x16xf32>,
    %34 = vector.extract_strided_slice %6 {offsets = [0, 176], sizes = [1, 16], strides = [1, 1]} : vector<4x256xf32> to vector<1x16xf32>
    %c11 = arith.constant 11 : index
    %c0_25 = arith.constant 0 : index
    %35 = vector.load %arg9[%c11, %c0_25] : memref<16x16xf32, #tpu.memory_space<vmem>>, vector<1x16xf32>
    tpu.vector_store %arg9[%c11, %c0_25], %34 {strides = array<i32>} : memref<16x16xf32, #tpu.memory_space<vmem>>, vector<1x16xf32>,
    %36 = vector.extract_strided_slice %6 {offsets = [0, 192], sizes = [1, 16], strides = [1, 1]} : vector<4x256xf32> to vector<1x16xf32>
    %c12 = arith.constant 12 : index
    %c0_26 = arith.constant 0 : index
    %37 = vector.load %arg9[%c12, %c0_26] : memref<16x16xf32, #tpu.memory_space<vmem>>, vector<1x16xf32>
    tpu.vector_store %arg9[%c12, %c0_26], %36 {strides = array<i32>} : memref<16x16xf32, #tpu.memory_space<vmem>>, vector<1x16xf32>,
    %38 = vector.extract_strided_slice %6 {offsets = [0, 208], sizes = [1, 16], strides = [1, 1]} : vector<4x256xf32> to vector<1x16xf32>
    %c13 = arith.constant 13 : index
    %c0_27 = arith.constant 0 : index
    %39 = vector.load %arg9[%c13, %c0_27] : memref<16x16xf32, #tpu.memory_space<vmem>>, vector<1x16xf32>
    tpu.vector_store %arg9[%c13, %c0_27], %38 {strides = array<i32>} : memref<16x16xf32, #tpu.memory_space<vmem>>, vector<1x16xf32>,
    %40 = vector.extract_strided_slice %6 {offsets = [0, 224], sizes = [1, 16], strides = [1, 1]} : vector<4x256xf32> to vector<1x16xf32>
    %c14 = arith.constant 14 : index
    %c0_28 = arith.constant 0 : index
    %41 = vector.load %arg9[%c14, %c0_28] : memref<16x16xf32, #tpu.memory_space<vmem>>, vector<1x16xf32>
    tpu.vector_store %arg9[%c14, %c0_28], %40 {strides = array<i32>} : memref<16x16xf32, #tpu.memory_space<vmem>>, vector<1x16xf32>,
    %42 = vector.extract_strided_slice %6 {offsets = [0, 240], sizes = [1, 16], strides = [1, 1]} : vector<4x256xf32> to vector<1x16xf32>
    %c15 = arith.constant 15 : index
    %c0_29 = arith.constant 0 : index
    %43 = vector.load %arg9[%c15, %c0_29] : memref<16x16xf32, #tpu.memory_space<vmem>>, vector<1x16xf32>
    tpu.vector_store %arg9[%c15, %c0_29], %42 {strides = array<i32>} : memref<16x16xf32, #tpu.memory_space<vmem>>, vector<1x16xf32>,
    %c0_30 = arith.constant 0 : index
    %c0_31 = arith.constant 0 : index
    %44 = vector.load %arg9[%c0_30, %c0_31] : memref<16x16xf32, #tpu.memory_space<vmem>>, vector<16x16xf32>
    %cst_32 = arith.constant dense<0.000000e+00> : vector<128x16xf32>
    %45 = tpu.matmul %10, %44, %cst_32 {dimension_numbers = #tpu.dot_dimension_numbers<[1], [0], [0], [1], [0, 0, 1, 1], [], []>} : vector<128x16xf32>, vector<16x16xf32>, vector<128x16xf32> -> vector<128x16xf32>
    %cst_33 = arith.constant dense<0.000000e+00> : vector<128x128xf32>
    %46 = tpu.matmul %45, %11, %cst_33 {dimension_numbers = #tpu.dot_dimension_numbers<[1], [0], [0], [1], [0, 0, 1, 1], [], []>} : vector<128x16xf32>, vector<16x128xf32>, vector<128x128xf32> -> vector<128x128xf32>
    %c0_34 = arith.constant 0 : index
    %c0_35 = arith.constant 0 : index
    %c0_36 = arith.constant 0 : index
    %47 = vector.load %arg8[%c0_34, %c0_35, %c0_36] : memref<4x128x128xf32, #tpu.memory_space<vmem>>, vector<1x128x128xf32>
    %48 = vector.shape_cast %47 : vector<1x128x128xf32> to vector<128x128xf32>
    %49 = vector.shape_cast %46 : vector<128x128xf32> to vector<1x128x128xf32>
    tpu.vector_store %arg8[%c0_34, %c0_35, %c0_36], %49 {strides = array<i32>} : memref<4x128x128xf32, #tpu.memory_space<vmem>>, vector<1x128x128xf32>,
    %50 = vector.extract_strided_slice %6 {offsets = [1, 0], sizes = [1, 16], strides = [1, 1]} : vector<4x256xf32> to vector<1x16xf32>
    %c0_37 = arith.constant 0 : index
    %c0_38 = arith.constant 0 : index
    %51 = vector.load %arg9[%c0_37, %c0_38] : memref<16x16xf32, #tpu.memory_space<vmem>>, vector<1x16xf32>
    tpu.vector_store %arg9[%c0_37, %c0_38], %50 {strides = array<i32>} : memref<16x16xf32, #tpu.memory_space<vmem>>, vector<1x16xf32>,
    %52 = vector.extract_strided_slice %6 {offsets = [1, 16], sizes = [1, 16], strides = [1, 1]} : vector<4x256xf32> to vector<1x16xf32>
    %c1_39 = arith.constant 1 : index
    %c0_40 = arith.constant 0 : index
    %53 = vector.load %arg9[%c1_39, %c0_40] : memref<16x16xf32, #tpu.memory_space<vmem>>, vector<1x16xf32>
    tpu.vector_store %arg9[%c1_39, %c0_40], %52 {strides = array<i32>} : memref<16x16xf32, #tpu.memory_space<vmem>>, vector<1x16xf32>,
    %54 = vector.extract_strided_slice %6 {offsets = [1, 32], sizes = [1, 16], strides = [1, 1]} : vector<4x256xf32> to vector<1x16xf32>
    %c2_41 = arith.constant 2 : index
    %c0_42 = arith.constant 0 : index
    %55 = vector.load %arg9[%c2_41, %c0_42] : memref<16x16xf32, #tpu.memory_space<vmem>>, vector<1x16xf32>
    tpu.vector_store %arg9[%c2_41, %c0_42], %54 {strides = array<i32>} : memref<16x16xf32, #tpu.memory_space<vmem>>, vector<1x16xf32>,
    %56 = vector.extract_strided_slice %6 {offsets = [1, 48], sizes = [1, 16], strides = [1, 1]} : vector<4x256xf32> to vector<1x16xf32>
    %c3_43 = arith.constant 3 : index
    %c0_44 = arith.constant 0 : index
    %57 = vector.load %arg9[%c3_43, %c0_44] : memref<16x16xf32, #tpu.memory_space<vmem>>, vector<1x16xf32>
    tpu.vector_store %arg9[%c3_43, %c0_44], %56 {strides = array<i32>} : memref<16x16xf32, #tpu.memory_space<vmem>>, vector<1x16xf32>,
    %58 = vector.extract_strided_slice %6 {offsets = [1, 64], sizes = [1, 16], strides = [1, 1]} : vector<4x256xf32> to vector<1x16xf32>
    %c4_45 = arith.constant 4 : index
    %c0_46 = arith.constant 0 : index
    %59 = vector.load %arg9[%c4_45, %c0_46] : memref<16x16xf32, #tpu.memory_space<vmem>>, vector<1x16xf32>
    tpu.vector_store %arg9[%c4_45, %c0_46], %58 {strides = array<i32>} : memref<16x16xf32, #tpu.memory_space<vmem>>, vector<1x16xf32>,
    %60 = vector.extract_strided_slice %6 {offsets = [1, 80], sizes = [1, 16], strides = [1, 1]} : vector<4x256xf32> to vector<1x16xf32>
    %c5_47 = arith.constant 5 : index
    %c0_48 = arith.constant 0 : index
    %61 = vector.load %arg9[%c5_47, %c0_48] : memref<16x16xf32, #tpu.memory_space<vmem>>, vector<1x16xf32>
    tpu.vector_store %arg9[%c5_47, %c0_48], %60 {strides = array<i32>} : memref<16x16xf32, #tpu.memory_space<vmem>>, vector<1x16xf32>,
    %62 = vector.extract_strided_slice %6 {offsets = [1, 96], sizes = [1, 16], strides = [1, 1]} : vector<4x256xf32> to vector<1x16xf32>
    %c6_49 = arith.constant 6 : index
    %c0_50 = arith.constant 0 : index
    %63 = vector.load %arg9[%c6_49, %c0_50] : memref<16x16xf32, #tpu.memory_space<vmem>>, vector<1x16xf32>
    tpu.vector_store %arg9[%c6_49, %c0_50], %62 {strides = array<i32>} : memref<16x16xf32, #tpu.memory_space<vmem>>, vector<1x16xf32>,
    %64 = vector.extract_strided_slice %6 {offsets = [1, 112], sizes = [1, 16], strides = [1, 1]} : vector<4x256xf32> to vector<1x16xf32>
    %c7_51 = arith.constant 7 : index
    %c0_52 = arith.constant 0 : index
    %65 = vector.load %arg9[%c7_51, %c0_52] : memref<16x16xf32, #tpu.memory_space<vmem>>, vector<1x16xf32>
    tpu.vector_store %arg9[%c7_51, %c0_52], %64 {strides = array<i32>} : memref<16x16xf32, #tpu.memory_space<vmem>>, vector<1x16xf32>,
    %66 = vector.extract_strided_slice %6 {offsets = [1, 128], sizes = [1, 16], strides = [1, 1]} : vector<4x256xf32> to vector<1x16xf32>
    %c8_53 = arith.constant 8 : index
    %c0_54 = arith.constant 0 : index
    %67 = vector.load %arg9[%c8_53, %c0_54] : memref<16x16xf32, #tpu.memory_space<vmem>>, vector<1x16xf32>
    tpu.vector_store %arg9[%c8_53, %c0_54], %66 {strides = array<i32>} : memref<16x16xf32, #tpu.memory_space<vmem>>, vector<1x16xf32>,
    %68 = vector.extract_strided_slice %6 {offsets = [1, 144], sizes = [1, 16], strides = [1, 1]} : vector<4x256xf32> to vector<1x16xf32>
    %c9_55 = arith.constant 9 : index
    %c0_56 = arith.constant 0 : index
    %69 = vector.load %arg9[%c9_55, %c0_56] : memref<16x16xf32, #tpu.memory_space<vmem>>, vector<1x16xf32>
    tpu.vector_store %arg9[%c9_55, %c0_56], %68 {strides = array<i32>} : memref<16x16xf32, #tpu.memory_space<vmem>>, vector<1x16xf32>,
    %70 = vector.extract_strided_slice %6 {offsets = [1, 160], sizes = [1, 16], strides = [1, 1]} : vector<4x256xf32> to vector<1x16xf32>
    %c10_57 = arith.constant 10 : index
    %c0_58 = arith.constant 0 : index
    %71 = vector.load %arg9[%c10_57, %c0_58] : memref<16x16xf32, #tpu.memory_space<vmem>>, vector<1x16xf32>
    tpu.vector_store %arg9[%c10_57, %c0_58], %70 {strides = array<i32>} : memref<16x16xf32, #tpu.memory_space<vmem>>, vector<1x16xf32>,
    %72 = vector.extract_strided_slice %6 {offsets = [1, 176], sizes = [1, 16], strides = [1, 1]} : vector<4x256xf32> to vector<1x16xf32>
    %c11_59 = arith.constant 11 : index
    %c0_60 = arith.constant 0 : index
    %73 = vector.load %arg9[%c11_59, %c0_60] : memref<16x16xf32, #tpu.memory_space<vmem>>, vector<1x16xf32>
    tpu.vector_store %arg9[%c11_59, %c0_60], %72 {strides = array<i32>} : memref<16x16xf32, #tpu.memory_space<vmem>>, vector<1x16xf32>,
    %74 = vector.extract_strided_slice %6 {offsets = [1, 192], sizes = [1, 16], strides = [1, 1]} : vector<4x256xf32> to vector<1x16xf32>
    %c12_61 = arith.constant 12 : index
    %c0_62 = arith.constant 0 : index
    %75 = vector.load %arg9[%c12_61, %c0_62] : memref<16x16xf32, #tpu.memory_space<vmem>>, vector<1x16xf32>
    tpu.vector_store %arg9[%c12_61, %c0_62], %74 {strides = array<i32>} : memref<16x16xf32, #tpu.memory_space<vmem>>, vector<1x16xf32>,
    %76 = vector.extract_strided_slice %6 {offsets = [1, 208], sizes = [1, 16], strides = [1, 1]} : vector<4x256xf32> to vector<1x16xf32>
    %c13_63 = arith.constant 13 : index
    %c0_64 = arith.constant 0 : index
    %77 = vector.load %arg9[%c13_63, %c0_64] : memref<16x16xf32, #tpu.memory_space<vmem>>, vector<1x16xf32>
    tpu.vector_store %arg9[%c13_63, %c0_64], %76 {strides = array<i32>} : memref<16x16xf32, #tpu.memory_space<vmem>>, vector<1x16xf32>,
    %78 = vector.extract_strided_slice %6 {offsets = [1, 224], sizes = [1, 16], strides = [1, 1]} : vector<4x256xf32> to vector<1x16xf32>
    %c14_65 = arith.constant 14 : index
    %c0_66 = arith.constant 0 : index
    %79 = vector.load %arg9[%c14_65, %c0_66] : memref<16x16xf32, #tpu.memory_space<vmem>>, vector<1x16xf32>
    tpu.vector_store %arg9[%c14_65, %c0_66], %78 {strides = array<i32>} : memref<16x16xf32, #tpu.memory_space<vmem>>, vector<1x16xf32>,
    %80 = vector.extract_strided_slice %6 {offsets = [1, 240], sizes = [1, 16], strides = [1, 1]} : vector<4x256xf32> to vector<1x16xf32>
    %c15_67 = arith.constant 15 : index
    %c0_68 = arith.constant 0 : index
    %81 = vector.load %arg9[%c15_67, %c0_68] : memref<16x16xf32, #tpu.memory_space<vmem>>, vector<1x16xf32>
    tpu.vector_store %arg9[%c15_67, %c0_68], %80 {strides = array<i32>} : memref<16x16xf32, #tpu.memory_space<vmem>>, vector<1x16xf32>,
    %c0_69 = arith.constant 0 : index
    %c0_70 = arith.constant 0 : index
    %82 = vector.load %arg9[%c0_69, %c0_70] : memref<16x16xf32, #tpu.memory_space<vmem>>, vector<16x16xf32>
    %cst_71 = arith.constant dense<0.000000e+00> : vector<128x16xf32>
    %83 = tpu.matmul %10, %82, %cst_71 {dimension_numbers = #tpu.dot_dimension_numbers<[1], [0], [0], [1], [0, 0, 1, 1], [], []>} : vector<128x16xf32>, vector<16x16xf32>, vector<128x16xf32> -> vector<128x16xf32>
    %cst_72 = arith.constant dense<0.000000e+00> : vector<128x128xf32>
    %84 = tpu.matmul %83, %11, %cst_72 {dimension_numbers = #tpu.dot_dimension_numbers<[1], [0], [0], [1], [0, 0, 1, 1], [], []>} : vector<128x16xf32>, vector<16x128xf32>, vector<128x128xf32> -> vector<128x128xf32>
    %c1_73 = arith.constant 1 : index
    %c0_74 = arith.constant 0 : index
    %c0_75 = arith.constant 0 : index
    %85 = vector.load %arg8[%c1_73, %c0_74, %c0_75] : memref<4x128x128xf32, #tpu.memory_space<vmem>>, vector<1x128x128xf32>
    %86 = vector.shape_cast %85 : vector<1x128x128xf32> to vector<128x128xf32>
    %87 = vector.shape_cast %84 : vector<128x128xf32> to vector<1x128x128xf32>
    tpu.vector_store %arg8[%c1_73, %c0_74, %c0_75], %87 {strides = array<i32>} : memref<4x128x128xf32, #tpu.memory_space<vmem>>, vector<1x128x128xf32>,
    %88 = vector.extract_strided_slice %6 {offsets = [2, 0], sizes = [1, 16], strides = [1, 1]} : vector<4x256xf32> to vector<1x16xf32>
    %c0_76 = arith.constant 0 : index
    %c0_77 = arith.constant 0 : index
    %89 = vector.load %arg9[%c0_76, %c0_77] : memref<16x16xf32, #tpu.memory_space<vmem>>, vector<1x16xf32>
    tpu.vector_store %arg9[%c0_76, %c0_77], %88 {strides = array<i32>} : memref<16x16xf32, #tpu.memory_space<vmem>>, vector<1x16xf32>,
    %90 = vector.extract_strided_slice %6 {offsets = [2, 16], sizes = [1, 16], strides = [1, 1]} : vector<4x256xf32> to vector<1x16xf32>
    %c1_78 = arith.constant 1 : index
    %c0_79 = arith.constant 0 : index
    %91 = vector.load %arg9[%c1_78, %c0_79] : memref<16x16xf32, #tpu.memory_space<vmem>>, vector<1x16xf32>
    tpu.vector_store %arg9[%c1_78, %c0_79], %90 {strides = array<i32>} : memref<16x16xf32, #tpu.memory_space<vmem>>, vector<1x16xf32>,
    %92 = vector.extract_strided_slice %6 {offsets = [2, 32], sizes = [1, 16], strides = [1, 1]} : vector<4x256xf32> to vector<1x16xf32>
    %c2_80 = arith.constant 2 : index
    %c0_81 = arith.constant 0 : index
    %93 = vector.load %arg9[%c2_80, %c0_81] : memref<16x16xf32, #tpu.memory_space<vmem>>, vector<1x16xf32>
    tpu.vector_store %arg9[%c2_80, %c0_81], %92 {strides = array<i32>} : memref<16x16xf32, #tpu.memory_space<vmem>>, vector<1x16xf32>,
    %94 = vector.extract_strided_slice %6 {offsets = [2, 48], sizes = [1, 16], strides = [1, 1]} : vector<4x256xf32> to vector<1x16xf32>
    %c3_82 = arith.constant 3 : index
    %c0_83 = arith.constant 0 : index
    %95 = vector.load %arg9[%c3_82, %c0_83] : memref<16x16xf32, #tpu.memory_space<vmem>>, vector<1x16xf32>
    tpu.vector_store %arg9[%c3_82, %c0_83], %94 {strides = array<i32>} : memref<16x16xf32, #tpu.memory_space<vmem>>, vector<1x16xf32>,
    %96 = vector.extract_strided_slice %6 {offsets = [2, 64], sizes = [1, 16], strides = [1, 1]} : vector<4x256xf32> to vector<1x16xf32>
    %c4_84 = arith.constant 4 : index
    %c0_85 = arith.constant 0 : index
    %97 = vector.load %arg9[%c4_84, %c0_85] : memref<16x16xf32, #tpu.memory_space<vmem>>, vector<1x16xf32>
    tpu.vector_store %arg9[%c4_84, %c0_85], %96 {strides = array<i32>} : memref<16x16xf32, #tpu.memory_space<vmem>>, vector<1x16xf32>,
    %98 = vector.extract_strided_slice %6 {offsets = [2, 80], sizes = [1, 16], strides = [1, 1]} : vector<4x256xf32> to vector<1x16xf32>
    %c5_86 = arith.constant 5 : index
    %c0_87 = arith.constant 0 : index
    %99 = vector.load %arg9[%c5_86, %c0_87] : memref<16x16xf32, #tpu.memory_space<vmem>>, vector<1x16xf32>
    tpu.vector_store %arg9[%c5_86, %c0_87], %98 {strides = array<i32>} : memref<16x16xf32, #tpu.memory_space<vmem>>, vector<1x16xf32>,
    %100 = vector.extract_strided_slice %6 {offsets = [2, 96], sizes = [1, 16], strides = [1, 1]} : vector<4x256xf32> to vector<1x16xf32>
    %c6_88 = arith.constant 6 : index
    %c0_89 = arith.constant 0 : index
    %101 = vector.load %arg9[%c6_88, %c0_89] : memref<16x16xf32, #tpu.memory_space<vmem>>, vector<1x16xf32>
    tpu.vector_store %arg9[%c6_88, %c0_89], %100 {strides = array<i32>} : memref<16x16xf32, #tpu.memory_space<vmem>>, vector<1x16xf32>,
    %102 = vector.extract_strided_slice %6 {offsets = [2, 112], sizes = [1, 16], strides = [1, 1]} : vector<4x256xf32> to vector<1x16xf32>
    %c7_90 = arith.constant 7 : index
    %c0_91 = arith.constant 0 : index
    %103 = vector.load %arg9[%c7_90, %c0_91] : memref<16x16xf32, #tpu.memory_space<vmem>>, vector<1x16xf32>
    tpu.vector_store %arg9[%c7_90, %c0_91], %102 {strides = array<i32>} : memref<16x16xf32, #tpu.memory_space<vmem>>, vector<1x16xf32>,
    %104 = vector.extract_strided_slice %6 {offsets = [2, 128], sizes = [1, 16], strides = [1, 1]} : vector<4x256xf32> to vector<1x16xf32>
    %c8_92 = arith.constant 8 : index
    %c0_93 = arith.constant 0 : index
    %105 = vector.load %arg9[%c8_92, %c0_93] : memref<16x16xf32, #tpu.memory_space<vmem>>, vector<1x16xf32>
    tpu.vector_store %arg9[%c8_92, %c0_93], %104 {strides = array<i32>} : memref<16x16xf32, #tpu.memory_space<vmem>>, vector<1x16xf32>,
    %106 = vector.extract_strided_slice %6 {offsets = [2, 144], sizes = [1, 16], strides = [1, 1]} : vector<4x256xf32> to vector<1x16xf32>
    %c9_94 = arith.constant 9 : index
    %c0_95 = arith.constant 0 : index
    %107 = vector.load %arg9[%c9_94, %c0_95] : memref<16x16xf32, #tpu.memory_space<vmem>>, vector<1x16xf32>
    tpu.vector_store %arg9[%c9_94, %c0_95], %106 {strides = array<i32>} : memref<16x16xf32, #tpu.memory_space<vmem>>, vector<1x16xf32>,
    %108 = vector.extract_strided_slice %6 {offsets = [2, 160], sizes = [1, 16], strides = [1, 1]} : vector<4x256xf32> to vector<1x16xf32>
    %c10_96 = arith.constant 10 : index
    %c0_97 = arith.constant 0 : index
    %109 = vector.load %arg9[%c10_96, %c0_97] : memref<16x16xf32, #tpu.memory_space<vmem>>, vector<1x16xf32>
    tpu.vector_store %arg9[%c10_96, %c0_97], %108 {strides = array<i32>} : memref<16x16xf32, #tpu.memory_space<vmem>>, vector<1x16xf32>,
    %110 = vector.extract_strided_slice %6 {offsets = [2, 176], sizes = [1, 16], strides = [1, 1]} : vector<4x256xf32> to vector<1x16xf32>
    %c11_98 = arith.constant 11 : index
    %c0_99 = arith.constant 0 : index
    %111 = vector.load %arg9[%c11_98, %c0_99] : memref<16x16xf32, #tpu.memory_space<vmem>>, vector<1x16xf32>
    tpu.vector_store %arg9[%c11_98, %c0_99], %110 {strides = array<i32>} : memref<16x16xf32, #tpu.memory_space<vmem>>, vector<1x16xf32>,
    %112 = vector.extract_strided_slice %6 {offsets = [2, 192], sizes = [1, 16], strides = [1, 1]} : vector<4x256xf32> to vector<1x16xf32>
    %c12_100 = arith.constant 12 : index
    %c0_101 = arith.constant 0 : index
    %113 = vector.load %arg9[%c12_100, %c0_101] : memref<16x16xf32, #tpu.memory_space<vmem>>, vector<1x16xf32>
    tpu.vector_store %arg9[%c12_100, %c0_101], %112 {strides = array<i32>} : memref<16x16xf32, #tpu.memory_space<vmem>>, vector<1x16xf32>,
    %114 = vector.extract_strided_slice %6 {offsets = [2, 208], sizes = [1, 16], strides = [1, 1]} : vector<4x256xf32> to vector<1x16xf32>
    %c13_102 = arith.constant 13 : index
    %c0_103 = arith.constant 0 : index
    %115 = vector.load %arg9[%c13_102, %c0_103] : memref<16x16xf32, #tpu.memory_space<vmem>>, vector<1x16xf32>
    tpu.vector_store %arg9[%c13_102, %c0_103], %114 {strides = array<i32>} : memref<16x16xf32, #tpu.memory_space<vmem>>, vector<1x16xf32>,
    %116 = vector.extract_strided_slice %6 {offsets = [2, 224], sizes = [1, 16], strides = [1, 1]} : vector<4x256xf32> to vector<1x16xf32>
    %c14_104 = arith.constant 14 : index
    %c0_105 = arith.constant 0 : index
    %117 = vector.load %arg9[%c14_104, %c0_105] : memref<16x16xf32, #tpu.memory_space<vmem>>, vector<1x16xf32>
    tpu.vector_store %arg9[%c14_104, %c0_105], %116 {strides = array<i32>} : memref<16x16xf32, #tpu.memory_space<vmem>>, vector<1x16xf32>,
    %118 = vector.extract_strided_slice %6 {offsets = [2, 240], sizes = [1, 16], strides = [1, 1]} : vector<4x256xf32> to vector<1x16xf32>
    %c15_106 = arith.constant 15 : index
    %c0_107 = arith.constant 0 : index
    %119 = vector.load %arg9[%c15_106, %c0_107] : memref<16x16xf32, #tpu.memory_space<vmem>>, vector<1x16xf32>
    tpu.vector_store %arg9[%c15_106, %c0_107], %118 {strides = array<i32>} : memref<16x16xf32, #tpu.memory_space<vmem>>, vector<1x16xf32>,
    %c0_108 = arith.constant 0 : index
    %c0_109 = arith.constant 0 : index
    %120 = vector.load %arg9[%c0_108, %c0_109] : memref<16x16xf32, #tpu.memory_space<vmem>>, vector<16x16xf32>
    %cst_110 = arith.constant dense<0.000000e+00> : vector<128x16xf32>
    %121 = tpu.matmul %10, %120, %cst_110 {dimension_numbers = #tpu.dot_dimension_numbers<[1], [0], [0], [1], [0, 0, 1, 1], [], []>} : vector<128x16xf32>, vector<16x16xf32>, vector<128x16xf32> -> vector<128x16xf32>
    %cst_111 = arith.constant dense<0.000000e+00> : vector<128x128xf32>
    %122 = tpu.matmul %121, %11, %cst_111 {dimension_numbers = #tpu.dot_dimension_numbers<[1], [0], [0], [1], [0, 0, 1, 1], [], []>} : vector<128x16xf32>, vector<16x128xf32>, vector<128x128xf32> -> vector<128x128xf32>
    %c2_112 = arith.constant 2 : index
    %c0_113 = arith.constant 0 : index
    %c0_114 = arith.constant 0 : index
    %123 = vector.load %arg8[%c2_112, %c0_113, %c0_114] : memref<4x128x128xf32, #tpu.memory_space<vmem>>, vector<1x128x128xf32>
    %124 = vector.shape_cast %123 : vector<1x128x128xf32> to vector<128x128xf32>
    %125 = vector.shape_cast %122 : vector<128x128xf32> to vector<1x128x128xf32>
    tpu.vector_store %arg8[%c2_112, %c0_113, %c0_114], %125 {strides = array<i32>} : memref<4x128x128xf32, #tpu.memory_space<vmem>>, vector<1x128x128xf32>,
    %126 = vector.extract_strided_slice %6 {offsets = [3, 0], sizes = [1, 16], strides = [1, 1]} : vector<4x256xf32> to vector<1x16xf32>
    %c0_115 = arith.constant 0 : index
    %c0_116 = arith.constant 0 : index
    %127 = vector.load %arg9[%c0_115, %c0_116] : memref<16x16xf32, #tpu.memory_space<vmem>>, vector<1x16xf32>
    tpu.vector_store %arg9[%c0_115, %c0_116], %126 {strides = array<i32>} : memref<16x16xf32, #tpu.memory_space<vmem>>, vector<1x16xf32>,
    %128 = vector.extract_strided_slice %6 {offsets = [3, 16], sizes = [1, 16], strides = [1, 1]} : vector<4x256xf32> to vector<1x16xf32>
    %c1_117 = arith.constant 1 : index
    %c0_118 = arith.constant 0 : index
    %129 = vector.load %arg9[%c1_117, %c0_118] : memref<16x16xf32, #tpu.memory_space<vmem>>, vector<1x16xf32>
    tpu.vector_store %arg9[%c1_117, %c0_118], %128 {strides = array<i32>} : memref<16x16xf32, #tpu.memory_space<vmem>>, vector<1x16xf32>,
    %130 = vector.extract_strided_slice %6 {offsets = [3, 32], sizes = [1, 16], strides = [1, 1]} : vector<4x256xf32> to vector<1x16xf32>
    %c2_119 = arith.constant 2 : index
    %c0_120 = arith.constant 0 : index
    %131 = vector.load %arg9[%c2_119, %c0_120] : memref<16x16xf32, #tpu.memory_space<vmem>>, vector<1x16xf32>
    tpu.vector_store %arg9[%c2_119, %c0_120], %130 {strides = array<i32>} : memref<16x16xf32, #tpu.memory_space<vmem>>, vector<1x16xf32>,
    %132 = vector.extract_strided_slice %6 {offsets = [3, 48], sizes = [1, 16], strides = [1, 1]} : vector<4x256xf32> to vector<1x16xf32>
    %c3_121 = arith.constant 3 : index
    %c0_122 = arith.constant 0 : index
    %133 = vector.load %arg9[%c3_121, %c0_122] : memref<16x16xf32, #tpu.memory_space<vmem>>, vector<1x16xf32>
    tpu.vector_store %arg9[%c3_121, %c0_122], %132 {strides = array<i32>} : memref<16x16xf32, #tpu.memory_space<vmem>>, vector<1x16xf32>,
    %134 = vector.extract_strided_slice %6 {offsets = [3, 64], sizes = [1, 16], strides = [1, 1]} : vector<4x256xf32> to vector<1x16xf32>
    %c4_123 = arith.constant 4 : index
    %c0_124 = arith.constant 0 : index
    %135 = vector.load %arg9[%c4_123, %c0_124] : memref<16x16xf32, #tpu.memory_space<vmem>>, vector<1x16xf32>
    tpu.vector_store %arg9[%c4_123, %c0_124], %134 {strides = array<i32>} : memref<16x16xf32, #tpu.memory_space<vmem>>, vector<1x16xf32>,
    %136 = vector.extract_strided_slice %6 {offsets = [3, 80], sizes = [1, 16], strides = [1, 1]} : vector<4x256xf32> to vector<1x16xf32>
    %c5_125 = arith.constant 5 : index
    %c0_126 = arith.constant 0 : index
    %137 = vector.load %arg9[%c5_125, %c0_126] : memref<16x16xf32, #tpu.memory_space<vmem>>, vector<1x16xf32>
    tpu.vector_store %arg9[%c5_125, %c0_126], %136 {strides = array<i32>} : memref<16x16xf32, #tpu.memory_space<vmem>>, vector<1x16xf32>,
    %138 = vector.extract_strided_slice %6 {offsets = [3, 96], sizes = [1, 16], strides = [1, 1]} : vector<4x256xf32> to vector<1x16xf32>
    %c6_127 = arith.constant 6 : index
    %c0_128 = arith.constant 0 : index
    %139 = vector.load %arg9[%c6_127, %c0_128] : memref<16x16xf32, #tpu.memory_space<vmem>>, vector<1x16xf32>
    tpu.vector_store %arg9[%c6_127, %c0_128], %138 {strides = array<i32>} : memref<16x16xf32, #tpu.memory_space<vmem>>, vector<1x16xf32>,
    %140 = vector.extract_strided_slice %6 {offsets = [3, 112], sizes = [1, 16], strides = [1, 1]} : vector<4x256xf32> to vector<1x16xf32>
    %c7_129 = arith.constant 7 : index
    %c0_130 = arith.constant 0 : index
    %141 = vector.load %arg9[%c7_129, %c0_130] : memref<16x16xf32, #tpu.memory_space<vmem>>, vector<1x16xf32>
    tpu.vector_store %arg9[%c7_129, %c0_130], %140 {strides = array<i32>} : memref<16x16xf32, #tpu.memory_space<vmem>>, vector<1x16xf32>,
    %142 = vector.extract_strided_slice %6 {offsets = [3, 128], sizes = [1, 16], strides = [1, 1]} : vector<4x256xf32> to vector<1x16xf32>
    %c8_131 = arith.constant 8 : index
    %c0_132 = arith.constant 0 : index
    %143 = vector.load %arg9[%c8_131, %c0_132] : memref<16x16xf32, #tpu.memory_space<vmem>>, vector<1x16xf32>
    tpu.vector_store %arg9[%c8_131, %c0_132], %142 {strides = array<i32>} : memref<16x16xf32, #tpu.memory_space<vmem>>, vector<1x16xf32>,
    %144 = vector.extract_strided_slice %6 {offsets = [3, 144], sizes = [1, 16], strides = [1, 1]} : vector<4x256xf32> to vector<1x16xf32>
    %c9_133 = arith.constant 9 : index
    %c0_134 = arith.constant 0 : index
    %145 = vector.load %arg9[%c9_133, %c0_134] : memref<16x16xf32, #tpu.memory_space<vmem>>, vector<1x16xf32>
    tpu.vector_store %arg9[%c9_133, %c0_134], %144 {strides = array<i32>} : memref<16x16xf32, #tpu.memory_space<vmem>>, vector<1x16xf32>,
    %146 = vector.extract_strided_slice %6 {offsets = [3, 160], sizes = [1, 16], strides = [1, 1]} : vector<4x256xf32> to vector<1x16xf32>
    %c10_135 = arith.constant 10 : index
    %c0_136 = arith.constant 0 : index
    %147 = vector.load %arg9[%c10_135, %c0_136] : memref<16x16xf32, #tpu.memory_space<vmem>>, vector<1x16xf32>
    tpu.vector_store %arg9[%c10_135, %c0_136], %146 {strides = array<i32>} : memref<16x16xf32, #tpu.memory_space<vmem>>, vector<1x16xf32>,
    %148 = vector.extract_strided_slice %6 {offsets = [3, 176], sizes = [1, 16], strides = [1, 1]} : vector<4x256xf32> to vector<1x16xf32>
    %c11_137 = arith.constant 11 : index
    %c0_138 = arith.constant 0 : index
    %149 = vector.load %arg9[%c11_137, %c0_138] : memref<16x16xf32, #tpu.memory_space<vmem>>, vector<1x16xf32>
    tpu.vector_store %arg9[%c11_137, %c0_138], %148 {strides = array<i32>} : memref<16x16xf32, #tpu.memory_space<vmem>>, vector<1x16xf32>,
    %150 = vector.extract_strided_slice %6 {offsets = [3, 192], sizes = [1, 16], strides = [1, 1]} : vector<4x256xf32> to vector<1x16xf32>
    %c12_139 = arith.constant 12 : index
    %c0_140 = arith.constant 0 : index
    %151 = vector.load %arg9[%c12_139, %c0_140] : memref<16x16xf32, #tpu.memory_space<vmem>>, vector<1x16xf32>
    tpu.vector_store %arg9[%c12_139, %c0_140], %150 {strides = array<i32>} : memref<16x16xf32, #tpu.memory_space<vmem>>, vector<1x16xf32>,
    %152 = vector.extract_strided_slice %6 {offsets = [3, 208], sizes = [1, 16], strides = [1, 1]} : vector<4x256xf32> to vector<1x16xf32>
    %c13_141 = arith.constant 13 : index
    %c0_142 = arith.constant 0 : index
    %153 = vector.load %arg9[%c13_141, %c0_142] : memref<16x16xf32, #tpu.memory_space<vmem>>, vector<1x16xf32>
    tpu.vector_store %arg9[%c13_141, %c0_142], %152 {strides = array<i32>} : memref<16x16xf32, #tpu.memory_space<vmem>>, vector<1x16xf32>,
    %154 = vector.extract_strided_slice %6 {offsets = [3, 224], sizes = [1, 16], strides = [1, 1]} : vector<4x256xf32> to vector<1x16xf32>
    %c14_143 = arith.constant 14 : index
    %c0_144 = arith.constant 0 : index
    %155 = vector.load %arg9[%c14_143, %c0_144] : memref<16x16xf32, #tpu.memory_space<vmem>>, vector<1x16xf32>
    tpu.vector_store %arg9[%c14_143, %c0_144], %154 {strides = array<i32>} : memref<16x16xf32, #tpu.memory_space<vmem>>, vector<1x16xf32>,
    %156 = vector.extract_strided_slice %6 {offsets = [3, 240], sizes = [1, 16], strides = [1, 1]} : vector<4x256xf32> to vector<1x16xf32>
    %c15_145 = arith.constant 15 : index
    %c0_146 = arith.constant 0 : index
    %157 = vector.load %arg9[%c15_145, %c0_146] : memref<16x16xf32, #tpu.memory_space<vmem>>, vector<1x16xf32>
    tpu.vector_store %arg9[%c15_145, %c0_146], %156 {strides = array<i32>} : memref<16x16xf32, #tpu.memory_space<vmem>>, vector<1x16xf32>,
    %c0_147 = arith.constant 0 : index
    %c0_148 = arith.constant 0 : index
    %158 = vector.load %arg9[%c0_147, %c0_148] : memref<16x16xf32, #tpu.memory_space<vmem>>, vector<16x16xf32>
    %cst_149 = arith.constant dense<0.000000e+00> : vector<128x16xf32>
    %159 = tpu.matmul %10, %158, %cst_149 {dimension_numbers = #tpu.dot_dimension_numbers<[1], [0], [0], [1], [0, 0, 1, 1], [], []>} : vector<128x16xf32>, vector<16x16xf32>, vector<128x16xf32> -> vector<128x16xf32>
    %cst_150 = arith.constant dense<0.000000e+00> : vector<128x128xf32>
    %160 = tpu.matmul %159, %11, %cst_150 {dimension_numbers = #tpu.dot_dimension_numbers<[1], [0], [0], [1], [0, 0, 1, 1], [], []>} : vector<128x16xf32>, vector<16x128xf32>, vector<128x128xf32> -> vector<128x128xf32>
    %c3_151 = arith.constant 3 : index
    %c0_152 = arith.constant 0 : index
    %c0_153 = arith.constant 0 : index
    %161 = vector.load %arg8[%c3_151, %c0_152, %c0_153] : memref<4x128x128xf32, #tpu.memory_space<vmem>>, vector<1x128x128xf32>
    %162 = vector.shape_cast %161 : vector<1x128x128xf32> to vector<128x128xf32>
    %163 = vector.shape_cast %160 : vector<128x128xf32> to vector<1x128x128xf32>
    tpu.vector_store %arg8[%c3_151, %c0_152, %c0_153], %163 {strides = array<i32>} : memref<4x128x128xf32, #tpu.memory_space<vmem>>, vector<1x128x128xf32>,
    %c0_154 = arith.constant 0 : index
    %c0_155 = arith.constant 0 : index
    %c0_156 = arith.constant 0 : index
    %164 = vector.load %arg8[%c0_154, %c0_155, %c0_156] : memref<4x128x128xf32, #tpu.memory_space<vmem>>, vector<1x64x128xf32>
    %165 = vector.shape_cast %164 : vector<1x64x128xf32> to vector<64x128xf32>
    %c1_157 = arith.constant 1 : index
    %c0_158 = arith.constant 0 : index
    %c0_159 = arith.constant 0 : index
    %166 = vector.load %arg8[%c1_157, %c0_158, %c0_159] : memref<4x128x128xf32, #tpu.memory_space<vmem>>, vector<1x64x128xf32>
    %167 = vector.shape_cast %166 : vector<1x64x128xf32> to vector<64x128xf32>
    %168 = arith.maximumf %165, %167 : vector<64x128xf32>
    %c2_160 = arith.constant 2 : index
    %c0_161 = arith.constant 0 : index
    %c0_162 = arith.constant 0 : index
    %169 = vector.load %arg8[%c2_160, %c0_161, %c0_162] : memref<4x128x128xf32, #tpu.memory_space<vmem>>, vector<1x64x128xf32>
    %170 = vector.shape_cast %169 : vector<1x64x128xf32> to vector<64x128xf32>
    %171 = arith.maximumf %168, %170 : vector<64x128xf32>
    %c3_163 = arith.constant 3 : index
    %c0_164 = arith.constant 0 : index
    %c0_165 = arith.constant 0 : index
    %172 = vector.load %arg8[%c3_163, %c0_164, %c0_165] : memref<4x128x128xf32, #tpu.memory_space<vmem>>, vector<1x64x128xf32>
    %173 = vector.shape_cast %172 : vector<1x64x128xf32> to vector<64x128xf32>
    %174 = arith.maximumf %171, %173 : vector<64x128xf32>
    %c0_166 = arith.constant 0 : index
    %c0_167 = arith.constant 0 : index
    %c0_168 = arith.constant 0 : index
    %175 = vector.load %arg8[%c0_166, %c0_167, %c0_168] : memref<4x128x128xf32, #tpu.memory_space<vmem>>, vector<1x64x128xf32>
    %176 = vector.shape_cast %175 : vector<1x64x128xf32> to vector<64x128xf32>
    %177 = arith.subf %176, %174 : vector<64x128xf32>
    %178 = math.exp %177 : vector<64x128xf32>
    %c1_169 = arith.constant 1 : index
    %c0_170 = arith.constant 0 : index
    %c0_171 = arith.constant 0 : index
    %179 = vector.load %arg8[%c1_169, %c0_170, %c0_171] : memref<4x128x128xf32, #tpu.memory_space<vmem>>, vector<1x64x128xf32>
    %180 = vector.shape_cast %179 : vector<1x64x128xf32> to vector<64x128xf32>
    %181 = arith.subf %180, %174 : vector<64x128xf32>
    %182 = math.exp %181 : vector<64x128xf32>
    %183 = arith.addf %178, %182 : vector<64x128xf32>
    %c2_172 = arith.constant 2 : index
    %c0_173 = arith.constant 0 : index
    %c0_174 = arith.constant 0 : index
    %184 = vector.load %arg8[%c2_172, %c0_173, %c0_174] : memref<4x128x128xf32, #tpu.memory_space<vmem>>, vector<1x64x128xf32>
    %185 = vector.shape_cast %184 : vector<1x64x128xf32> to vector<64x128xf32>
    %186 = arith.subf %185, %174 : vector<64x128xf32>
    %187 = math.exp %186 : vector<64x128xf32>
    %188 = arith.addf %183, %187 : vector<64x128xf32>
    %c3_175 = arith.constant 3 : index
    %c0_176 = arith.constant 0 : index
    %c0_177 = arith.constant 0 : index
    %189 = vector.load %arg8[%c3_175, %c0_176, %c0_177] : memref<4x128x128xf32, #tpu.memory_space<vmem>>, vector<1x64x128xf32>
    %190 = vector.shape_cast %189 : vector<1x64x128xf32> to vector<64x128xf32>
    %191 = arith.subf %190, %174 : vector<64x128xf32>
    %192 = math.exp %191 : vector<64x128xf32>
    %193 = arith.addf %188, %192 : vector<64x128xf32>
    %194 = math.log %193 : vector<64x128xf32>
    %195 = arith.addf %174, %194 : vector<64x128xf32>
    %c0_178 = arith.constant 0 : index
    %c0_179 = arith.constant 0 : index
    %c0_180 = arith.constant 0 : index
    %196 = vector.load %arg8[%c0_178, %c0_179, %c0_180] : memref<4x128x128xf32, #tpu.memory_space<vmem>>, vector<1x64x128xf32>
    %197 = vector.shape_cast %196 : vector<1x64x128xf32> to vector<64x128xf32>
    %198 = arith.subf %197, %195 : vector<64x128xf32>
    %c0_181 = arith.constant 0 : index
    %c0_182 = arith.constant 0 : index
    %c0_183 = arith.constant 0 : index
    %c0_184 = arith.constant 0 : index
    %199 = vector.load %arg6[%c0_181, %c0_182, %c0_183, %c0_184] : memref<1x4x128x128xf32, #tpu.memory_space<vmem>>, vector<1x1x64x128xf32>
    %200 = vector.shape_cast %199 : vector<1x1x64x128xf32> to vector<64x128xf32>
    %201 = vector.shape_cast %198 : vector<64x128xf32> to vector<1x1x64x128xf32>
    tpu.vector_store %arg6[%c0_181, %c0_182, %c0_183, %c0_184], %201 {strides = array<i32>} : memref<1x4x128x128xf32, #tpu.memory_space<vmem>>, vector<1x1x64x128xf32>,
    %c1_185 = arith.constant 1 : index
    %c0_186 = arith.constant 0 : index
    %c0_187 = arith.constant 0 : index
    %202 = vector.load %arg8[%c1_185, %c0_186, %c0_187] : memref<4x128x128xf32, #tpu.memory_space<vmem>>, vector<1x64x128xf32>
    %203 = vector.shape_cast %202 : vector<1x64x128xf32> to vector<64x128xf32>
    %204 = arith.subf %203, %195 : vector<64x128xf32>
    %c0_188 = arith.constant 0 : index
    %c1_189 = arith.constant 1 : index
    %c0_190 = arith.constant 0 : index
    %c0_191 = arith.constant 0 : index
    %205 = vector.load %arg6[%c0_188, %c1_189, %c0_190, %c0_191] : memref<1x4x128x128xf32, #tpu.memory_space<vmem>>, vector<1x1x64x128xf32>
    %206 = vector.shape_cast %205 : vector<1x1x64x128xf32> to vector<64x128xf32>
    %207 = vector.shape_cast %204 : vector<64x128xf32> to vector<1x1x64x128xf32>
    tpu.vector_store %arg6[%c0_188, %c1_189, %c0_190, %c0_191], %207 {strides = array<i32>} : memref<1x4x128x128xf32, #tpu.memory_space<vmem>>, vector<1x1x64x128xf32>,
    %c2_192 = arith.constant 2 : index
    %c0_193 = arith.constant 0 : index
    %c0_194 = arith.constant 0 : index
    %208 = vector.load %arg8[%c2_192, %c0_193, %c0_194] : memref<4x128x128xf32, #tpu.memory_space<vmem>>, vector<1x64x128xf32>
    %209 = vector.shape_cast %208 : vector<1x64x128xf32> to vector<64x128xf32>
    %210 = arith.subf %209, %195 : vector<64x128xf32>
    %c0_195 = arith.constant 0 : index
    %c2_196 = arith.constant 2 : index
    %c0_197 = arith.constant 0 : index
    %c0_198 = arith.constant 0 : index
    %211 = vector.load %arg6[%c0_195, %c2_196, %c0_197, %c0_198] : memref<1x4x128x128xf32, #tpu.memory_space<vmem>>, vector<1x1x64x128xf32>
    %212 = vector.shape_cast %211 : vector<1x1x64x128xf32> to vector<64x128xf32>
    %213 = vector.shape_cast %210 : vector<64x128xf32> to vector<1x1x64x128xf32>
    tpu.vector_store %arg6[%c0_195, %c2_196, %c0_197, %c0_198], %213 {strides = array<i32>} : memref<1x4x128x128xf32, #tpu.memory_space<vmem>>, vector<1x1x64x128xf32>,
    %c3_199 = arith.constant 3 : index
    %c0_200 = arith.constant 0 : index
    %c0_201 = arith.constant 0 : index
    %214 = vector.load %arg8[%c3_199, %c0_200, %c0_201] : memref<4x128x128xf32, #tpu.memory_space<vmem>>, vector<1x64x128xf32>
    %215 = vector.shape_cast %214 : vector<1x64x128xf32> to vector<64x128xf32>
    %216 = arith.subf %215, %195 : vector<64x128xf32>
    %c0_202 = arith.constant 0 : index
    %c3_203 = arith.constant 3 : index
    %c0_204 = arith.constant 0 : index
    %c0_205 = arith.constant 0 : index
    %217 = vector.load %arg6[%c0_202, %c3_203, %c0_204, %c0_205] : memref<1x4x128x128xf32, #tpu.memory_space<vmem>>, vector<1x1x64x128xf32>
    %218 = vector.shape_cast %217 : vector<1x1x64x128xf32> to vector<64x128xf32>
    %219 = vector.shape_cast %216 : vector<64x128xf32> to vector<1x1x64x128xf32>
    tpu.vector_store %arg6[%c0_202, %c3_203, %c0_204, %c0_205], %219 {strides = array<i32>} : memref<1x4x128x128xf32, #tpu.memory_space<vmem>>, vector<1x1x64x128xf32>,
    %c0_206 = arith.constant 0 : index
    %c64 = arith.constant 64 : index
    %c0_207 = arith.constant 0 : index
    %220 = vector.load %arg8[%c0_206, %c64, %c0_207] : memref<4x128x128xf32, #tpu.memory_space<vmem>>, vector<1x64x128xf32>
    %221 = vector.shape_cast %220 : vector<1x64x128xf32> to vector<64x128xf32>
    %c1_208 = arith.constant 1 : index
    %c64_209 = arith.constant 64 : index
    %c0_210 = arith.constant 0 : index
    %222 = vector.load %arg8[%c1_208, %c64_209, %c0_210] : memref<4x128x128xf32, #tpu.memory_space<vmem>>, vector<1x64x128xf32>
    %223 = vector.shape_cast %222 : vector<1x64x128xf32> to vector<64x128xf32>
    %224 = arith.maximumf %221, %223 : vector<64x128xf32>
    %c2_211 = arith.constant 2 : index
    %c64_212 = arith.constant 64 : index
    %c0_213 = arith.constant 0 : index
    %225 = vector.load %arg8[%c2_211, %c64_212, %c0_213] : memref<4x128x128xf32, #tpu.memory_space<vmem>>, vector<1x64x128xf32>
    %226 = vector.shape_cast %225 : vector<1x64x128xf32> to vector<64x128xf32>
    %227 = arith.maximumf %224, %226 : vector<64x128xf32>
    %c3_214 = arith.constant 3 : index
    %c64_215 = arith.constant 64 : index
    %c0_216 = arith.constant 0 : index
    %228 = vector.load %arg8[%c3_214, %c64_215, %c0_216] : memref<4x128x128xf32, #tpu.memory_space<vmem>>, vector<1x64x128xf32>
    %229 = vector.shape_cast %228 : vector<1x64x128xf32> to vector<64x128xf32>
    %230 = arith.maximumf %227, %229 : vector<64x128xf32>
    %c0_217 = arith.constant 0 : index
    %c64_218 = arith.constant 64 : index
    %c0_219 = arith.constant 0 : index
    %231 = vector.load %arg8[%c0_217, %c64_218, %c0_219] : memref<4x128x128xf32, #tpu.memory_space<vmem>>, vector<1x64x128xf32>
    %232 = vector.shape_cast %231 : vector<1x64x128xf32> to vector<64x128xf32>
    %233 = arith.subf %232, %230 : vector<64x128xf32>
    %234 = math.exp %233 : vector<64x128xf32>
    %c1_220 = arith.constant 1 : index
    %c64_221 = arith.constant 64 : index
    %c0_222 = arith.constant 0 : index
    %235 = vector.load %arg8[%c1_220, %c64_221, %c0_222] : memref<4x128x128xf32, #tpu.memory_space<vmem>>, vector<1x64x128xf32>
    %236 = vector.shape_cast %235 : vector<1x64x128xf32> to vector<64x128xf32>
    %237 = arith.subf %236, %230 : vector<64x128xf32>
    %238 = math.exp %237 : vector<64x128xf32>
    %239 = arith.addf %234, %238 : vector<64x128xf32>
    %c2_223 = arith.constant 2 : index
    %c64_224 = arith.constant 64 : index
    %c0_225 = arith.constant 0 : index
    %240 = vector.load %arg8[%c2_223, %c64_224, %c0_225] : memref<4x128x128xf32, #tpu.memory_space<vmem>>, vector<1x64x128xf32>
    %241 = vector.shape_cast %240 : vector<1x64x128xf32> to vector<64x128xf32>
    %242 = arith.subf %241, %230 : vector<64x128xf32>
    %243 = math.exp %242 : vector<64x128xf32>
    %244 = arith.addf %239, %243 : vector<64x128xf32>
    %c3_226 = arith.constant 3 : index
    %c64_227 = arith.constant 64 : index
    %c0_228 = arith.constant 0 : index
    %245 = vector.load %arg8[%c3_226, %c64_227, %c0_228] : memref<4x128x128xf32, #tpu.memory_space<vmem>>, vector<1x64x128xf32>
    %246 = vector.shape_cast %245 : vector<1x64x128xf32> to vector<64x128xf32>
    %247 = arith.subf %246, %230 : vector<64x128xf32>
    %248 = math.exp %247 : vector<64x128xf32>
    %249 = arith.addf %244, %248 : vector<64x128xf32>
    %250 = math.log %249 : vector<64x128xf32>
    %251 = arith.addf %230, %250 : vector<64x128xf32>
    %c0_229 = arith.constant 0 : index
    %c64_230 = arith.constant 64 : index
    %c0_231 = arith.constant 0 : index
    %252 = vector.load %arg8[%c0_229, %c64_230, %c0_231] : memref<4x128x128xf32, #tpu.memory_space<vmem>>, vector<1x64x128xf32>
    %253 = vector.shape_cast %252 : vector<1x64x128xf32> to vector<64x128xf32>
    %254 = arith.subf %253, %251 : vector<64x128xf32>
    %c0_232 = arith.constant 0 : index
    %c0_233 = arith.constant 0 : index
    %c64_234 = arith.constant 64 : index
    %c0_235 = arith.constant 0 : index
    %255 = vector.load %arg6[%c0_232, %c0_233, %c64_234, %c0_235] : memref<1x4x128x128xf32, #tpu.memory_space<vmem>>, vector<1x1x64x128xf32>
    %256 = vector.shape_cast %255 : vector<1x1x64x128xf32> to vector<64x128xf32>
    %257 = vector.shape_cast %254 : vector<64x128xf32> to vector<1x1x64x128xf32>
    tpu.vector_store %arg6[%c0_232, %c0_233, %c64_234, %c0_235], %257 {strides = array<i32>} : memref<1x4x128x128xf32, #tpu.memory_space<vmem>>, vector<1x1x64x128xf32>,
    %c1_236 = arith.constant 1 : index
    %c64_237 = arith.constant 64 : index
    %c0_238 = arith.constant 0 : index
    %258 = vector.load %arg8[%c1_236, %c64_237, %c0_238] : memref<4x128x128xf32, #tpu.memory_space<vmem>>, vector<1x64x128xf32>
    %259 = vector.shape_cast %258 : vector<1x64x128xf32> to vector<64x128xf32>
    %260 = arith.subf %259, %251 : vector<64x128xf32>
    %c0_239 = arith.constant 0 : index
    %c1_240 = arith.constant 1 : index
    %c64_241 = arith.constant 64 : index
    %c0_242 = arith.constant 0 : index
    %261 = vector.load %arg6[%c0_239, %c1_240, %c64_241, %c0_242] : memref<1x4x128x128xf32, #tpu.memory_space<vmem>>, vector<1x1x64x128xf32>
    %262 = vector.shape_cast %261 : vector<1x1x64x128xf32> to vector<64x128xf32>
    %263 = vector.shape_cast %260 : vector<64x128xf32> to vector<1x1x64x128xf32>
    tpu.vector_store %arg6[%c0_239, %c1_240, %c64_241, %c0_242], %263 {strides = array<i32>} : memref<1x4x128x128xf32, #tpu.memory_space<vmem>>, vector<1x1x64x128xf32>,
    %c2_243 = arith.constant 2 : index
    %c64_244 = arith.constant 64 : index
    %c0_245 = arith.constant 0 : index
    %264 = vector.load %arg8[%c2_243, %c64_244, %c0_245] : memref<4x128x128xf32, #tpu.memory_space<vmem>>, vector<1x64x128xf32>
    %265 = vector.shape_cast %264 : vector<1x64x128xf32> to vector<64x128xf32>
    %266 = arith.subf %265, %251 : vector<64x128xf32>
    %c0_246 = arith.constant 0 : index
    %c2_247 = arith.constant 2 : index
    %c64_248 = arith.constant 64 : index
    %c0_249 = arith.constant 0 : index
    %267 = vector.load %arg6[%c0_246, %c2_247, %c64_248, %c0_249] : memref<1x4x128x128xf32, #tpu.memory_space<vmem>>, vector<1x1x64x128xf32>
    %268 = vector.shape_cast %267 : vector<1x1x64x128xf32> to vector<64x128xf32>
    %269 = vector.shape_cast %266 : vector<64x128xf32> to vector<1x1x64x128xf32>
    tpu.vector_store %arg6[%c0_246, %c2_247, %c64_248, %c0_249], %269 {strides = array<i32>} : memref<1x4x128x128xf32, #tpu.memory_space<vmem>>, vector<1x1x64x128xf32>,
    %c3_250 = arith.constant 3 : index
    %c64_251 = arith.constant 64 : index
    %c0_252 = arith.constant 0 : index
    %270 = vector.load %arg8[%c3_250, %c64_251, %c0_252] : memref<4x128x128xf32, #tpu.memory_space<vmem>>, vector<1x64x128xf32>
    %271 = vector.shape_cast %270 : vector<1x64x128xf32> to vector<64x128xf32>
    %272 = arith.subf %271, %251 : vector<64x128xf32>
    %c0_253 = arith.constant 0 : index
    %c3_254 = arith.constant 3 : index
    %c64_255 = arith.constant 64 : index
    %c0_256 = arith.constant 0 : index
    %273 = vector.load %arg6[%c0_253, %c3_254, %c64_255, %c0_256] : memref<1x4x128x128xf32, #tpu.memory_space<vmem>>, vector<1x1x64x128xf32>
    %274 = vector.shape_cast %273 : vector<1x1x64x128xf32> to vector<64x128xf32>
    %275 = vector.shape_cast %272 : vector<64x128xf32> to vector<1x1x64x128xf32>
    tpu.vector_store %arg6[%c0_253, %c3_254, %c64_255, %c0_256], %275 {strides = array<i32>} : memref<1x4x128x128xf32, #tpu.memory_space<vmem>>, vector<1x1x64x128xf32>,
    return
  }
  func.func @transform_0(%arg0: i32) -> (i32, i32, i32) {
    %c0_i32 = arith.constant 0 : i32
    %c0_i32_0 = arith.constant 0 : i32
    %c0_i32_1 = arith.constant 0 : i32
    return %arg0, %c0_i32, %c0_i32_0 : i32, i32, i32
  }
  func.func @transform_1(%arg0: i32) -> (i32, i32) {
    %c0_i32 = arith.constant 0 : i32
    %c0_i32_0 = arith.constant 0 : i32
    %c0_i32_1 = arith.constant 0 : i32
    return %c0_i32, %c0_i32_0 : i32, i32
  }
  func.func @transform_2(%arg0: i32) -> (i32, i32) {
    %c0_i32 = arith.constant 0 : i32
    %c0_i32_0 = arith.constant 0 : i32
    %c0_i32_1 = arith.constant 0 : i32
    return %c0_i32, %c0_i32_0 : i32, i32
  }
  func.func @transform_3(%arg0: i32) -> (i32, i32) {
    %c0_i32 = arith.constant 0 : i32
    %c0_i32_0 = arith.constant 0 : i32
    %c0_i32_1 = arith.constant 0 : i32
    return %c0_i32, %c0_i32_0 : i32, i32
  }
  func.func @transform_4(%arg0: i32) -> (i32, i32) {
    %c0_i32 = arith.constant 0 : i32
    %c0_i32_0 = arith.constant 0 : i32
    %c0_i32_1 = arith.constant 0 : i32
    return %c0_i32, %c0_i32_0 : i32, i32
  }
  func.func @transform_5(%arg0: i32) -> (i32, i32, i32, i32) {
    %c0_i32 = arith.constant 0 : i32
    %c0_i32_0 = arith.constant 0 : i32
    %c0_i32_1 = arith.constant 0 : i32
    %c0_i32_2 = arith.constant 0 : i32
    return %arg0, %c0_i32, %c0_i32_0, %c0_i32_1 : i32, i32, i32, i32
  }
  func.func @transform_6(%arg0: i32) -> (i32, i32, i32) {
    %c0_i32 = arith.constant 0 : i32
    %c0_i32_0 = arith.constant 0 : i32
    %c0_i32_1 = arith.constant 0 : i32
    return %arg0, %c0_i32, %c0_i32_0 : i32, i32, i32
  }
}

</mosaic_0001>

<llo_original>
// kernel: drnseg_forward.1
$region0: #{drnseg_forward.1}
  #allocation0 [shape = 'u32[]', space=smem, size = 0x4, offset = 0x4, fixed_abs, tag = 'smem constant byte address 0x4 - core index']
  #allocation1 [shape = 'u32[144,128]{1,0:T(1,128)}', space=vmem, size = 0x12000, scoped, tag = 'internal scratch']
  #allocation2 [shape = 'f32[4,128,128]{2,1,0:T(8,128)}', space=vmem, size = 0x40000, scoped, tag = 'scratch operand']
  #allocation3 [shape = 'f32[16,16]{1,0:T(8,128)}', space=vmem, size = 0x2000, scoped, tag = 'scratch operand']
  %s0 = inlined_call_operand.vmem [shape: f32[2,16,256], index: 0, kind: input, shape index: {}]
  %s1 = inlined_call_operand.vmem [shape: f32[4,16], index: 1, kind: input, shape index: {}]
  %s2 = inlined_call_operand.vmem [shape: f32[4,1], index: 2, kind: input, shape index: {}]
  %s3 = inlined_call_operand.vmem [shape: f32[128,16], index: 3, kind: input, shape index: {}]
  %s4 = inlined_call_operand.vmem [shape: f32[16,128], index: 4, kind: input, shape index: {}]
  %s5 = inlined_call_operand.hbm [shape: f32[2,4,128,128], index: 5, kind: output, shape index: {0}]
  %s6 = inlined_call_operand.vmem [shape: f32[2,4,256], index: 6, kind: output, shape index: {1}]
  %7 = xla_tuple %s5, %s6
  %s8 = sld [smem:[#allocation0]]
  $region61: #{drnseg_forward.1} parent=0
    _
  %s10 = ssub.s32 1, %s8
  %s11 = scalar_select 0, %s10, %s8
  $region1: #{drnseg_forward.1} parent=0
    #allocation4 [shape = 'u8[524288]{0}', space=vmem, size = 0x80000, scoped, tag = 'output window, operand 0']
    #allocation5 [shape = 's32[2]{0}', space=sflag, size = 0x8, scoped, tag = 'scoped memory for drnseg_forward.1']
    %12 = vsyncpa [#allocation5], 0
    %s13 = scalar_lea.sflag [#allocation5], 1
    %14 = vsyncpa %s13, 0
    loop: start=0, step=1, limit=4
    $region2: #{drnseg_forward.1} parent=1 // loop_pre_header
      _
    $region3: #{drnseg_forward.1} parent=1 // loop_header
      %s16 = sphi 0, %s20
      %p17 = scmp.ge.s32.totalorder %s16, 4
      %s26 = sphi 0, %s28
      %s29 = sphi 0, %s26
      %s30 = sphi 0, %s29
      %s46 = sphi 0, %s30
      %s50 = sphi 0, %s50
      %s52 = sphi 0, %s50
      %s53 = sphi 0, %s52
      %s67 = sphi 0, %s53
      %s71 = sphi 0, %s71
      %s73 = sphi 0, %s71
      %s74 = sphi 0, %s73
      %s88 = sphi 0, %s74
      %s92 = sphi 0, %s92
      %s94 = sphi 0, %s92
      %s95 = sphi 0, %s94
      %s109 = sphi 0, %s95
      %s113 = sphi 0, %s113
      %s115 = sphi 0, %s113
      %s116 = sphi 0, %s115
      %s130 = sphi 0, %s116
      %s136 = sphi 0, %s138
      %s139 = sphi 0, %s136
      %s140 = sphi 0, %s139
      %s156 = sphi 0, %s140
      %s162 = sphi 0, %s164
      %s165 = sphi 0, %s162
      %s166 = sphi 0, %s165
      %s182 = sphi 0, %s166
    $region4: #{drnseg_forward.1} parent=1 // loop_header_branch
      %19 = sbr.rel (%p17) target = $region8
    $region5: #{drnseg_forward.1} parent=1 // loop_body
      %s21 = ssub.s32 %s16, 1
      %s22 = ssub.s32 %s16, 2
      %s23 = sadd.s32 %s16, 1
      %s24 = ssub.s32 %s16, %s23
      %p25 = scmp.eq.s32.totalorder %s24, 0
      %s27 = sadd.s32 %s26, 1
      %s28 = scalar_select %p25, %s26, %s27
      %p31 = pneg %p25
      %p32 = scmp.eq.s32.totalorder %s16, 1
      %p33 = por %p31, %p32
      %p34 = scmp.ne.s32.totalorder %s26, %s29
      %p35 = scmp.eq.s32.totalorder %s16, 0
      %p36 = por %p34, %p35
      %p37 = scmp.ne.s32.totalorder %s26, %s29
      %p38 = scmp.eq.s32.totalorder %s21, 1
      %p39 = por %p37, %p38
      %p40 = scmp.ne.s32.totalorder %s29, %s30
      %p41 = scmp.eq.s32.totalorder %s21, 0
      %p42 = por %p40, %p41
      %p43 = scmp.ne.s32.totalorder %s29, %s30
      %p44 = scmp.eq.s32.totalorder %s22, 1
      %p45 = por %p43, %p44
      %p47 = scmp.ne.s32.totalorder %s30, %s46
      %p48 = scmp.eq.s32.totalorder %s22, 0
      %p49 = por %p47, %p48
      %s51 = sadd.s32 %s50, 1
      %p54 = scmp.eq.s32.totalorder %s16, 1
      %p55 = scmp.ne.s32.totalorder %s50, %s52
      %p56 = scmp.eq.s32.totalorder %s16, 0
      %p57 = por %p55, %p56
      %p58 = scmp.ne.s32.totalorder %s50, %s52
      %p59 = scmp.eq.s32.totalorder %s21, 1
      %p60 = por %p58, %p59
      %p61 = scmp.ne.s32.totalorder %s52, %s53
      %p62 = scmp.eq.s32.totalorder %s21, 0
      %p63 = por %p61, %p62
      %p64 = scmp.ne.s32.totalorder %s52, %s53
      %p65 = scmp.eq.s32.totalorder %s22, 1
      %p66 = por %p64, %p65
      %p68 = scmp.ne.s32.totalorder %s53, %s67
      %p69 = scmp.eq.s32.totalorder %s22, 0
      %p70 = por %p68, %p69
      %s72 = sadd.s32 %s71, 1
      %p75 = scmp.eq.s32.totalorder %s16, 1
      %p76 = scmp.ne.s32.totalorder %s71, %s73
      %p77 = scmp.eq.s32.totalorder %s16, 0
      %p78 = por %p76, %p77
      %p79 = scmp.ne.s32.totalorder %s71, %s73
      %p80 = scmp.eq.s32.totalorder %s21, 1
      %p81 = por %p79, %p80
      %p82 = scmp.ne.s32.totalorder %s73, %s74
      %p83 = scmp.eq.s32.totalorder %s21, 0
      %p84 = por %p82, %p83
      %p85 = scmp.ne.s32.totalorder %s73, %s74
      %p86 = scmp.eq.s32.totalorder %s22, 1
      %p87 = por %p85, %p86
      %p89 = scmp.ne.s32.totalorder %s74, %s88
      %p90 = scmp.eq.s32.totalorder %s22, 0
      %p91 = por %p89, %p90
      %s93 = sadd.s32 %s92, 1
      %p96 = scmp.eq.s32.totalorder %s16, 1
      %p97 = scmp.ne.s32.totalorder %s92, %s94
      %p98 = scmp.eq.s32.totalorder %s16, 0
      %p99 = por %p97, %p98
      %p100 = scmp.ne.s32.totalorder %s92, %s94
      %p101 = scmp.eq.s32.totalorder %s21, 1
      %p102 = por %p100, %p101
      %p103 = scmp.ne.s32.totalorder %s94, %s95
      %p104 = scmp.eq.s32.totalorder %s21, 0
      %p105 = por %p103, %p104
      %p106 = scmp.ne.s32.totalorder %s94, %s95
      %p107 = scmp.eq.s32.totalorder %s22, 1
      %p108 = por %p106, %p107
      %p110 = scmp.ne.s32.totalorder %s95, %s109
      %p111 = scmp.eq.s32.totalorder %s22, 0
      %p112 = por %p110, %p111
      %s114 = sadd.s32 %s113, 1
      %p117 = scmp.eq.s32.totalorder %s16, 1
      %p118 = scmp.ne.s32.totalorder %s113, %s115
      %p119 = scmp.eq.s32.totalorder %s16, 0
      %p120 = por %p118, %p119
      %p121 = scmp.ne.s32.totalorder %s113, %s115
      %p122 = scmp.eq.s32.totalorder %s21, 1
      %p123 = por %p121, %p122
      %p124 = scmp.ne.s32.totalorder %s115, %s116
      %p125 = scmp.eq.s32.totalorder %s21, 0
      %p126 = por %p124, %p125
      %p127 = scmp.ne.s32.totalorder %s115, %s116
      %p128 = scmp.eq.s32.totalorder %s22, 1
      %p129 = por %p127, %p128
      %p131 = scmp.ne.s32.totalorder %s116, %s130
      %p132 = scmp.eq.s32.totalorder %s22, 0
      %p133 = por %p131, %p132
      %s134 = ssub.s32 %s16, %s23
      %p135 = scmp.eq.s32.totalorder %s134, 0
      %s137 = sadd.s32 %s136, 1
      %s138 = scalar_select %p135, %s136, %s137
      %p141 = pneg %p135
      %p142 = scmp.eq.s32.totalorder %s16, 1
      %p143 = por %p141, %p142
      %p144 = scmp.ne.s32.totalorder %s136, %s139
      %p145 = scmp.eq.s32.totalorder %s16, 0
      %p146 = por %p144, %p145
      %p147 = scmp.ne.s32.totalorder %s136, %s139
      %p148 = scmp.eq.s32.totalorder %s21, 1
      %p149 = por %p147, %p148
      %p150 = scmp.ne.s32.totalorder %s139, %s140
      %p151 = scmp.eq.s32.totalorder %s21, 0
      %p152 = por %p150, %p151
      %p153 = scmp.ne.s32.totalorder %s139, %s140
      %p154 = scmp.eq.s32.totalorder %s22, 1
      %p155 = por %p153, %p154
      %p157 = scmp.ne.s32.totalorder %s140, %s156
      %p158 = scmp.eq.s32.totalorder %s22, 0
      %p159 = por %p157, %p158
      %s160 = ssub.s32 %s16, %s23
      %p161 = scmp.eq.s32.totalorder %s160, 0
      %s163 = sadd.s32 %s162, 1
      %s164 = scalar_select %p161, %s162, %s163
      %p167 = pneg %p161
      %p168 = scmp.eq.s32.totalorder %s16, 1
      %p169 = por %p167, %p168
      %p170 = scmp.ne.s32.totalorder %s162, %s165
      %p171 = scmp.eq.s32.totalorder %s16, 0
      %p172 = por %p170, %p171
      %p173 = scmp.ne.s32.totalorder %s162, %s165
      %p174 = scmp.eq.s32.totalorder %s21, 1
      %p175 = por %p173, %p174
      %p176 = scmp.ne.s32.totalorder %s165, %s166
      %p177 = scmp.eq.s32.totalorder %s21, 0
      %p178 = por %p176, %p177
      %p179 = scmp.ne.s32.totalorder %s165, %s166
      %p180 = scmp.eq.s32.totalorder %s22, 1
      %p181 = por %p179, %p180
      %p183 = scmp.ne.s32.totalorder %s166, %s182
      %p184 = scmp.eq.s32.totalorder %s22, 0
      %p185 = por %p183, %p184
      %p186 = scmp.le.s32.totalorder 1, %s16
      %p187 = scmp.lt.s32.totalorder %s16, 3
      %p188 = pnand %p186, %p187
      %p189 = pneg %p188
      // Predicated region
      $region9: #{drnseg_forward.1} parent=5 // pred_check
        _
      $region10: #{drnseg_forward.1} parent=5 // pred_check_branch
        %191 = sbr.rel (%p188) target = $region12
      $region11: #{drnseg_forward.1} parent=5 // pred_region
        %s192 = ssub.s32 %s16, 1
        // Predicated region
        $region13: #{drnseg_forward.1} parent=11 // pred_check
          %p193 = pneg %p63
        $region14: #{drnseg_forward.1} parent=11 // pred_check_branch
          %195 = sbr.rel (%p193) target = $region16
        $region15: #{drnseg_forward.1} parent=11 // pred_region
          _
        $region16: #{drnseg_forward.1} parent=11 // pred_fallthru
          _
        // Predicated region
        $region17: #{drnseg_forward.1} parent=11 // pred_check
          %p196 = pneg %p84
        $region18: #{drnseg_forward.1} parent=11 // pred_check_branch
          %198 = sbr.rel (%p196) target = $region20
        $region19: #{drnseg_forward.1} parent=11 // pred_region
          _
        $region20: #{drnseg_forward.1} parent=11 // pred_fallthru
          _
        // Predicated region
        $region21: #{drnseg_forward.1} parent=11 // pred_check
          %p199 = pneg %p105
        $region22: #{drnseg_forward.1} parent=11 // pred_check_branch
          %201 = sbr.rel (%p199) target = $region24
        $region23: #{drnseg_forward.1} parent=11 // pred_region
          _
        $region24: #{drnseg_forward.1} parent=11 // pred_fallthru
          _
        // Predicated region
        $region25: #{drnseg_forward.1} parent=11 // pred_check
          %p202 = pneg %p126
        $region26: #{drnseg_forward.1} parent=11 // pred_check_branch
          %204 = sbr.rel (%p202) target = $region28
        $region27: #{drnseg_forward.1} parent=11 // pred_region
          _
        $region28: #{drnseg_forward.1} parent=11 // pred_fallthru
          _
      $region12: #{drnseg_forward.1} parent=5 // pred_fallthru
        _
      %p205 = scmp.lt.s32.totalorder %s16, 2
      // Predicated region
      $region29: #{drnseg_forward.1} parent=5 // pred_check
        %p206 = pneg %p205
      $region30: #{drnseg_forward.1} parent=5 // pred_check_branch
        %208 = sbr.rel (%p206) target = $region32
      $region31: #{drnseg_forward.1} parent=5 // pred_region
        // Predicated region
        $region33: #{drnseg_forward.1} parent=31 // pred_check
          %p209 = pneg %p36
        $region34: #{drnseg_forward.1} parent=31 // pred_check_branch
          %211 = sbr.rel (%p209) target = $region36
        $region35: #{drnseg_forward.1} parent=31 // pred_region
          %p212 = scmp.lt.s32.totalorder %s16, 1
          %s213 = scalar_select %p212, %s16, 1
          %s214 = smul.addr %s213, 4
          %s215 = smul.addr %s214, 8
          %s216 = scalar_lea.vmem %s0, %s215
        $region36: #{drnseg_forward.1} parent=31 // pred_fallthru
          _
      $region32: #{drnseg_forward.1} parent=5 // pred_fallthru
        _
      %p217 = scmp.le.s32.totalorder 1, %s16
      %p218 = scmp.lt.s32.totalorder %s16, 3
      %p219 = pnand %p217, %p218
      %p220 = pneg %p219
      // Predicated region
      $region37: #{drnseg_forward.1} parent=5 // pred_check
        _
      $region38: #{drnseg_forward.1} parent=5 // pred_check_branch
        %222 = sbr.rel (%p219) target = $region40
      $region39: #{drnseg_forward.1} parent=5 // pred_region
        %s223 = ssub.s32 %s16, 1
        %p224 = scmp.lt.s32.totalorder %s21, 1
        %s225 = scalar_select %p224, %s21, 1
        %s226 = smul.addr %s225, 4
        %s227 = smul.addr %s226, 8
        %s228 = scalar_lea.vmem %s0, %s227
        %p229 = pneg %p42
        %p230 = pneg %p39
        %p231 = pneg %p63
        %p232 = pneg %p60
        %p233 = pneg %p84
        %p234 = pneg %p81
        %p235 = pneg %p105
        %p236 = pneg %p102
        %p237 = pneg %p126
        %p238 = pneg %p123
        %p239 = pneg %p152
        %p240 = pneg %p149
        %s241 = sand.u32 %s139, 1
        %s242 = scalar_lea.sflag [#allocation5], %s241
        %s243 = sand.u32 %s139, 1
        %s244 = smul.addr %s243, 512
        %s245 = scalar_lea.vmem [#allocation4], %s244
        %p246 = pneg %p178
        %p247 = pneg %p175
        %p248 = scmp.lt.s32.totalorder %s21, 1
        %s249 = scalar_select %p248, %s21, 1
        %s250 = smul.addr %s249, 2
        %s251 = smul.addr %s250, 4
        %s252 = scalar_lea.vmem %s6, %s251
        %p253 = scmp.lt.s32.totalorder %s21, 1
        %s254 = scalar_select %p253, %s21, 1
        %s255 = smul.addr %s254, 4
        %s256 = smul.addr %s255, 8
        %s257 = scalar_lea.vmem %s0, %s256
        %p258 = scmp.lt.s32.totalorder %s21, 1
        %s259 = scalar_select %p258, %s21, 1
        %s260 = smul.addr %s259, 2
        %s261 = smul.addr %s260, 4
        %s262 = scalar_lea.vmem %s6, %s261
        %v263 = vld [vmem:[%s257] sm:$0xff]
        %v264 = vld [vmem:[%s257 + $0x8] sm:$0xff]
        %v265 = vld [vmem:[%s257 + $0x10] sm:$0xff]
        %v266 = vld [vmem:[%s257 + $0x18] sm:$0xff]
        %v267 = vld [vmem:[%s1] sm:$0xf]
        %v268 = vld [vmem:[%s2] sm:$0xf]
        %270 = vset.pattern.permute.xlu0 0
        %271 = vperm.xlu0 %270, %v268
        %v272 = vpop.permute.xlu0 %271
        %vm274 = vcmask 130048
        %v276 = vsel %vm274, %v267, 0
        %278 = vmatprep.subr.mxu0 %v264
        %279 = vmatpush1.msra.mxu0 %v263
        %280 = vmatprep.subr.mxu0 %v266
        %281 = vmatpush1.msra.mxu0 %v265
        %282 = vmatprep.subr.mxu0 0.0
        %283 = vmatpush1.msra.mxu0 0.0
        %284 = vmatprep.subr.mxu0 0.0
        %285 = vmatpush1.msra.mxu0 0.0
        %286 = vmatprep.subr.mxu0 0.0
        %287 = vmatpush1.msra.mxu0 0.0
        %288 = vmatprep.subr.mxu0 0.0
        %289 = vmatpush1.msra.mxu0 0.0
        %290 = vmatprep.subr.mxu0 0.0
        %291 = vmatpush1.msra.mxu0 0.0
        %292 = vmatprep.subr.mxu0 0.0
        %293 = vmatpush1.msra.mxu0 0.0
        %294 = vmatprep.subr.mxu0 0.0
        %295 = vmatpush1.msra.mxu0 0.0
        %296 = vmatprep.subr.mxu0 0.0
        %297 = vmatpush1.msra.mxu0 0.0
        %298 = vmatprep.subr.mxu0 0.0
        %299 = vmatpush1.msra.mxu0 0.0
        %300 = vmatprep.subr.mxu0 0.0
        %301 = vmatpush1.msra.mxu0 0.0
        %302 = vmatprep.subr.mxu0 0.0
        %303 = vmatpush1.msra.mxu0 0.0
        %304 = vmatprep.subr.mxu0 0.0
        %305 = vmatpush1.msra.mxu0 0.0
        %306 = vmatprep.subr.mxu0 0.0
        %307 = vmatpush1.msra.mxu0 0.0
        %308 = vmatprep.subr.mxu0 0.0
        %309 = vmatpush1.msra.mxu0 0.0
        %310 = vmatprep.subr.mxu0 0.0
        %311 = vmatpush1.msra.mxu0 0.0
        %312 = vmatprep.subr.mxu0 0.0
        %313 = vmatpush1.msra.mxu0 0.0
        %314 = vmatprep.subr.mxu0 0.0
        %315 = vmatpush1.msra.mxu0 0.0
        %316 = vmatprep.subr.mxu0 0.0
        %317 = vmatpush1.msra.mxu0 0.0
        %318 = vmatprep.subr.mxu0 0.0
        %319 = vmatpush1.msra.mxu0 0.0
        %320 = vmatprep.subr.mxu0 0.0
        %321 = vmatpush1.msra.mxu0 0.0
        %322 = vmatprep.subr.mxu0 0.0
        %323 = vmatpush1.msra.mxu0 0.0
        %324 = vmatprep.subr.mxu0 0.0
        %325 = vmatpush1.msra.mxu0 0.0
        %326 = vmatprep.subr.mxu0 0.0
        %327 = vmatpush1.msra.mxu0 0.0
        %328 = vmatprep.subr.mxu0 0.0
        %329 = vmatpush1.msra.mxu0 0.0
        %330 = vmatprep.subr.mxu0 0.0
        %331 = vmatpush1.msra.mxu0 0.0
        %332 = vmatprep.subr.mxu0 0.0
        %333 = vmatpush1.msra.mxu0 0.0
        %334 = vmatprep.subr.mxu0 0.0
        %335 = vmatpush1.msra.mxu0 0.0
        %336 = vmatprep.subr.mxu0 0.0
        %337 = vmatpush1.msra.mxu0 0.0
        %338 = vmatprep.subr.mxu0 0.0
        %339 = vmatpush1.msra.mxu0 0.0
        %340 = vmatprep.subr.mxu0 0.0
        %341 = vmatpush1.msra.mxu0 0.0
        %342 = vmatprep.mubr.f32.mxu0 0.0
        %343 = vmatmul.mubr.f32.gmra.mrb[0].mxu0 %v276
        %v344 = vpop.f32.mrb[0].mxu0
        %v345 = vadd.f32 %v272, %v344
        %v346 = vpop.f32.mrb[0].mxu0
        %v347 = vadd.f32 %v272, %v346
        %348 = vdwg.mxu0
        %v351 = vcombine.low %v345, %v347
        %353 = vst [vmem:[%s262] sm:$0xff] %v351
        %v354 = vld [vmem:[%s3] sm:$0xff]
        %v355 = vld [vmem:[%s3 + $0x8] sm:$0xff]
        %v356 = vld [vmem:[%s3 + $0x10] sm:$0xff]
        %v357 = vld [vmem:[%s3 + $0x18] sm:$0xff]
        %v358 = vld [vmem:[%s3 + $0x20] sm:$0xff]
        %v359 = vld [vmem:[%s3 + $0x28] sm:$0xff]
        %v360 = vld [vmem:[%s3 + $0x30] sm:$0xff]
        %v361 = vld [vmem:[%s3 + $0x38] sm:$0xff]
        %v362 = vld [vmem:[%s3 + $0x40] sm:$0xff]
        %v363 = vld [vmem:[%s3 + $0x48] sm:$0xff]
        %v364 = vld [vmem:[%s3 + $0x50] sm:$0xff]
        %v365 = vld [vmem:[%s3 + $0x58] sm:$0xff]
        %v366 = vld [vmem:[%s3 + $0x60] sm:$0xff]
        %v367 = vld [vmem:[%s3 + $0x68] sm:$0xff]
        %v368 = vld [vmem:[%s3 + $0x70] sm:$0xff]
        %v369 = vld [vmem:[%s3 + $0x78] sm:$0xff]
        %v370 = vld [vmem:[%s4] sm:$0xff]
        %v371 = vld [vmem:[%s4 + $0x8] sm:$0xff]
        %vm372 = vcmask 122880
        %373 = vst.msk [vmem:[#allocation3] sm:$0x1] %vm372, %v345
        %374 = vrot.lane.b32.xlu0 %v345, 112
        %v375 = vpop.permute.xlu0 %374
        %377 = vst.msk [vmem:[#allocation3 + $0x1] sm:$0x1] %vm372, %v375
        %378 = vrot.lane.b32.xlu0 %v345, 96
        %v379 = vpop.permute.xlu0 %378
        %381 = vst.msk [vmem:[#allocation3 + $0x2] sm:$0x1] %vm372, %v379
        %382 = vrot.lane.b32.xlu0 %v345, 80
        %v383 = vpop.permute.xlu0 %382
        %385 = vst.msk [vmem:[#allocation3 + $0x3] sm:$0x1] %vm372, %v383
        %386 = vrot.lane.b32.xlu0 %v345, 64
        %v387 = vpop.permute.xlu0 %386
        %389 = vst.msk [vmem:[#allocation3 + $0x4] sm:$0x1] %vm372, %v387
        %390 = vrot.lane.b32.xlu0 %v345, 48
        %v391 = vpop.permute.xlu0 %390
        %393 = vst.msk [vmem:[#allocation3 + $0x5] sm:$0x1] %vm372, %v391
        %394 = vrot.lane.b32.xlu0 %v345, 32
        %v395 = vpop.permute.xlu0 %394
        %397 = vst.msk [vmem:[#allocation3 + $0x6] sm:$0x1] %vm372, %v395
        %398 = vrot.lane.b32.xlu0 %v345, 16
        %v399 = vpop.permute.xlu0 %398
        %401 = vst.msk [vmem:[#allocation3 + $0x7] sm:$0x1] %vm372, %v399
        %402 = vst.msk [vmem:[#allocation3 + $0x8] sm:$0x1] %vm372, %v347
        %403 = vrot.lane.b32.xlu0 %v347, 112
        %v404 = vpop.permute.xlu0 %403
        %406 = vst.msk [vmem:[#allocation3 + $0x9] sm:$0x1] %vm372, %v404
        %407 = vrot.lane.b32.xlu0 %v347, 96
        %v408 = vpop.permute.xlu0 %407
        %410 = vst.msk [vmem:[#allocation3 + $0xa] sm:$0x1] %vm372, %v408
        %411 = vrot.lane.b32.xlu0 %v347, 80
        %v412 = vpop.permute.xlu0 %411
        %414 = vst.msk [vmem:[#allocation3 + $0xb] sm:$0x1] %vm372, %v412
        %415 = vrot.lane.b32.xlu0 %v347, 64
        %v416 = vpop.permute.xlu0 %415
        %418 = vst.msk [vmem:[#allocation3 + $0xc] sm:$0x1] %vm372, %v416
        %419 = vrot.lane.b32.xlu0 %v347, 48
        %v420 = vpop.permute.xlu0 %419
        %422 = vst.msk [vmem:[#allocation3 + $0xd] sm:$0x1] %vm372, %v420
        %423 = vrot.lane.b32.xlu0 %v347, 32
        %v424 = vpop.permute.xlu0 %423
        %426 = vst.msk [vmem:[#allocation3 + $0xe] sm:$0x1] %vm372, %v424
        %427 = vrot.lane.b32.xlu0 %v347, 16
        %v428 = vpop.permute.xlu0 %427
        %430 = vst.msk [vmem:[#allocation3 + $0xf] sm:$0x1] %vm372, %v428
        %v431 = vld [vmem:[#allocation3] sm:$0xff]
        %v432 = vld [vmem:[#allocation3 + $0x8] sm:$0xff]
        %v434 = vsel %vm274, %v354, 0
        %v437 = vsel %vm274, %v355, 0
        %v440 = vsel %vm274, %v356, 0
        %v443 = vsel %vm274, %v357, 0
        %v446 = vsel %vm274, %v358, 0
        %v449 = vsel %vm274, %v359, 0
        %v452 = vsel %vm274, %v360, 0
        %v455 = vsel %vm274, %v361, 0
        %v458 = vsel %vm274, %v362, 0
        %v461 = vsel %vm274, %v363, 0
        %v464 = vsel %vm274, %v364, 0
        %v467 = vsel %vm274, %v365, 0
        %v470 = vsel %vm274, %v366, 0
        %v473 = vsel %vm274, %v367, 0
        %v476 = vsel %vm274, %v368, 0
        %v479 = vsel %vm274, %v369, 0
        %481 = vmatprep.subr.mxu0 0.0
        %482 = vmatpush1.msra.mxu0 %v431
        %483 = vmatprep.subr.mxu0 0.0
        %484 = vmatpush1.msra.mxu0 %v432
        %485 = vmatprep.subr.mxu0 0.0
        %486 = vmatpush1.msra.mxu0 0.0
        %487 = vmatprep.subr.mxu0 0.0
        %488 = vmatpush1.msra.mxu0 0.0
        %489 = vmatprep.subr.mxu0 0.0
        %490 = vmatpush1.msra.mxu0 0.0
        %491 = vmatprep.subr.mxu0 0.0
        %492 = vmatpush1.msra.mxu0 0.0
        %493 = vmatprep.subr.mxu0 0.0
        %494 = vmatpush1.msra.mxu0 0.0
        %495 = vmatprep.subr.mxu0 0.0
        %496 = vmatpush1.msra.mxu0 0.0
        %497 = vmatprep.subr.mxu0 0.0
        %498 = vmatpush1.msra.mxu0 0.0
        %499 = vmatprep.subr.mxu0 0.0
        %500 = vmatpush1.msra.mxu0 0.0
        %501 = vmatprep.subr.mxu0 0.0
        %502 = vmatpush1.msra.mxu0 0.0
        %503 = vmatprep.subr.mxu0 0.0
        %504 = vmatpush1.msra.mxu0 0.0
        %505 = vmatprep.subr.mxu0 0.0
        %506 = vmatpush1.msra.mxu0 0.0
        %507 = vmatprep.subr.mxu0 0.0
        %508 = vmatpush1.msra.mxu0 0.0
        %509 = vmatprep.subr.mxu0 0.0
        %510 = vmatpush1.msra.mxu0 0.0
        %511 = vmatprep.subr.mxu0 0.0
        %512 = vmatpush1.msra.mxu0 0.0
        %513 = vmatprep.subr.mxu0 0.0
        %514 = vmatpush1.msra.mxu0 0.0
        %515 = vmatprep.subr.mxu0 0.0
        %516 = vmatpush1.msra.mxu0 0.0
        %517 = vmatprep.subr.mxu0 0.0
        %518 = vmatpush1.msra.mxu0 0.0
        %519 = vmatprep.subr.mxu0 0.0
        %520 = vmatpush1.msra.mxu0 0.0
        %521 = vmatprep.subr.mxu0 0.0
        %522 = vmatpush1.msra.mxu0 0.0
        %523 = vmatprep.subr.mxu0 0.0
        %524 = vmatpush1.msra.mxu0 0.0
        %525 = vmatprep.subr.mxu0 0.0
        %526 = vmatpush1.msra.mxu0 0.0
        %527 = vmatprep.subr.mxu0 0.0
        %528 = vmatpush1.msra.mxu0 0.0
        %529 = vmatprep.subr.mxu0 0.0
        %530 = vmatpush1.msra.mxu0 0.0
        %531 = vmatprep.subr.mxu0 0.0
        %532 = vmatpush1.msra.mxu0 0.0
        %533 = vmatprep.subr.mxu0 0.0
        %534 = vmatpush1.msra.mxu0 0.0
        %535 = vmatprep.subr.mxu0 0.0
        %536 = vmatpush1.msra.mxu0 0.0
        %537 = vmatprep.subr.mxu0 0.0
        %538 = vmatpush1.msra.mxu0 0.0
        %539 = vmatprep.subr.mxu0 0.0
        %540 = vmatpush1.msra.mxu0 0.0
        %541 = vmatprep.subr.mxu0 0.0
        %542 = vmatpush1.msra.mxu0 0.0
        %543 = vmatprep.subr.mxu0 0.0
        %544 = vmatpush1.msra.mxu0 0.0
        %545 = vmatprep.mubr.f32.mxu0 0.0
        %546 = vmatmul.mubr.f32.gmra.mrb[0].mxu0 %v434
        %v547 = vpop.f32.mrb[0].mxu0
        %v548 = vadd.f32 0.0, %v547
        %v549 = vpop.f32.mrb[0].mxu0
        %550 = vmatprep.mubr.f32.mxu0 0.0
        %551 = vmatmul.mubr.f32.gmra.mrb[0].mxu0 %v437
        %v552 = vpop.f32.mrb[0].mxu0
        %v553 = vadd.f32 0.0, %v552
        %v554 = vpop.f32.mrb[0].mxu0
        %555 = vmatprep.mubr.f32.mxu0 0.0
        %556 = vmatmul.mubr.f32.gmra.mrb[0].mxu0 %v440
        %v557 = vpop.f32.mrb[0].mxu0
        %v558 = vadd.f32 0.0, %v557
        %v559 = vpop.f32.mrb[0].mxu0
        %560 = vmatprep.mubr.f32.mxu0 0.0
        %561 = vmatmul.mubr.f32.gmra.mrb[0].mxu0 %v443
        %v562 = vpop.f32.mrb[0].mxu0
        %v563 = vadd.f32 0.0, %v562
        %v564 = vpop.f32.mrb[0].mxu0
        %565 = vmatprep.mubr.f32.mxu0 0.0
        %566 = vmatmul.mubr.f32.gmra.mrb[0].mxu0 %v446
        %v567 = vpop.f32.mrb[0].mxu0
        %v568 = vadd.f32 0.0, %v567
        %v569 = vpop.f32.mrb[0].mxu0
        %570 = vmatprep.mubr.f32.mxu0 0.0
        %571 = vmatmul.mubr.f32.gmra.mrb[0].mxu0 %v449
        %v572 = vpop.f32.mrb[0].mxu0
        %v573 = vadd.f32 0.0, %v572
        %v574 = vpop.f32.mrb[0].mxu0
        %575 = vmatprep.mubr.f32.mxu0 0.0
        %576 = vmatmul.mubr.f32.gmra.mrb[0].mxu0 %v452
        %v577 = vpop.f32.mrb[0].mxu0
        %v578 = vadd.f32 0.0, %v577
        %v579 = vpop.f32.mrb[0].mxu0
        %580 = vmatprep.mubr.f32.mxu0 0.0
        %581 = vmatmul.mubr.f32.gmra.mrb[0].mxu0 %v455
        %v582 = vpop.f32.mrb[0].mxu0
        %v583 = vadd.f32 0.0, %v582
        %v584 = vpop.f32.mrb[0].mxu0
        %585 = vmatprep.mubr.f32.mxu0 0.0
        %586 = vmatmul.mubr.f32.gmra.mrb[0].mxu0 %v458
        %v587 = vpop.f32.mrb[0].mxu0
        %v588 = vadd.f32 0.0, %v587
        %v589 = vpop.f32.mrb[0].mxu0
        %590 = vmatprep.mubr.f32.mxu0 0.0
        %591 = vmatmul.mubr.f32.gmra.mrb[0].mxu0 %v461
        %v592 = vpop.f32.mrb[0].mxu0
        %v593 = vadd.f32 0.0, %v592
        %v594 = vpop.f32.mrb[0].mxu0
        %595 = vmatprep.mubr.f32.mxu0 0.0
        %596 = vmatmul.mubr.f32.gmra.mrb[0].mxu0 %v464
        %v597 = vpop.f32.mrb[0].mxu0
        %v598 = vadd.f32 0.0, %v597
        %v599 = vpop.f32.mrb[0].mxu0
        %600 = vmatprep.mubr.f32.mxu0 0.0
        %601 = vmatmul.mubr.f32.gmra.mrb[0].mxu0 %v467
        %v602 = vpop.f32.mrb[0].mxu0
        %v603 = vadd.f32 0.0, %v602
        %v604 = vpop.f32.mrb[0].mxu0
        %605 = vmatprep.mubr.f32.mxu0 0.0
        %606 = vmatmul.mubr.f32.gmra.mrb[0].mxu0 %v470
        %v607 = vpop.f32.mrb[0].mxu0
        %v608 = vadd.f32 0.0, %v607
        %v609 = vpop.f32.mrb[0].mxu0
        %610 = vmatprep.mubr.f32.mxu0 0.0
        %611 = vmatmul.mubr.f32.gmra.mrb[0].mxu0 %v473
        %v612 = vpop.f32.mrb[0].mxu0
        %v613 = vadd.f32 0.0, %v612
        %v614 = vpop.f32.mrb[0].mxu0
        %615 = vmatprep.mubr.f32.mxu0 0.0
        %616 = vmatmul.mubr.f32.gmra.mrb[0].mxu0 %v476
        %v617 = vpop.f32.mrb[0].mxu0
        %v618 = vadd.f32 0.0, %v617
        %v619 = vpop.f32.mrb[0].mxu0
        %620 = vmatprep.mubr.f32.mxu0 0.0
        %621 = vmatmul.mubr.f32.gmra.mrb[0].mxu0 %v479
        %v622 = vpop.f32.mrb[0].mxu0
        %v623 = vadd.f32 0.0, %v622
        %v624 = vpop.f32.mrb[0].mxu0
        %625 = vdwg.mxu0
        %v627 = vsel %vm274, %v548, 0
        %v630 = vsel %vm274, %v553, 0
        %v633 = vsel %vm274, %v558, 0
        %v636 = vsel %vm274, %v563, 0
        %v639 = vsel %vm274, %v568, 0
        %v642 = vsel %vm274, %v573, 0
        %v645 = vsel %vm274, %v578, 0
        %v648 = vsel %vm274, %v583, 0
        %v651 = vsel %vm274, %v588, 0
        %v654 = vsel %vm274, %v593, 0
        %v657 = vsel %vm274, %v598, 0
        %v660 = vsel %vm274, %v603, 0
        %v663 = vsel %vm274, %v608, 0
        %v666 = vsel %vm274, %v613, 0
        %v669 = vsel %vm274, %v618, 0
        %v672 = vsel %vm274, %v623, 0
        %674 = vmatprep.subr.mxu0 0.0
        %675 = vmatpush1.msra.mxu0 %v370
        %676 = vmatprep.subr.mxu0 0.0
        %677 = vmatpush1.msra.mxu0 %v371
        %678 = vmatprep.subr.mxu0 0.0
        %679 = vmatpush1.msra.mxu0 0.0
        %680 = vmatprep.subr.mxu0 0.0
        %681 = vmatpush1.msra.mxu0 0.0
        %682 = vmatprep.subr.mxu0 0.0
        %683 = vmatpush1.msra.mxu0 0.0
        %684 = vmatprep.subr.mxu0 0.0
        %685 = vmatpush1.msra.mxu0 0.0
        %686 = vmatprep.subr.mxu0 0.0
        %687 = vmatpush1.msra.mxu0 0.0
        %688 = vmatprep.subr.mxu0 0.0
        %689 = vmatpush1.msra.mxu0 0.0
        %690 = vmatprep.subr.mxu0 0.0
        %691 = vmatpush1.msra.mxu0 0.0
        %692 = vmatprep.subr.mxu0 0.0
        %693 = vmatpush1.msra.mxu0 0.0
        %694 = vmatprep.subr.mxu0 0.0
        %695 = vmatpush1.msra.mxu0 0.0
        %696 = vmatprep.subr.mxu0 0.0
        %697 = vmatpush1.msra.mxu0 0.0
        %698 = vmatprep.subr.mxu0 0.0
        %699 = vmatpush1.msra.mxu0 0.0
        %700 = vmatprep.subr.mxu0 0.0
        %701 = vmatpush1.msra.mxu0 0.0
        %702 = vmatprep.subr.mxu0 0.0
        %703 = vmatpush1.msra.mxu0 0.0
        %704 = vmatprep.subr.mxu0 0.0
        %705 = vmatpush1.msra.mxu0 0.0
        %706 = vmatprep.subr.mxu0 0.0
        %707 = vmatpush1.msra.mxu0 0.0
        %708 = vmatprep.subr.mxu0 0.0
        %709 = vmatpush1.msra.mxu0 0.0
        %710 = vmatprep.subr.mxu0 0.0
        %711 = vmatpush1.msra.mxu0 0.0
        %712 = vmatprep.subr.mxu0 0.0
        %713 = vmatpush1.msra.mxu0 0.0
        %714 = vmatprep.subr.mxu0 0.0
        %715 = vmatpush1.msra.mxu0 0.0
        %716 = vmatprep.subr.mxu0 0.0
        %717 = vmatpush1.msra.mxu0 0.0
        %718 = vmatprep.subr.mxu0 0.0
        %719 = vmatpush1.msra.mxu0 0.0
        %720 = vmatprep.subr.mxu0 0.0
        %721 = vmatpush1.msra.mxu0 0.0
        %722 = vmatprep.subr.mxu0 0.0
        %723 = vmatpush1.msra.mxu0 0.0
        %724 = vmatprep.subr.mxu0 0.0
        %725 = vmatpush1.msra.mxu0 0.0
        %726 = vmatprep.subr.mxu0 0.0
        %727 = vmatpush1.msra.mxu0 0.0
        %728 = vmatprep.subr.mxu0 0.0
        %729 = vmatpush1.msra.mxu0 0.0
        %730 = vmatprep.subr.mxu0 0.0
        %731 = vmatpush1.msra.mxu0 0.0
        %732 = vmatprep.subr.mxu0 0.0
        %733 = vmatpush1.msra.mxu0 0.0
        %734 = vmatprep.subr.mxu0 0.0
        %735 = vmatpush1.msra.mxu0 0.0
        %736 = vmatprep.subr.mxu0 0.0
        %737 = vmatpush1.msra.mxu0 0.0
        %738 = vmatprep.mubr.f32.mxu0 0.0
        %739 = vmatmul.mubr.f32.gmra.mrb[0].mxu0 %v627
        %v740 = vpop.f32.mrb[0].mxu0
        %v741 = vadd.f32 0.0, %v740
        %v742 = vpop.f32.mrb[0].mxu0
        %743 = vmatprep.mubr.f32.mxu0 0.0
        %744 = vmatmul.mubr.f32.gmra.mrb[0].mxu0 %v630
        %v745 = vpop.f32.mrb[0].mxu0
        %v746 = vadd.f32 0.0, %v745
        %v747 = vpop.f32.mrb[0].mxu0
        %748 = vmatprep.mubr.f32.mxu0 0.0
        %749 = vmatmul.mubr.f32.gmra.mrb[0].mxu0 %v633
        %v750 = vpop.f32.mrb[0].mxu0
        %v751 = vadd.f32 0.0, %v750
        %v752 = vpop.f32.mrb[0].mxu0
        %753 = vmatprep.mubr.f32.mxu0 0.0
        %754 = vmatmul.mubr.f32.gmra.mrb[0].mxu0 %v636
        %v755 = vpop.f32.mrb[0].mxu0
        %v756 = vadd.f32 0.0, %v755
        %v757 = vpop.f32.mrb[0].mxu0
        %758 = vmatprep.mubr.f32.mxu0 0.0
        %759 = vmatmul.mubr.f32.gmra.mrb[0].mxu0 %v639
        %v760 = vpop.f32.mrb[0].mxu0
        %v761 = vadd.f32 0.0, %v760
        %v762 = vpop.f32.mrb[0].mxu0
        %763 = vmatprep.mubr.f32.mxu0 0.0
        %764 = vmatmul.mubr.f32.gmra.mrb[0].mxu0 %v642
        %v765 = vpop.f32.mrb[0].mxu0
        %v766 = vadd.f32 0.0, %v765
        %v767 = vpop.f32.mrb[0].mxu0
        %768 = vmatprep.mubr.f32.mxu0 0.0
        %769 = vmatmul.mubr.f32.gmra.mrb[0].mxu0 %v645
        %v770 = vpop.f32.mrb[0].mxu0
        %v771 = vadd.f32 0.0, %v770
        %v772 = vpop.f32.mrb[0].mxu0
        %773 = vmatprep.mubr.f32.mxu0 0.0
        %774 = vmatmul.mubr.f32.gmra.mrb[0].mxu0 %v648
        %v775 = vpop.f32.mrb[0].mxu0
        %v776 = vadd.f32 0.0, %v775
        %v777 = vpop.f32.mrb[0].mxu0
        %778 = vmatprep.mubr.f32.mxu0 0.0
        %779 = vmatmul.mubr.f32.gmra.mrb[0].mxu0 %v651
        %v780 = vpop.f32.mrb[0].mxu0
        %v781 = vadd.f32 0.0, %v780
        %v782 = vpop.f32.mrb[0].mxu0
        %783 = vmatprep.mubr.f32.mxu0 0.0
        %784 = vmatmul.mubr.f32.gmra.mrb[0].mxu0 %v654
        %v785 = vpop.f32.mrb[0].mxu0
        %v786 = vadd.f32 0.0, %v785
        %v787 = vpop.f32.mrb[0].mxu0
        %788 = vmatprep.mubr.f32.mxu0 0.0
        %789 = vmatmul.mubr.f32.gmra.mrb[0].mxu0 %v657
        %v790 = vpop.f32.mrb[0].mxu0
        %v791 = vadd.f32 0.0, %v790
        %v792 = vpop.f32.mrb[0].mxu0
        %793 = vmatprep.mubr.f32.mxu0 0.0
        %794 = vmatmul.mubr.f32.gmra.mrb[0].mxu0 %v660
        %v795 = vpop.f32.mrb[0].mxu0
        %v796 = vadd.f32 0.0, %v795
        %v797 = vpop.f32.mrb[0].mxu0
        %798 = vmatprep.mubr.f32.mxu0 0.0
        %799 = vmatmul.mubr.f32.gmra.mrb[0].mxu0 %v663
        %v800 = vpop.f32.mrb[0].mxu0
        %v801 = vadd.f32 0.0, %v800
        %v802 = vpop.f32.mrb[0].mxu0
        %803 = vmatprep.mubr.f32.mxu0 0.0
        %804 = vmatmul.mubr.f32.gmra.mrb[0].mxu0 %v666
        %v805 = vpop.f32.mrb[0].mxu0
        %v806 = vadd.f32 0.0, %v805
        %v807 = vpop.f32.mrb[0].mxu0
        %808 = vmatprep.mubr.f32.mxu0 0.0
        %809 = vmatmul.mubr.f32.gmra.mrb[0].mxu0 %v669
        %v810 = vpop.f32.mrb[0].mxu0
        %v811 = vadd.f32 0.0, %v810
        %v812 = vpop.f32.mrb[0].mxu0
        %813 = vmatprep.mubr.f32.mxu0 0.0
        %814 = vmatmul.mubr.f32.gmra.mrb[0].mxu0 %v672
        %v815 = vpop.f32.mrb[0].mxu0
        %v816 = vadd.f32 0.0, %v815
        %v817 = vpop.f32.mrb[0].mxu0
        %818 = vdwg.mxu0
        %819 = vst [vmem:[#allocation2] sm:$0xff] %v741
        %820 = vst [vmem:[#allocation2 + $0x8] sm:$0xff] %v746
        %821 = vst [vmem:[#allocation2 + $0x10] sm:$0xff] %v751
        %822 = vst [vmem:[#allocation2 + $0x18] sm:$0xff] %v756
        %823 = vst [vmem:[#allocation2 + $0x20] sm:$0xff] %v761
        %824 = vst [vmem:[#allocation2 + $0x28] sm:$0xff] %v766
        %825 = vst [vmem:[#allocation2 + $0x30] sm:$0xff] %v771
        %826 = vst [vmem:[#allocation2 + $0x38] sm:$0xff] %v776
        %827 = vst [vmem:[#allocation2 + $0x40] sm:$0xff] %v781
        %828 = vst [vmem:[#allocation2 + $0x48] sm:$0xff] %v786
        %829 = vst [vmem:[#allocation2 + $0x50] sm:$0xff] %v791
        %830 = vst [vmem:[#allocation2 + $0x58] sm:$0xff] %v796
        %831 = vst [vmem:[#allocation2 + $0x60] sm:$0xff] %v801
        %832 = vst [vmem:[#allocation2 + $0x68] sm:$0xff] %v806
        %833 = vst [vmem:[#allocation2 + $0x70] sm:$0xff] %v811
        %834 = vst [vmem:[#allocation2 + $0x78] sm:$0xff] %v816
        %vm835 = vcmask 123905
        %836 = vst.msk [vmem:[#allocation3 - $0x1] sm:$0x2] %vm835, %v345
        %837 = vst.msk [vmem:[#allocation3] sm:$0x2] %vm835, %v375
        %838 = vst.msk [vmem:[#allocation3 + $0x1] sm:$0x2] %vm835, %v379
        %839 = vst.msk [vmem:[#allocation3 + $0x2] sm:$0x2] %vm835, %v383
        %840 = vst.msk [vmem:[#allocation3 + $0x3] sm:$0x2] %vm835, %v387
        %841 = vst.msk [vmem:[#allocation3 + $0x4] sm:$0x2] %vm835, %v391
        %842 = vst.msk [vmem:[#allocation3 + $0x5] sm:$0x2] %vm835, %v395
        %843 = vst.msk [vmem:[#allocation3 + $0x6] sm:$0x2] %vm835, %v399
        %844 = vst.msk [vmem:[#allocation3 + $0x7] sm:$0x2] %vm835, %v347
        %845 = vst.msk [vmem:[#allocation3 + $0x8] sm:$0x2] %vm835, %v404
        %846 = vst.msk [vmem:[#allocation3 + $0x9] sm:$0x2] %vm835, %v408
        %847 = vst.msk [vmem:[#allocation3 + $0xa] sm:$0x2] %vm835, %v412
        %848 = vst.msk [vmem:[#allocation3 + $0xb] sm:$0x2] %vm835, %v416
        %849 = vst.msk [vmem:[#allocation3 + $0xc] sm:$0x2] %vm835, %v420
        %850 = vst.msk [vmem:[#allocation3 + $0xd] sm:$0x2] %vm835, %v424
        %851 = vst.msk [vmem:[#allocation3 + $0xe] sm:$0x2] %vm835, %v428
        %v852 = vld [vmem:[#allocation3] sm:$0xff]
        %v853 = vld [vmem:[#allocation3 + $0x8] sm:$0xff]
        %854 = vmatprep.subr.mxu0 0.0
        %855 = vmatpush1.msra.mxu0 %v852
        %856 = vmatprep.subr.mxu0 0.0
        %857 = vmatpush1.msra.mxu0 %v853
        %858 = vmatprep.subr.mxu0 0.0
        %859 = vmatpush1.msra.mxu0 0.0
        %860 = vmatprep.subr.mxu0 0.0
        %861 = vmatpush1.msra.mxu0 0.0
        %862 = vmatprep.subr.mxu0 0.0
        %863 = vmatpush1.msra.mxu0 0.0
        %864 = vmatprep.subr.mxu0 0.0
        %865 = vmatpush1.msra.mxu0 0.0
        %866 = vmatprep.subr.mxu0 0.0
        %867 = vmatpush1.msra.mxu0 0.0
        %868 = vmatprep.subr.mxu0 0.0
        %869 = vmatpush1.msra.mxu0 0.0
        %870 = vmatprep.subr.mxu0 0.0
        %871 = vmatpush1.msra.mxu0 0.0
        %872 = vmatprep.subr.mxu0 0.0
        %873 = vmatpush1.msra.mxu0 0.0
        %874 = vmatprep.subr.mxu0 0.0
        %875 = vmatpush1.msra.mxu0 0.0
        %876 = vmatprep.subr.mxu0 0.0
        %877 = vmatpush1.msra.mxu0 0.0
        %878 = vmatprep.subr.mxu0 0.0
        %879 = vmatpush1.msra.mxu0 0.0
        %880 = vmatprep.subr.mxu0 0.0
        %881 = vmatpush1.msra.mxu0 0.0
        %882 = vmatprep.subr.mxu0 0.0
        %883 = vmatpush1.msra.mxu0 0.0
        %884 = vmatprep.subr.mxu0 0.0
        %885 = vmatpush1.msra.mxu0 0.0
        %886 = vmatprep.subr.mxu0 0.0
        %887 = vmatpush1.msra.mxu0 0.0
        %888 = vmatprep.subr.mxu0 0.0
        %889 = vmatpush1.msra.mxu0 0.0
        %890 = vmatprep.subr.mxu0 0.0
        %891 = vmatpush1.msra.mxu0 0.0
        %892 = vmatprep.subr.mxu0 0.0
        %893 = vmatpush1.msra.mxu0 0.0
        %894 = vmatprep.subr.mxu0 0.0
        %895 = vmatpush1.msra.mxu0 0.0
        %896 = vmatprep.subr.mxu0 0.0
        %897 = vmatpush1.msra.mxu0 0.0
        %898 = vmatprep.subr.mxu0 0.0
        %899 = vmatpush1.msra.mxu0 0.0
        %900 = vmatprep.subr.mxu0 0.0
        %901 = vmatpush1.msra.mxu0 0.0
        %902 = vmatprep.subr.mxu0 0.0
        %903 = vmatpush1.msra.mxu0 0.0
        %904 = vmatprep.subr.mxu0 0.0
        %905 = vmatpush1.msra.mxu0 0.0
        %906 = vmatprep.subr.mxu0 0.0
        %907 = vmatpush1.msra.mxu0 0.0
        %908 = vmatprep.subr.mxu0 0.0
        %909 = vmatpush1.msra.mxu0 0.0
        %910 = vmatprep.subr.mxu0 0.0
        %911 = vmatpush1.msra.mxu0 0.0
        %912 = vmatprep.subr.mxu0 0.0
        %913 = vmatpush1.msra.mxu0 0.0
        %914 = vmatprep.subr.mxu0 0.0
        %915 = vmatpush1.msra.mxu0 0.0
        %916 = vmatprep.subr.mxu0 0.0
        %917 = vmatpush1.msra.mxu0 0.0
        %918 = vmatprep.mubr.f32.mxu0 0.0
        %919 = vmatmul.mubr.f32.gmra.mrb[0].mxu0 %v434
        %v920 = vpop.f32.mrb[0].mxu0
        %v921 = vadd.f32 0.0, %v920
        %v922 = vpop.f32.mrb[0].mxu0
        %923 = vmatprep.mubr.f32.mxu0 0.0
        %924 = vmatmul.mubr.f32.gmra.mrb[0].mxu0 %v437
        %v925 = vpop.f32.mrb[0].mxu0
        %v926 = vadd.f32 0.0, %v925
        %v927 = vpop.f32.mrb[0].mxu0
        %928 = vmatprep.mubr.f32.mxu0 0.0
        %929 = vmatmul.mubr.f32.gmra.mrb[0].mxu0 %v440
        %v930 = vpop.f32.mrb[0].mxu0
        %v931 = vadd.f32 0.0, %v930
        %v932 = vpop.f32.mrb[0].mxu0
        %933 = vmatprep.mubr.f32.mxu0 0.0
        %934 = vmatmul.mubr.f32.gmra.mrb[0].mxu0 %v443
        %v935 = vpop.f32.mrb[0].mxu0
        %v936 = vadd.f32 0.0, %v935
        %v937 = vpop.f32.mrb[0].mxu0
        %938 = vmatprep.mubr.f32.mxu0 0.0
        %939 = vmatmul.mubr.f32.gmra.mrb[0].mxu0 %v446
        %v940 = vpop.f32.mrb[0].mxu0
        %v941 = vadd.f32 0.0, %v940
        %v942 = vpop.f32.mrb[0].mxu0
        %943 = vmatprep.mubr.f32.mxu0 0.0
        %944 = vmatmul.mubr.f32.gmra.mrb[0].mxu0 %v449
        %v945 = vpop.f32.mrb[0].mxu0
        %v946 = vadd.f32 0.0, %v945
        %v947 = vpop.f32.mrb[0].mxu0
        %948 = vmatprep.mubr.f32.mxu0 0.0
        %949 = vmatmul.mubr.f32.gmra.mrb[0].mxu0 %v452
        %v950 = vpop.f32.mrb[0].mxu0
        %v951 = vadd.f32 0.0, %v950
        %v952 = vpop.f32.mrb[0].mxu0
        %953 = vmatprep.mubr.f32.mxu0 0.0
        %954 = vmatmul.mubr.f32.gmra.mrb[0].mxu0 %v455
        %v955 = vpop.f32.mrb[0].mxu0
        %v956 = vadd.f32 0.0, %v955
        %v957 = vpop.f32.mrb[0].mxu0
        %958 = vmatprep.mubr.f32.mxu0 0.0
        %959 = vmatmul.mubr.f32.gmra.mrb[0].mxu0 %v458
        %v960 = vpop.f32.mrb[0].mxu0
        %v961 = vadd.f32 0.0, %v960
        %v962 = vpop.f32.mrb[0].mxu0
        %963 = vmatprep.mubr.f32.mxu0 0.0
        %964 = vmatmul.mubr.f32.gmra.mrb[0].mxu0 %v461
        %v965 = vpop.f32.mrb[0].mxu0
        %v966 = vadd.f32 0.0, %v965
        %v967 = vpop.f32.mrb[0].mxu0
        %968 = vmatprep.mubr.f32.mxu0 0.0
        %969 = vmatmul.mubr.f32.gmra.mrb[0].mxu0 %v464
        %v970 = vpop.f32.mrb[0].mxu0
        %v971 = vadd.f32 0.0, %v970
        %v972 = vpop.f32.mrb[0].mxu0
        %973 = vmatprep.mubr.f32.mxu0 0.0
        %974 = vmatmul.mubr.f32.gmra.mrb[0].mxu0 %v467
        %v975 = vpop.f32.mrb[0].mxu0
        %v976 = vadd.f32 0.0, %v975
        %v977 = vpop.f32.mrb[0].mxu0
        %978 = vmatprep.mubr.f32.mxu0 0.0
        %979 = vmatmul.mubr.f32.gmra.mrb[0].mxu0 %v470
        %v980 = vpop.f32.mrb[0].mxu0
        %v981 = vadd.f32 0.0, %v980
        %v982 = vpop.f32.mrb[0].mxu0
        %983 = vmatprep.mubr.f32.mxu0 0.0
        %984 = vmatmul.mubr.f32.gmra.mrb[0].mxu0 %v473
        %v985 = vpop.f32.mrb[0].mxu0
        %v986 = vadd.f32 0.0, %v985
        %v987 = vpop.f32.mrb[0].mxu0
        %988 = vmatprep.mubr.f32.mxu0 0.0
        %989 = vmatmul.mubr.f32.gmra.mrb[0].mxu0 %v476
        %v990 = vpop.f32.mrb[0].mxu0
        %v991 = vadd.f32 0.0, %v990
        %v992 = vpop.f32.mrb[0].mxu0
        %993 = vmatprep.mubr.f32.mxu0 0.0
        %994 = vmatmul.mubr.f32.gmra.mrb[0].mxu0 %v479
        %v995 = vpop.f32.mrb[0].mxu0
        %v996 = vadd.f32 0.0, %v995
        %v997 = vpop.f32.mrb[0].mxu0
        %998 = vdwg.mxu0
        %v1000 = vsel %vm274, %v921, 0
        %v1003 = vsel %vm274, %v926, 0
        %v1006 = vsel %vm274, %v931, 0
        %v1009 = vsel %vm274, %v936, 0
        %v1012 = vsel %vm274, %v941, 0
        %v1015 = vsel %vm274, %v946, 0
        %v1018 = vsel %vm274, %v951, 0
        %v1021 = vsel %vm274, %v956, 0
        %v1024 = vsel %vm274, %v961, 0
        %v1027 = vsel %vm274, %v966, 0
        %v1030 = vsel %vm274, %v971, 0
        %v1033 = vsel %vm274, %v976, 0
        %v1036 = vsel %vm274, %v981, 0
        %v1039 = vsel %vm274, %v986, 0
        %v1042 = vsel %vm274, %v991, 0
        %v1045 = vsel %vm274, %v996, 0
        %1047 = vmatprep.subr.mxu0 0.0
        %1048 = vmatpush1.msra.mxu0 %v370
        %1049 = vmatprep.subr.mxu0 0.0
        %1050 = vmatpush1.msra.mxu0 %v371
        %1051 = vmatprep.subr.mxu0 0.0
        %1052 = vmatpush1.msra.mxu0 0.0
        %1053 = vmatprep.subr.mxu0 0.0
        %1054 = vmatpush1.msra.mxu0 0.0
        %1055 = vmatprep.subr.mxu0 0.0
        %1056 = vmatpush1.msra.mxu0 0.0
        %1057 = vmatprep.subr.mxu0 0.0
        %1058 = vmatpush1.msra.mxu0 0.0
        %1059 = vmatprep.subr.mxu0 0.0
        %1060 = vmatpush1.msra.mxu0 0.0
        %1061 = vmatprep.subr.mxu0 0.0
        %1062 = vmatpush1.msra.mxu0 0.0
        %1063 = vmatprep.subr.mxu0 0.0
        %1064 = vmatpush1.msra.mxu0 0.0
        %1065 = vmatprep.subr.mxu0 0.0
        %1066 = vmatpush1.msra.mxu0 0.0
        %1067 = vmatprep.subr.mxu0 0.0
        %1068 = vmatpush1.msra.mxu0 0.0
        %1069 = vmatprep.subr.mxu0 0.0
        %1070 = vmatpush1.msra.mxu0 0.0
        %1071 = vmatprep.subr.mxu0 0.0
        %1072 = vmatpush1.msra.mxu0 0.0
        %1073 = vmatprep.subr.mxu0 0.0
        %1074 = vmatpush1.msra.mxu0 0.0
        %1075 = vmatprep.subr.mxu0 0.0
        %1076 = vmatpush1.msra.mxu0 0.0
        %1077 = vmatprep.subr.mxu0 0.0
        %1078 = vmatpush1.msra.mxu0 0.0
        %1079 = vmatprep.subr.mxu0 0.0
        %1080 = vmatpush1.msra.mxu0 0.0
        %1081 = vmatprep.subr.mxu0 0.0
        %1082 = vmatpush1.msra.mxu0 0.0
        %1083 = vmatprep.subr.mxu0 0.0
        %1084 = vmatpush1.msra.mxu0 0.0
        %1085 = vmatprep.subr.mxu0 0.0
        %1086 = vmatpush1.msra.mxu0 0.0
        %1087 = vmatprep.subr.mxu0 0.0
        %1088 = vmatpush1.msra.mxu0 0.0
        %1089 = vmatprep.subr.mxu0 0.0
        %1090 = vmatpush1.msra.mxu0 0.0
        %1091 = vmatprep.subr.mxu0 0.0
        %1092 = vmatpush1.msra.mxu0 0.0
        %1093 = vmatprep.subr.mxu0 0.0
        %1094 = vmatpush1.msra.mxu0 0.0
        %1095 = vmatprep.subr.mxu0 0.0
        %1096 = vmatpush1.msra.mxu0 0.0
        %1097 = vmatprep.subr.mxu0 0.0
        %1098 = vmatpush1.msra.mxu0 0.0
        %1099 = vmatprep.subr.mxu0 0.0
        %1100 = vmatpush1.msra.mxu0 0.0
        %1101 = vmatprep.subr.mxu0 0.0
        %1102 = vmatpush1.msra.mxu0 0.0
        %1103 = vmatprep.subr.mxu0 0.0
        %1104 = vmatpush1.msra.mxu0 0.0
        %1105 = vmatprep.subr.mxu0 0.0
        %1106 = vmatpush1.msra.mxu0 0.0
        %1107 = vmatprep.subr.mxu0 0.0
        %1108 = vmatpush1.msra.mxu0 0.0
        %1109 = vmatprep.subr.mxu0 0.0
        %1110 = vmatpush1.msra.mxu0 0.0
        %1111 = vmatprep.mubr.f32.mxu0 0.0
        %1112 = vmatmul.mubr.f32.gmra.mrb[0].mxu0 %v1000
        %v1113 = vpop.f32.mrb[0].mxu0
        %v1114 = vadd.f32 0.0, %v1113
        %v1115 = vpop.f32.mrb[0].mxu0
        %1116 = vmatprep.mubr.f32.mxu0 0.0
        %1117 = vmatmul.mubr.f32.gmra.mrb[0].mxu0 %v1003
        %v1118 = vpop.f32.mrb[0].mxu0
        %v1119 = vadd.f32 0.0, %v1118
        %v1120 = vpop.f32.mrb[0].mxu0
        %1121 = vmatprep.mubr.f32.mxu0 0.0
        %1122 = vmatmul.mubr.f32.gmra.mrb[0].mxu0 %v1006
        %v1123 = vpop.f32.mrb[0].mxu0
        %v1124 = vadd.f32 0.0, %v1123
        %v1125 = vpop.f32.mrb[0].mxu0
        %1126 = vmatprep.mubr.f32.mxu0 0.0
        %1127 = vmatmul.mubr.f32.gmra.mrb[0].mxu0 %v1009
        %v1128 = vpop.f32.mrb[0].mxu0
        %v1129 = vadd.f32 0.0, %v1128
        %v1130 = vpop.f32.mrb[0].mxu0
        %1131 = vmatprep.mubr.f32.mxu0 0.0
        %1132 = vmatmul.mubr.f32.gmra.mrb[0].mxu0 %v1012
        %v1133 = vpop.f32.mrb[0].mxu0
        %v1134 = vadd.f32 0.0, %v1133
        %v1135 = vpop.f32.mrb[0].mxu0
        %1136 = vmatprep.mubr.f32.mxu0 0.0
        %1137 = vmatmul.mubr.f32.gmra.mrb[0].mxu0 %v1015
        %v1138 = vpop.f32.mrb[0].mxu0
        %v1139 = vadd.f32 0.0, %v1138
        %v1140 = vpop.f32.mrb[0].mxu0
        %1141 = vmatprep.mubr.f32.mxu0 0.0
        %1142 = vmatmul.mubr.f32.gmra.mrb[0].mxu0 %v1018
        %v1143 = vpop.f32.mrb[0].mxu0
        %v1144 = vadd.f32 0.0, %v1143
        %v1145 = vpop.f32.mrb[0].mxu0
        %1146 = vmatprep.mubr.f32.mxu0 0.0
        %1147 = vmatmul.mubr.f32.gmra.mrb[0].mxu0 %v1021
        %v1148 = vpop.f32.mrb[0].mxu0
        %v1149 = vadd.f32 0.0, %v1148
        %v1150 = vpop.f32.mrb[0].mxu0
        %1151 = vmatprep.mubr.f32.mxu0 0.0
        %1152 = vmatmul.mubr.f32.gmra.mrb[0].mxu0 %v1024
        %v1153 = vpop.f32.mrb[0].mxu0
        %v1154 = vadd.f32 0.0, %v1153
        %v1155 = vpop.f32.mrb[0].mxu0
        %1156 = vmatprep.mubr.f32.mxu0 0.0
        %1157 = vmatmul.mubr.f32.gmra.mrb[0].mxu0 %v1027
        %v1158 = vpop.f32.mrb[0].mxu0
        %v1159 = vadd.f32 0.0, %v1158
        %v1160 = vpop.f32.mrb[0].mxu0
        %1161 = vmatprep.mubr.f32.mxu0 0.0
        %1162 = vmatmul.mubr.f32.gmra.mrb[0].mxu0 %v1030
        %v1163 = vpop.f32.mrb[0].mxu0
        %v1164 = vadd.f32 0.0, %v1163
        %v1165 = vpop.f32.mrb[0].mxu0
        %1166 = vmatprep.mubr.f32.mxu0 0.0
        %1167 = vmatmul.mubr.f32.gmra.mrb[0].mxu0 %v1033
        %v1168 = vpop.f32.mrb[0].mxu0
        %v1169 = vadd.f32 0.0, %v1168
        %v1170 = vpop.f32.mrb[0].mxu0
        %1171 = vmatprep.mubr.f32.mxu0 0.0
        %1172 = vmatmul.mubr.f32.gmra.mrb[0].mxu0 %v1036
        %v1173 = vpop.f32.mrb[0].mxu0
        %v1174 = vadd.f32 0.0, %v1173
        %v1175 = vpop.f32.mrb[0].mxu0
        %1176 = vmatprep.mubr.f32.mxu0 0.0
        %1177 = vmatmul.mubr.f32.gmra.mrb[0].mxu0 %v1039
        %v1178 = vpop.f32.mrb[0].mxu0
        %v1179 = vadd.f32 0.0, %v1178
        %v1180 = vpop.f32.mrb[0].mxu0
        %1181 = vmatprep.mubr.f32.mxu0 0.0
        %1182 = vmatmul.mubr.f32.gmra.mrb[0].mxu0 %v1042
        %v1183 = vpop.f32.mrb[0].mxu0
        %v1184 = vadd.f32 0.0, %v1183
        %v1185 = vpop.f32.mrb[0].mxu0
        %1186 = vmatprep.mubr.f32.mxu0 0.0
        %1187 = vmatmul.mubr.f32.gmra.mrb[0].mxu0 %v1045
        %v1188 = vpop.f32.mrb[0].mxu0
        %v1189 = vadd.f32 0.0, %v1188
        %v1190 = vpop.f32.mrb[0].mxu0
        %1191 = vdwg.mxu0
        %s1192 = scalar_lea.vmem [#allocation2], 128
        %1193 = vst [vmem:[%s1192] sm:$0xff] %v1114
        %1194 = vst [vmem:[%s1192 + $0x8] sm:$0xff] %v1119
        %1195 = vst [vmem:[%s1192 + $0x10] sm:$0xff] %v1124
        %1196 = vst [vmem:[%s1192 + $0x18] sm:$0xff] %v1129
        %1197 = vst [vmem:[%s1192 + $0x20] sm:$0xff] %v1134
        %1198 = vst [vmem:[%s1192 + $0x28] sm:$0xff] %v1139
        %1199 = vst [vmem:[%s1192 + $0x30] sm:$0xff] %v1144
        %1200 = vst [vmem:[%s1192 + $0x38] sm:$0xff] %v1149
        %1201 = vst [vmem:[%s1192 + $0x40] sm:$0xff] %v1154
        %1202 = vst [vmem:[%s1192 + $0x48] sm:$0xff] %v1159
        %1203 = vst [vmem:[%s1192 + $0x50] sm:$0xff] %v1164
        %1204 = vst [vmem:[%s1192 + $0x58] sm:$0xff] %v1169
        %1205 = vst [vmem:[%s1192 + $0x60] sm:$0xff] %v1174
        %1206 = vst [vmem:[%s1192 + $0x68] sm:$0xff] %v1179
        %1207 = vst [vmem:[%s1192 + $0x70] sm:$0xff] %v1184
        %1208 = vst [vmem:[%s1192 + $0x78] sm:$0xff] %v1189
        %vm1209 = vcmask 124930
        %1210 = vst.msk [vmem:[#allocation3 - $0x2] sm:$0x4] %vm1209, %v345
        %1211 = vst.msk [vmem:[#allocation3 - $0x1] sm:$0x4] %vm1209, %v375
        %1212 = vst.msk [vmem:[#allocation3] sm:$0x4] %vm1209, %v379
        %1213 = vst.msk [vmem:[#allocation3 + $0x1] sm:$0x4] %vm1209, %v383
        %1214 = vst.msk [vmem:[#allocation3 + $0x2] sm:$0x4] %vm1209, %v387
        %1215 = vst.msk [vmem:[#allocation3 + $0x3] sm:$0x4] %vm1209, %v391
        %1216 = vst.msk [vmem:[#allocation3 + $0x4] sm:$0x4] %vm1209, %v395
        %1217 = vst.msk [vmem:[#allocation3 + $0x5] sm:$0x4] %vm1209, %v399
        %1218 = vst.msk [vmem:[#allocation3 + $0x6] sm:$0x4] %vm1209, %v347
        %1219 = vst.msk [vmem:[#allocation3 + $0x7] sm:$0x4] %vm1209, %v404
        %1220 = vst.msk [vmem:[#allocation3 + $0x8] sm:$0x4] %vm1209, %v408
        %1221 = vst.msk [vmem:[#allocation3 + $0x9] sm:$0x4] %vm1209, %v412
        %1222 = vst.msk [vmem:[#allocation3 + $0xa] sm:$0x4] %vm1209, %v416
        %1223 = vst.msk [vmem:[#allocation3 + $0xb] sm:$0x4] %vm1209, %v420
        %1224 = vst.msk [vmem:[#allocation3 + $0xc] sm:$0x4] %vm1209, %v424
        %1225 = vst.msk [vmem:[#allocation3 + $0xd] sm:$0x4] %vm1209, %v428
        %v1226 = vld [vmem:[#allocation3] sm:$0xff]
        %v1227 = vld [vmem:[#allocation3 + $0x8] sm:$0xff]
        %1228 = vmatprep.subr.mxu0 0.0
        %1229 = vmatpush1.msra.mxu0 %v1226
        %1230 = vmatprep.subr.mxu0 0.0
        %1231 = vmatpush1.msra.mxu0 %v1227
        %1232 = vmatprep.subr.mxu0 0.0
        %1233 = vmatpush1.msra.mxu0 0.0
        %1234 = vmatprep.subr.mxu0 0.0
        %1235 = vmatpush1.msra.mxu0 0.0
        %1236 = vmatprep.subr.mxu0 0.0
        %1237 = vmatpush1.msra.mxu0 0.0
        %1238 = vmatprep.subr.mxu0 0.0
        %1239 = vmatpush1.msra.mxu0 0.0
        %1240 = vmatprep.subr.mxu0 0.0
        %1241 = vmatpush1.msra.mxu0 0.0
        %1242 = vmatprep.subr.mxu0 0.0
        %1243 = vmatpush1.msra.mxu0 0.0
        %1244 = vmatprep.subr.mxu0 0.0
        %1245 = vmatpush1.msra.mxu0 0.0
        %1246 = vmatprep.subr.mxu0 0.0
        %1247 = vmatpush1.msra.mxu0 0.0
        %1248 = vmatprep.subr.mxu0 0.0
        %1249 = vmatpush1.msra.mxu0 0.0
        %1250 = vmatprep.subr.mxu0 0.0
        %1251 = vmatpush1.msra.mxu0 0.0
        %1252 = vmatprep.subr.mxu0 0.0
        %1253 = vmatpush1.msra.mxu0 0.0
        %1254 = vmatprep.subr.mxu0 0.0
        %1255 = vmatpush1.msra.mxu0 0.0
        %1256 = vmatprep.subr.mxu0 0.0
        %1257 = vmatpush1.msra.mxu0 0.0
        %1258 = vmatprep.subr.mxu0 0.0
        %1259 = vmatpush1.msra.mxu0 0.0
        %1260 = vmatprep.subr.mxu0 0.0
        %1261 = vmatpush1.msra.mxu0 0.0
        %1262 = vmatprep.subr.mxu0 0.0
        %1263 = vmatpush1.msra.mxu0 0.0
        %1264 = vmatprep.subr.mxu0 0.0
        %1265 = vmatpush1.msra.mxu0 0.0
        %1266 = vmatprep.subr.mxu0 0.0
        %1267 = vmatpush1.msra.mxu0 0.0
        %1268 = vmatprep.subr.mxu0 0.0
        %1269 = vmatpush1.msra.mxu0 0.0
        %1270 = vmatprep.subr.mxu0 0.0
        %1271 = vmatpush1.msra.mxu0 0.0
        %1272 = vmatprep.subr.mxu0 0.0
        %1273 = vmatpush1.msra.mxu0 0.0
        %1274 = vmatprep.subr.mxu0 0.0
        %1275 = vmatpush1.msra.mxu0 0.0
        %1276 = vmatprep.subr.mxu0 0.0
        %1277 = vmatpush1.msra.mxu0 0.0
        %1278 = vmatprep.subr.mxu0 0.0
        %1279 = vmatpush1.msra.mxu0 0.0
        %1280 = vmatprep.subr.mxu0 0.0
        %1281 = vmatpush1.msra.mxu0 0.0
        %1282 = vmatprep.subr.mxu0 0.0
        %1283 = vmatpush1.msra.mxu0 0.0
        %1284 = vmatprep.subr.mxu0 0.0
        %1285 = vmatpush1.msra.mxu0 0.0
        %1286 = vmatprep.subr.mxu0 0.0
        %1287 = vmatpush1.msra.mxu0 0.0
        %1288 = vmatprep.subr.mxu0 0.0
        %1289 = vmatpush1.msra.mxu0 0.0
        %1290 = vmatprep.subr.mxu0 0.0
        %1291 = vmatpush1.msra.mxu0 0.0
        %1292 = vmatprep.mubr.f32.mxu0 0.0
        %1293 = vmatmul.mubr.f32.gmra.mrb[0].mxu0 %v434
        %v1294 = vpop.f32.mrb[0].mxu0
        %v1295 = vadd.f32 0.0, %v1294
        %v1296 = vpop.f32.mrb[0].mxu0
        %1297 = vmatprep.mubr.f32.mxu0 0.0
        %1298 = vmatmul.mubr.f32.gmra.mrb[0].mxu0 %v437
        %v1299 = vpop.f32.mrb[0].mxu0
        %v1300 = vadd.f32 0.0, %v1299
        %v1301 = vpop.f32.mrb[0].mxu0
        %1302 = vmatprep.mubr.f32.mxu0 0.0
        %1303 = vmatmul.mubr.f32.gmra.mrb[0].mxu0 %v440
        %v1304 = vpop.f32.mrb[0].mxu0
        %v1305 = vadd.f32 0.0, %v1304
        %v1306 = vpop.f32.mrb[0].mxu0
        %1307 = vmatprep.mubr.f32.mxu0 0.0
        %1308 = vmatmul.mubr.f32.gmra.mrb[0].mxu0 %v443
        %v1309 = vpop.f32.mrb[0].mxu0
        %v1310 = vadd.f32 0.0, %v1309
        %v1311 = vpop.f32.mrb[0].mxu0
        %1312 = vmatprep.mubr.f32.mxu0 0.0
        %1313 = vmatmul.mubr.f32.gmra.mrb[0].mxu0 %v446
        %v1314 = vpop.f32.mrb[0].mxu0
        %v1315 = vadd.f32 0.0, %v1314
        %v1316 = vpop.f32.mrb[0].mxu0
        %1317 = vmatprep.mubr.f32.mxu0 0.0
        %1318 = vmatmul.mubr.f32.gmra.mrb[0].mxu0 %v449
        %v1319 = vpop.f32.mrb[0].mxu0
        %v1320 = vadd.f32 0.0, %v1319
        %v1321 = vpop.f32.mrb[0].mxu0
        %1322 = vmatprep.mubr.f32.mxu0 0.0
        %1323 = vmatmul.mubr.f32.gmra.mrb[0].mxu0 %v452
        %v1324 = vpop.f32.mrb[0].mxu0
        %v1325 = vadd.f32 0.0, %v1324
        %v1326 = vpop.f32.mrb[0].mxu0
        %1327 = vmatprep.mubr.f32.mxu0 0.0
        %1328 = vmatmul.mubr.f32.gmra.mrb[0].mxu0 %v455
        %v1329 = vpop.f32.mrb[0].mxu0
        %v1330 = vadd.f32 0.0, %v1329
        %v1331 = vpop.f32.mrb[0].mxu0
        %1332 = vmatprep.mubr.f32.mxu0 0.0
        %1333 = vmatmul.mubr.f32.gmra.mrb[0].mxu0 %v458
        %v1334 = vpop.f32.mrb[0].mxu0
        %v1335 = vadd.f32 0.0, %v1334
        %v1336 = vpop.f32.mrb[0].mxu0
        %1337 = vmatprep.mubr.f32.mxu0 0.0
        %1338 = vmatmul.mubr.f32.gmra.mrb[0].mxu0 %v461
        %v1339 = vpop.f32.mrb[0].mxu0
        %v1340 = vadd.f32 0.0, %v1339
        %v1341 = vpop.f32.mrb[0].mxu0
        %1342 = vmatprep.mubr.f32.mxu0 0.0
        %1343 = vmatmul.mubr.f32.gmra.mrb[0].mxu0 %v464
        %v1344 = vpop.f32.mrb[0].mxu0
        %v1345 = vadd.f32 0.0, %v1344
        %v1346 = vpop.f32.mrb[0].mxu0
        %1347 = vmatprep.mubr.f32.mxu0 0.0
        %1348 = vmatmul.mubr.f32.gmra.mrb[0].mxu0 %v467
        %v1349 = vpop.f32.mrb[0].mxu0
        %v1350 = vadd.f32 0.0, %v1349
        %v1351 = vpop.f32.mrb[0].mxu0
        %1352 = vmatprep.mubr.f32.mxu0 0.0
        %1353 = vmatmul.mubr.f32.gmra.mrb[0].mxu0 %v470
        %v1354 = vpop.f32.mrb[0].mxu0
        %v1355 = vadd.f32 0.0, %v1354
        %v1356 = vpop.f32.mrb[0].mxu0
        %1357 = vmatprep.mubr.f32.mxu0 0.0
        %1358 = vmatmul.mubr.f32.gmra.mrb[0].mxu0 %v473
        %v1359 = vpop.f32.mrb[0].mxu0
        %v1360 = vadd.f32 0.0, %v1359
        %v1361 = vpop.f32.mrb[0].mxu0
        %1362 = vmatprep.mubr.f32.mxu0 0.0
        %1363 = vmatmul.mubr.f32.gmra.mrb[0].mxu0 %v476
        %v1364 = vpop.f32.mrb[0].mxu0
        %v1365 = vadd.f32 0.0, %v1364
        %v1366 = vpop.f32.mrb[0].mxu0
        %1367 = vmatprep.mubr.f32.mxu0 0.0
        %1368 = vmatmul.mubr.f32.gmra.mrb[0].mxu0 %v479
        %v1369 = vpop.f32.mrb[0].mxu0
        %v1370 = vadd.f32 0.0, %v1369
        %v1371 = vpop.f32.mrb[0].mxu0
        %1372 = vdwg.mxu0
        %v1374 = vsel %vm274, %v1295, 0
        %v1377 = vsel %vm274, %v1300, 0
        %v1380 = vsel %vm274, %v1305, 0
        %v1383 = vsel %vm274, %v1310, 0
        %v1386 = vsel %vm274, %v1315, 0
        %v1389 = vsel %vm274, %v1320, 0
        %v1392 = vsel %vm274, %v1325, 0
        %v1395 = vsel %vm274, %v1330, 0
        %v1398 = vsel %vm274, %v1335, 0
        %v1401 = vsel %vm274, %v1340, 0
        %v1404 = vsel %vm274, %v1345, 0
        %v1407 = vsel %vm274, %v1350, 0
        %v1410 = vsel %vm274, %v1355, 0
        %v1413 = vsel %vm274, %v1360, 0
        %v1416 = vsel %vm274, %v1365, 0
        %v1419 = vsel %vm274, %v1370, 0
        %1421 = vmatprep.subr.mxu0 0.0
        %1422 = vmatpush1.msra.mxu0 %v370
        %1423 = vmatprep.subr.mxu0 0.0
        %1424 = vmatpush1.msra.mxu0 %v371
        %1425 = vmatprep.subr.mxu0 0.0
        %1426 = vmatpush1.msra.mxu0 0.0
        %1427 = vmatprep.subr.mxu0 0.0
        %1428 = vmatpush1.msra.mxu0 0.0
        %1429 = vmatprep.subr.mxu0 0.0
        %1430 = vmatpush1.msra.mxu0 0.0
        %1431 = vmatprep.subr.mxu0 0.0
        %1432 = vmatpush1.msra.mxu0 0.0
        %1433 = vmatprep.subr.mxu0 0.0
        %1434 = vmatpush1.msra.mxu0 0.0
        %1435 = vmatprep.subr.mxu0 0.0
        %1436 = vmatpush1.msra.mxu0 0.0
        %1437 = vmatprep.subr.mxu0 0.0
        %1438 = vmatpush1.msra.mxu0 0.0
        %1439 = vmatprep.subr.mxu0 0.0
        %1440 = vmatpush1.msra.mxu0 0.0
        %1441 = vmatprep.subr.mxu0 0.0
        %1442 = vmatpush1.msra.mxu0 0.0
        %1443 = vmatprep.subr.mxu0 0.0
        %1444 = vmatpush1.msra.mxu0 0.0
        %1445 = vmatprep.subr.mxu0 0.0
        %1446 = vmatpush1.msra.mxu0 0.0
        %1447 = vmatprep.subr.mxu0 0.0
        %1448 = vmatpush1.msra.mxu0 0.0
        %1449 = vmatprep.subr.mxu0 0.0
        %1450 = vmatpush1.msra.mxu0 0.0
        %1451 = vmatprep.subr.mxu0 0.0
        %1452 = vmatpush1.msra.mxu0 0.0
        %1453 = vmatprep.subr.mxu0 0.0
        %1454 = vmatpush1.msra.mxu0 0.0
        %1455 = vmatprep.subr.mxu0 0.0
        %1456 = vmatpush1.msra.mxu0 0.0
        %1457 = vmatprep.subr.mxu0 0.0
        %1458 = vmatpush1.msra.mxu0 0.0
        %1459 = vmatprep.subr.mxu0 0.0
        %1460 = vmatpush1.msra.mxu0 0.0
        %1461 = vmatprep.subr.mxu0 0.0
        %1462 = vmatpush1.msra.mxu0 0.0
        %1463 = vmatprep.subr.mxu0 0.0
        %1464 = vmatpush1.msra.mxu0 0.0
        %1465 = vmatprep.subr.mxu0 0.0
        %1466 = vmatpush1.msra.mxu0 0.0
        %1467 = vmatprep.subr.mxu0 0.0
        %1468 = vmatpush1.msra.mxu0 0.0
        %1469 = vmatprep.subr.mxu0 0.0
        %1470 = vmatpush1.msra.mxu0 0.0
        %1471 = vmatprep.subr.mxu0 0.0
        %1472 = vmatpush1.msra.mxu0 0.0
        %1473 = vmatprep.subr.mxu0 0.0
        %1474 = vmatpush1.msra.mxu0 0.0
        %1475 = vmatprep.subr.mxu0 0.0
        %1476 = vmatpush1.msra.mxu0 0.0
        %1477 = vmatprep.subr.mxu0 0.0
        %1478 = vmatpush1.msra.mxu0 0.0
        %1479 = vmatprep.subr.mxu0 0.0
        %1480 = vmatpush1.msra.mxu0 0.0
        %1481 = vmatprep.subr.mxu0 0.0
        %1482 = vmatpush1.msra.mxu0 0.0
        %1483 = vmatprep.subr.mxu0 0.0
        %1484 = vmatpush1.msra.mxu0 0.0
        %1485 = vmatprep.mubr.f32.mxu0 0.0
        %1486 = vmatmul.mubr.f32.gmra.mrb[0].mxu0 %v1374
        %v1487 = vpop.f32.mrb[0].mxu0
        %v1488 = vadd.f32 0.0, %v1487
        %v1489 = vpop.f32.mrb[0].mxu0
        %1490 = vmatprep.mubr.f32.mxu0 0.0
        %1491 = vmatmul.mubr.f32.gmra.mrb[0].mxu0 %v1377
        %v1492 = vpop.f32.mrb[0].mxu0
        %v1493 = vadd.f32 0.0, %v1492
        %v1494 = vpop.f32.mrb[0].mxu0
        %1495 = vmatprep.mubr.f32.mxu0 0.0
        %1496 = vmatmul.mubr.f32.gmra.mrb[0].mxu0 %v1380
        %v1497 = vpop.f32.mrb[0].mxu0
        %v1498 = vadd.f32 0.0, %v1497
        %v1499 = vpop.f32.mrb[0].mxu0
        %1500 = vmatprep.mubr.f32.mxu0 0.0
        %1501 = vmatmul.mubr.f32.gmra.mrb[0].mxu0 %v1383
        %v1502 = vpop.f32.mrb[0].mxu0
        %v1503 = vadd.f32 0.0, %v1502
        %v1504 = vpop.f32.mrb[0].mxu0
        %1505 = vmatprep.mubr.f32.mxu0 0.0
        %1506 = vmatmul.mubr.f32.gmra.mrb[0].mxu0 %v1386
        %v1507 = vpop.f32.mrb[0].mxu0
        %v1508 = vadd.f32 0.0, %v1507
        %v1509 = vpop.f32.mrb[0].mxu0
        %1510 = vmatprep.mubr.f32.mxu0 0.0
        %1511 = vmatmul.mubr.f32.gmra.mrb[0].mxu0 %v1389
        %v1512 = vpop.f32.mrb[0].mxu0
        %v1513 = vadd.f32 0.0, %v1512
        %v1514 = vpop.f32.mrb[0].mxu0
        %1515 = vmatprep.mubr.f32.mxu0 0.0
        %1516 = vmatmul.mubr.f32.gmra.mrb[0].mxu0 %v1392
        %v1517 = vpop.f32.mrb[0].mxu0
        %v1518 = vadd.f32 0.0, %v1517
        %v1519 = vpop.f32.mrb[0].mxu0
        %1520 = vmatprep.mubr.f32.mxu0 0.0
        %1521 = vmatmul.mubr.f32.gmra.mrb[0].mxu0 %v1395
        %v1522 = vpop.f32.mrb[0].mxu0
        %v1523 = vadd.f32 0.0, %v1522
        %v1524 = vpop.f32.mrb[0].mxu0
        %1525 = vmatprep.mubr.f32.mxu0 0.0
        %1526 = vmatmul.mubr.f32.gmra.mrb[0].mxu0 %v1398
        %v1527 = vpop.f32.mrb[0].mxu0
        %v1528 = vadd.f32 0.0, %v1527
        %v1529 = vpop.f32.mrb[0].mxu0
        %1530 = vmatprep.mubr.f32.mxu0 0.0
        %1531 = vmatmul.mubr.f32.gmra.mrb[0].mxu0 %v1401
        %v1532 = vpop.f32.mrb[0].mxu0
        %v1533 = vadd.f32 0.0, %v1532
        %v1534 = vpop.f32.mrb[0].mxu0
        %1535 = vmatprep.mubr.f32.mxu0 0.0
        %1536 = vmatmul.mubr.f32.gmra.mrb[0].mxu0 %v1404
        %v1537 = vpop.f32.mrb[0].mxu0
        %v1538 = vadd.f32 0.0, %v1537
        %v1539 = vpop.f32.mrb[0].mxu0
        %1540 = vmatprep.mubr.f32.mxu0 0.0
        %1541 = vmatmul.mubr.f32.gmra.mrb[0].mxu0 %v1407
        %v1542 = vpop.f32.mrb[0].mxu0
        %v1543 = vadd.f32 0.0, %v1542
        %v1544 = vpop.f32.mrb[0].mxu0
        %1545 = vmatprep.mubr.f32.mxu0 0.0
        %1546 = vmatmul.mubr.f32.gmra.mrb[0].mxu0 %v1410
        %v1547 = vpop.f32.mrb[0].mxu0
        %v1548 = vadd.f32 0.0, %v1547
        %v1549 = vpop.f32.mrb[0].mxu0
        %1550 = vmatprep.mubr.f32.mxu0 0.0
        %1551 = vmatmul.mubr.f32.gmra.mrb[0].mxu0 %v1413
        %v1552 = vpop.f32.mrb[0].mxu0
        %v1553 = vadd.f32 0.0, %v1552
        %v1554 = vpop.f32.mrb[0].mxu0
        %1555 = vmatprep.mubr.f32.mxu0 0.0
        %1556 = vmatmul.mubr.f32.gmra.mrb[0].mxu0 %v1416
        %v1557 = vpop.f32.mrb[0].mxu0
        %v1558 = vadd.f32 0.0, %v1557
        %v1559 = vpop.f32.mrb[0].mxu0
        %1560 = vmatprep.mubr.f32.mxu0 0.0
        %1561 = vmatmul.mubr.f32.gmra.mrb[0].mxu0 %v1419
        %v1562 = vpop.f32.mrb[0].mxu0
        %v1563 = vadd.f32 0.0, %v1562
        %v1564 = vpop.f32.mrb[0].mxu0
        %1565 = vdwg.mxu0
        %s1566 = scalar_lea.vmem [#allocation2], 256
        %1567 = vst [vmem:[%s1566] sm:$0xff] %v1488
        %1568 = vst [vmem:[%s1566 + $0x8] sm:$0xff] %v1493
        %1569 = vst [vmem:[%s1566 + $0x10] sm:$0xff] %v1498
        %1570 = vst [vmem:[%s1566 + $0x18] sm:$0xff] %v1503
        %1571 = vst [vmem:[%s1566 + $0x20] sm:$0xff] %v1508
        %1572 = vst [vmem:[%s1566 + $0x28] sm:$0xff] %v1513
        %1573 = vst [vmem:[%s1566 + $0x30] sm:$0xff] %v1518
        %1574 = vst [vmem:[%s1566 + $0x38] sm:$0xff] %v1523
        %1575 = vst [vmem:[%s1566 + $0x40] sm:$0xff] %v1528
        %1576 = vst [vmem:[%s1566 + $0x48] sm:$0xff] %v1533
        %1577 = vst [vmem:[%s1566 + $0x50] sm:$0xff] %v1538
        %1578 = vst [vmem:[%s1566 + $0x58] sm:$0xff] %v1543
        %1579 = vst [vmem:[%s1566 + $0x60] sm:$0xff] %v1548
        %1580 = vst [vmem:[%s1566 + $0x68] sm:$0xff] %v1553
        %1581 = vst [vmem:[%s1566 + $0x70] sm:$0xff] %v1558
        %1582 = vst [vmem:[%s1566 + $0x78] sm:$0xff] %v1563
        %vm1583 = vcmask 125955
        %1584 = vst.msk [vmem:[#allocation3 - $0x3] sm:$0x8] %vm1583, %v345
        %1585 = vst.msk [vmem:[#allocation3 - $0x2] sm:$0x8] %vm1583, %v375
        %1586 = vst.msk [vmem:[#allocation3 - $0x1] sm:$0x8] %vm1583, %v379
        %1587 = vst.msk [vmem:[#allocation3] sm:$0x8] %vm1583, %v383
        %1588 = vst.msk [vmem:[#allocation3 + $0x1] sm:$0x8] %vm1583, %v387
        %1589 = vst.msk [vmem:[#allocation3 + $0x2] sm:$0x8] %vm1583, %v391
        %1590 = vst.msk [vmem:[#allocation3 + $0x3] sm:$0x8] %vm1583, %v395
        %1591 = vst.msk [vmem:[#allocation3 + $0x4] sm:$0x8] %vm1583, %v399
        %1592 = vst.msk [vmem:[#allocation3 + $0x5] sm:$0x8] %vm1583, %v347
        %1593 = vst.msk [vmem:[#allocation3 + $0x6] sm:$0x8] %vm1583, %v404
        %1594 = vst.msk [vmem:[#allocation3 + $0x7] sm:$0x8] %vm1583, %v408
        %1595 = vst.msk [vmem:[#allocation3 + $0x8] sm:$0x8] %vm1583, %v412
        %1596 = vst.msk [vmem:[#allocation3 + $0x9] sm:$0x8] %vm1583, %v416
        %1597 = vst.msk [vmem:[#allocation3 + $0xa] sm:$0x8] %vm1583, %v420
        %1598 = vst.msk [vmem:[#allocation3 + $0xb] sm:$0x8] %vm1583, %v424
        %1599 = vst.msk [vmem:[#allocation3 + $0xc] sm:$0x8] %vm1583, %v428
        %v1600 = vld [vmem:[#allocation3] sm:$0xff]
        %v1601 = vld [vmem:[#allocation3 + $0x8] sm:$0xff]
        %1602 = vmatprep.subr.mxu0 0.0
        %1603 = vmatpush1.msra.mxu0 %v1600
        %1604 = vmatprep.subr.mxu0 0.0
        %1605 = vmatpush1.msra.mxu0 %v1601
        %1606 = vmatprep.subr.mxu0 0.0
        %1607 = vmatpush1.msra.mxu0 0.0
        %1608 = vmatprep.subr.mxu0 0.0
        %1609 = vmatpush1.msra.mxu0 0.0
        %1610 = vmatprep.subr.mxu0 0.0
        %1611 = vmatpush1.msra.mxu0 0.0
        %1612 = vmatprep.subr.mxu0 0.0
        %1613 = vmatpush1.msra.mxu0 0.0
        %1614 = vmatprep.subr.mxu0 0.0
        %1615 = vmatpush1.msra.mxu0 0.0
        %1616 = vmatprep.subr.mxu0 0.0
        %1617 = vmatpush1.msra.mxu0 0.0
        %1618 = vmatprep.subr.mxu0 0.0
        %1619 = vmatpush1.msra.mxu0 0.0
        %1620 = vmatprep.subr.mxu0 0.0
        %1621 = vmatpush1.msra.mxu0 0.0
        %1622 = vmatprep.subr.mxu0 0.0
        %1623 = vmatpush1.msra.mxu0 0.0
        %1624 = vmatprep.subr.mxu0 0.0
        %1625 = vmatpush1.msra.mxu0 0.0
        %1626 = vmatprep.subr.mxu0 0.0
        %1627 = vmatpush1.msra.mxu0 0.0
        %1628 = vmatprep.subr.mxu0 0.0
        %1629 = vmatpush1.msra.mxu0 0.0
        %1630 = vmatprep.subr.mxu0 0.0
        %1631 = vmatpush1.msra.mxu0 0.0
        %1632 = vmatprep.subr.mxu0 0.0
        %1633 = vmatpush1.msra.mxu0 0.0
        %1634 = vmatprep.subr.mxu0 0.0
        %1635 = vmatpush1.msra.mxu0 0.0
        %1636 = vmatprep.subr.mxu0 0.0
        %1637 = vmatpush1.msra.mxu0 0.0
        %1638 = vmatprep.subr.mxu0 0.0
        %1639 = vmatpush1.msra.mxu0 0.0
        %1640 = vmatprep.subr.mxu0 0.0
        %1641 = vmatpush1.msra.mxu0 0.0
        %1642 = vmatprep.subr.mxu0 0.0
        %1643 = vmatpush1.msra.mxu0 0.0
        %1644 = vmatprep.subr.mxu0 0.0
        %1645 = vmatpush1.msra.mxu0 0.0
        %1646 = vmatprep.subr.mxu0 0.0
        %1647 = vmatpush1.msra.mxu0 0.0
        %1648 = vmatprep.subr.mxu0 0.0
        %1649 = vmatpush1.msra.mxu0 0.0
        %1650 = vmatprep.subr.mxu0 0.0
        %1651 = vmatpush1.msra.mxu0 0.0
        %1652 = vmatprep.subr.mxu0 0.0
        %1653 = vmatpush1.msra.mxu0 0.0
        %1654 = vmatprep.subr.mxu0 0.0
        %1655 = vmatpush1.msra.mxu0 0.0
        %1656 = vmatprep.subr.mxu0 0.0
        %1657 = vmatpush1.msra.mxu0 0.0
        %1658 = vmatprep.subr.mxu0 0.0
        %1659 = vmatpush1.msra.mxu0 0.0
        %1660 = vmatprep.subr.mxu0 0.0
        %1661 = vmatpush1.msra.mxu0 0.0
        %1662 = vmatprep.subr.mxu0 0.0
        %1663 = vmatpush1.msra.mxu0 0.0
        %1664 = vmatprep.subr.mxu0 0.0
        %1665 = vmatpush1.msra.mxu0 0.0
        %1666 = vmatprep.mubr.f32.mxu0 0.0
        %1667 = vmatmul.mubr.f32.gmra.mrb[0].mxu0 %v434
        %v1668 = vpop.f32.mrb[0].mxu0
        %v1669 = vadd.f32 0.0, %v1668
        %v1670 = vpop.f32.mrb[0].mxu0
        %1671 = vmatprep.mubr.f32.mxu0 0.0
        %1672 = vmatmul.mubr.f32.gmra.mrb[0].mxu0 %v437
        %v1673 = vpop.f32.mrb[0].mxu0
        %v1674 = vadd.f32 0.0, %v1673
        %v1675 = vpop.f32.mrb[0].mxu0
        %1676 = vmatprep.mubr.f32.mxu0 0.0
        %1677 = vmatmul.mubr.f32.gmra.mrb[0].mxu0 %v440
        %v1678 = vpop.f32.mrb[0].mxu0
        %v1679 = vadd.f32 0.0, %v1678
        %v1680 = vpop.f32.mrb[0].mxu0
        %1681 = vmatprep.mubr.f32.mxu0 0.0
        %1682 = vmatmul.mubr.f32.gmra.mrb[0].mxu0 %v443
        %v1683 = vpop.f32.mrb[0].mxu0
        %v1684 = vadd.f32 0.0, %v1683
        %v1685 = vpop.f32.mrb[0].mxu0
        %1686 = vmatprep.mubr.f32.mxu0 0.0
        %1687 = vmatmul.mubr.f32.gmra.mrb[0].mxu0 %v446
        %v1688 = vpop.f32.mrb[0].mxu0
        %v1689 = vadd.f32 0.0, %v1688
        %v1690 = vpop.f32.mrb[0].mxu0
        %1691 = vmatprep.mubr.f32.mxu0 0.0
        %1692 = vmatmul.mubr.f32.gmra.mrb[0].mxu0 %v449
        %v1693 = vpop.f32.mrb[0].mxu0
        %v1694 = vadd.f32 0.0, %v1693
        %v1695 = vpop.f32.mrb[0].mxu0
        %1696 = vmatprep.mubr.f32.mxu0 0.0
        %1697 = vmatmul.mubr.f32.gmra.mrb[0].mxu0 %v452
        %v1698 = vpop.f32.mrb[0].mxu0
        %v1699 = vadd.f32 0.0, %v1698
        %v1700 = vpop.f32.mrb[0].mxu0
        %1701 = vmatprep.mubr.f32.mxu0 0.0
        %1702 = vmatmul.mubr.f32.gmra.mrb[0].mxu0 %v455
        %v1703 = vpop.f32.mrb[0].mxu0
        %v1704 = vadd.f32 0.0, %v1703
        %v1705 = vpop.f32.mrb[0].mxu0
        %1706 = vmatprep.mubr.f32.mxu0 0.0
        %1707 = vmatmul.mubr.f32.gmra.mrb[0].mxu0 %v458
        %v1708 = vpop.f32.mrb[0].mxu0
        %v1709 = vadd.f32 0.0, %v1708
        %v1710 = vpop.f32.mrb[0].mxu0
        %1711 = vmatprep.mubr.f32.mxu0 0.0
        %1712 = vmatmul.mubr.f32.gmra.mrb[0].mxu0 %v461
        %v1713 = vpop.f32.mrb[0].mxu0
        %v1714 = vadd.f32 0.0, %v1713
        %v1715 = vpop.f32.mrb[0].mxu0
        %1716 = vmatprep.mubr.f32.mxu0 0.0
        %1717 = vmatmul.mubr.f32.gmra.mrb[0].mxu0 %v464
        %v1718 = vpop.f32.mrb[0].mxu0
        %v1719 = vadd.f32 0.0, %v1718
        %v1720 = vpop.f32.mrb[0].mxu0
        %1721 = vmatprep.mubr.f32.mxu0 0.0
        %1722 = vmatmul.mubr.f32.gmra.mrb[0].mxu0 %v467
        %v1723 = vpop.f32.mrb[0].mxu0
        %v1724 = vadd.f32 0.0, %v1723
        %v1725 = vpop.f32.mrb[0].mxu0
        %1726 = vmatprep.mubr.f32.mxu0 0.0
        %1727 = vmatmul.mubr.f32.gmra.mrb[0].mxu0 %v470
        %v1728 = vpop.f32.mrb[0].mxu0
        %v1729 = vadd.f32 0.0, %v1728
        %v1730 = vpop.f32.mrb[0].mxu0
        %1731 = vmatprep.mubr.f32.mxu0 0.0
        %1732 = vmatmul.mubr.f32.gmra.mrb[0].mxu0 %v473
        %v1733 = vpop.f32.mrb[0].mxu0
        %v1734 = vadd.f32 0.0, %v1733
        %v1735 = vpop.f32.mrb[0].mxu0
        %1736 = vmatprep.mubr.f32.mxu0 0.0
        %1737 = vmatmul.mubr.f32.gmra.mrb[0].mxu0 %v476
        %v1738 = vpop.f32.mrb[0].mxu0
        %v1739 = vadd.f32 0.0, %v1738
        %v1740 = vpop.f32.mrb[0].mxu0
        %1741 = vmatprep.mubr.f32.mxu0 0.0
        %1742 = vmatmul.mubr.f32.gmra.mrb[0].mxu0 %v479
        %v1743 = vpop.f32.mrb[0].mxu0
        %v1744 = vadd.f32 0.0, %v1743
        %v1745 = vpop.f32.mrb[0].mxu0
        %1746 = vdwg.mxu0
        %v1748 = vsel %vm274, %v1669, 0
        %v1751 = vsel %vm274, %v1674, 0
        %v1754 = vsel %vm274, %v1679, 0
        %v1757 = vsel %vm274, %v1684, 0
        %v1760 = vsel %vm274, %v1689, 0
        %v1763 = vsel %vm274, %v1694, 0
        %v1766 = vsel %vm274, %v1699, 0
        %v1769 = vsel %vm274, %v1704, 0
        %v1772 = vsel %vm274, %v1709, 0
        %v1775 = vsel %vm274, %v1714, 0
        %v1778 = vsel %vm274, %v1719, 0
        %v1781 = vsel %vm274, %v1724, 0
        %v1784 = vsel %vm274, %v1729, 0
        %v1787 = vsel %vm274, %v1734, 0
        %v1790 = vsel %vm274, %v1739, 0
        %v1793 = vsel %vm274, %v1744, 0
        %1795 = vmatprep.subr.mxu0 0.0
        %1796 = vmatpush1.msra.mxu0 %v370
        %1797 = vmatprep.subr.mxu0 0.0
        %1798 = vmatpush1.msra.mxu0 %v371
        %1799 = vmatprep.subr.mxu0 0.0
        %1800 = vmatpush1.msra.mxu0 0.0
        %1801 = vmatprep.subr.mxu0 0.0
        %1802 = vmatpush1.msra.mxu0 0.0
        %1803 = vmatprep.subr.mxu0 0.0
        %1804 = vmatpush1.msra.mxu0 0.0
        %1805 = vmatprep.subr.mxu0 0.0
        %1806 = vmatpush1.msra.mxu0 0.0
        %1807 = vmatprep.subr.mxu0 0.0
        %1808 = vmatpush1.msra.mxu0 0.0
        %1809 = vmatprep.subr.mxu0 0.0
        %1810 = vmatpush1.msra.mxu0 0.0
        %1811 = vmatprep.subr.mxu0 0.0
        %1812 = vmatpush1.msra.mxu0 0.0
        %1813 = vmatprep.subr.mxu0 0.0
        %1814 = vmatpush1.msra.mxu0 0.0
        %1815 = vmatprep.subr.mxu0 0.0
        %1816 = vmatpush1.msra.mxu0 0.0
        %1817 = vmatprep.subr.mxu0 0.0
        %1818 = vmatpush1.msra.mxu0 0.0
        %1819 = vmatprep.subr.mxu0 0.0
        %1820 = vmatpush1.msra.mxu0 0.0
        %1821 = vmatprep.subr.mxu0 0.0
        %1822 = vmatpush1.msra.mxu0 0.0
        %1823 = vmatprep.subr.mxu0 0.0
        %1824 = vmatpush1.msra.mxu0 0.0
        %1825 = vmatprep.subr.mxu0 0.0
        %1826 = vmatpush1.msra.mxu0 0.0
        %1827 = vmatprep.subr.mxu0 0.0
        %1828 = vmatpush1.msra.mxu0 0.0
        %1829 = vmatprep.subr.mxu0 0.0
        %1830 = vmatpush1.msra.mxu0 0.0
        %1831 = vmatprep.subr.mxu0 0.0
        %1832 = vmatpush1.msra.mxu0 0.0
        %1833 = vmatprep.subr.mxu0 0.0
        %1834 = vmatpush1.msra.mxu0 0.0
        %1835 = vmatprep.subr.mxu0 0.0
        %1836 = vmatpush1.msra.mxu0 0.0
        %1837 = vmatprep.subr.mxu0 0.0
        %1838 = vmatpush1.msra.mxu0 0.0
        %1839 = vmatprep.subr.mxu0 0.0
        %1840 = vmatpush1.msra.mxu0 0.0
        %1841 = vmatprep.subr.mxu0 0.0
        %1842 = vmatpush1.msra.mxu0 0.0
        %1843 = vmatprep.subr.mxu0 0.0
        %1844 = vmatpush1.msra.mxu0 0.0
        %1845 = vmatprep.subr.mxu0 0.0
        %1846 = vmatpush1.msra.mxu0 0.0
        %1847 = vmatprep.subr.mxu0 0.0
        %1848 = vmatpush1.msra.mxu0 0.0
        %1849 = vmatprep.subr.mxu0 0.0
        %1850 = vmatpush1.msra.mxu0 0.0
        %1851 = vmatprep.subr.mxu0 0.0
        %1852 = vmatpush1.msra.mxu0 0.0
        %1853 = vmatprep.subr.mxu0 0.0
        %1854 = vmatpush1.msra.mxu0 0.0
        %1855 = vmatprep.subr.mxu0 0.0
        %1856 = vmatpush1.msra.mxu0 0.0
        %1857 = vmatprep.subr.mxu0 0.0
        %1858 = vmatpush1.msra.mxu0 0.0
        %1859 = vmatprep.mubr.f32.mxu0 0.0
        %1860 = vmatmul.mubr.f32.gmra.mrb[0].mxu0 %v1748
        %v1861 = vpop.f32.mrb[0].mxu0
        %v1862 = vadd.f32 0.0, %v1861
        %v1863 = vpop.f32.mrb[0].mxu0
        %1864 = vmatprep.mubr.f32.mxu0 0.0
        %1865 = vmatmul.mubr.f32.gmra.mrb[0].mxu0 %v1751
        %v1866 = vpop.f32.mrb[0].mxu0
        %v1867 = vadd.f32 0.0, %v1866
        %v1868 = vpop.f32.mrb[0].mxu0
        %1869 = vmatprep.mubr.f32.mxu0 0.0
        %1870 = vmatmul.mubr.f32.gmra.mrb[0].mxu0 %v1754
        %v1871 = vpop.f32.mrb[0].mxu0
        %v1872 = vadd.f32 0.0, %v1871
        %v1873 = vpop.f32.mrb[0].mxu0
        %1874 = vmatprep.mubr.f32.mxu0 0.0
        %1875 = vmatmul.mubr.f32.gmra.mrb[0].mxu0 %v1757
        %v1876 = vpop.f32.mrb[0].mxu0
        %v1877 = vadd.f32 0.0, %v1876
        %v1878 = vpop.f32.mrb[0].mxu0
        %1879 = vmatprep.mubr.f32.mxu0 0.0
        %1880 = vmatmul.mubr.f32.gmra.mrb[0].mxu0 %v1760
        %v1881 = vpop.f32.mrb[0].mxu0
        %v1882 = vadd.f32 0.0, %v1881
        %v1883 = vpop.f32.mrb[0].mxu0
        %1884 = vmatprep.mubr.f32.mxu0 0.0
        %1885 = vmatmul.mubr.f32.gmra.mrb[0].mxu0 %v1763
        %v1886 = vpop.f32.mrb[0].mxu0
        %v1887 = vadd.f32 0.0, %v1886
        %v1888 = vpop.f32.mrb[0].mxu0
        %1889 = vmatprep.mubr.f32.mxu0 0.0
        %1890 = vmatmul.mubr.f32.gmra.mrb[0].mxu0 %v1766
        %v1891 = vpop.f32.mrb[0].mxu0
        %v1892 = vadd.f32 0.0, %v1891
        %v1893 = vpop.f32.mrb[0].mxu0
        %1894 = vmatprep.mubr.f32.mxu0 0.0
        %1895 = vmatmul.mubr.f32.gmra.mrb[0].mxu0 %v1769
        %v1896 = vpop.f32.mrb[0].mxu0
        %v1897 = vadd.f32 0.0, %v1896
        %v1898 = vpop.f32.mrb[0].mxu0
        %1899 = vmatprep.mubr.f32.mxu0 0.0
        %1900 = vmatmul.mubr.f32.gmra.mrb[0].mxu0 %v1772
        %v1901 = vpop.f32.mrb[0].mxu0
        %v1902 = vadd.f32 0.0, %v1901
        %v1903 = vpop.f32.mrb[0].mxu0
        %1904 = vmatprep.mubr.f32.mxu0 0.0
        %1905 = vmatmul.mubr.f32.gmra.mrb[0].mxu0 %v1775
        %v1906 = vpop.f32.mrb[0].mxu0
        %v1907 = vadd.f32 0.0, %v1906
        %v1908 = vpop.f32.mrb[0].mxu0
        %1909 = vmatprep.mubr.f32.mxu0 0.0
        %1910 = vmatmul.mubr.f32.gmra.mrb[0].mxu0 %v1778
        %v1911 = vpop.f32.mrb[0].mxu0
        %v1912 = vadd.f32 0.0, %v1911
        %v1913 = vpop.f32.mrb[0].mxu0
        %1914 = vmatprep.mubr.f32.mxu0 0.0
        %1915 = vmatmul.mubr.f32.gmra.mrb[0].mxu0 %v1781
        %v1916 = vpop.f32.mrb[0].mxu0
        %v1917 = vadd.f32 0.0, %v1916
        %v1918 = vpop.f32.mrb[0].mxu0
        %1919 = vmatprep.mubr.f32.mxu0 0.0
        %1920 = vmatmul.mubr.f32.gmra.mrb[0].mxu0 %v1784
        %v1921 = vpop.f32.mrb[0].mxu0
        %v1922 = vadd.f32 0.0, %v1921
        %v1923 = vpop.f32.mrb[0].mxu0
        %1924 = vmatprep.mubr.f32.mxu0 0.0
        %1925 = vmatmul.mubr.f32.gmra.mrb[0].mxu0 %v1787
        %v1926 = vpop.f32.mrb[0].mxu0
        %v1927 = vadd.f32 0.0, %v1926
        %v1928 = vpop.f32.mrb[0].mxu0
        %1929 = vmatprep.mubr.f32.mxu0 0.0
        %1930 = vmatmul.mubr.f32.gmra.mrb[0].mxu0 %v1790
        %v1931 = vpop.f32.mrb[0].mxu0
        %v1932 = vadd.f32 0.0, %v1931
        %v1933 = vpop.f32.mrb[0].mxu0
        %1934 = vmatprep.mubr.f32.mxu0 0.0
        %1935 = vmatmul.mubr.f32.gmra.mrb[0].mxu0 %v1793
        %v1936 = vpop.f32.mrb[0].mxu0
        %v1937 = vadd.f32 0.0, %v1936
        %v1938 = vpop.f32.mrb[0].mxu0
        %1939 = vdwg.mxu0
        %s1940 = scalar_lea.vmem [#allocation2], 384
        %1941 = vst [vmem:[%s1940] sm:$0xff] %v1862
        %1942 = vst [vmem:[%s1940 + $0x8] sm:$0xff] %v1867
        %1943 = vst [vmem:[%s1940 + $0x10] sm:$0xff] %v1872
        %1944 = vst [vmem:[%s1940 + $0x18] sm:$0xff] %v1877
        %1945 = vst [vmem:[%s1940 + $0x20] sm:$0xff] %v1882
        %1946 = vst [vmem:[%s1940 + $0x28] sm:$0xff] %v1887
        %1947 = vst [vmem:[%s1940 + $0x30] sm:$0xff] %v1892
        %1948 = vst [vmem:[%s1940 + $0x38] sm:$0xff] %v1897
        %1949 = vst [vmem:[%s1940 + $0x40] sm:$0xff] %v1902
        %1950 = vst [vmem:[%s1940 + $0x48] sm:$0xff] %v1907
        %1951 = vst [vmem:[%s1940 + $0x50] sm:$0xff] %v1912
        %1952 = vst [vmem:[%s1940 + $0x58] sm:$0xff] %v1917
        %1953 = vst [vmem:[%s1940 + $0x60] sm:$0xff] %v1922
        %1954 = vst [vmem:[%s1940 + $0x68] sm:$0xff] %v1927
        %1955 = vst [vmem:[%s1940 + $0x70] sm:$0xff] %v1932
        %1956 = vst [vmem:[%s1940 + $0x78] sm:$0xff] %v1937
        %v1957 = vld [vmem:[#allocation2] sm:$0xff]
        %v1958 = vld [vmem:[#allocation2 + $0x8] sm:$0xff]
        %v1959 = vld [vmem:[#allocation2 + $0x10] sm:$0xff]
        %v1960 = vld [vmem:[#allocation2 + $0x18] sm:$0xff]
        %v1961 = vld [vmem:[#allocation2 + $0x20] sm:$0xff]
        %v1962 = vld [vmem:[#allocation2 + $0x28] sm:$0xff]
        %v1963 = vld [vmem:[#allocation2 + $0x30] sm:$0xff]
        %v1964 = vld [vmem:[#allocation2 + $0x38] sm:$0xff]
        %v1965 = vld [vmem:[%s1192] sm:$0xff]
        %v1966 = vld [vmem:[%s1192 + $0x8] sm:$0xff]
        %v1967 = vld [vmem:[%s1192 + $0x10] sm:$0xff]
        %v1968 = vld [vmem:[%s1192 + $0x18] sm:$0xff]
        %v1969 = vld [vmem:[%s1192 + $0x20] sm:$0xff]
        %v1970 = vld [vmem:[%s1192 + $0x28] sm:$0xff]
        %v1971 = vld [vmem:[%s1192 + $0x30] sm:$0xff]
        %v1972 = vld [vmem:[%s1192 + $0x38] sm:$0xff]
        %v1973 = vmax.f32 %v1957, %v1965
        %v1974 = vmax.f32 %v1958, %v1966
        %v1975 = vmax.f32 %v1959, %v1967
        %v1976 = vmax.f32 %v1960, %v1968
        %v1977 = vmax.f32 %v1961, %v1969
        %v1978 = vmax.f32 %v1962, %v1970
        %v1979 = vmax.f32 %v1963, %v1971
        %v1980 = vmax.f32 %v1964, %v1972
        %v1981 = vld [vmem:[%s1566] sm:$0xff]
        %v1982 = vld [vmem:[%s1566 + $0x8] sm:$0xff]
        %v1983 = vld [vmem:[%s1566 + $0x10] sm:$0xff]
        %v1984 = vld [vmem:[%s1566 + $0x18] sm:$0xff]
        %v1985 = vld [vmem:[%s1566 + $0x20] sm:$0xff]
        %v1986 = vld [vmem:[%s1566 + $0x28] sm:$0xff]
        %v1987 = vld [vmem:[%s1566 + $0x30] sm:$0xff]
        %v1988 = vld [vmem:[%s1566 + $0x38] sm:$0xff]
        %v1989 = vmax.f32 %v1973, %v1981
        %v1990 = vmax.f32 %v1974, %v1982
        %v1991 = vmax.f32 %v1975, %v1983
        %v1992 = vmax.f32 %v1976, %v1984
        %v1993 = vmax.f32 %v1977, %v1985
        %v1994 = vmax.f32 %v1978, %v1986
        %v1995 = vmax.f32 %v1979, %v1987
        %v1996 = vmax.f32 %v1980, %v1988
        %v1997 = vld [vmem:[%s1940] sm:$0xff]
        %v1998 = vld [vmem:[%s1940 + $0x8] sm:$0xff]
        %v1999 = vld [vmem:[%s1940 + $0x10] sm:$0xff]
        %v2000 = vld [vmem:[%s1940 + $0x18] sm:$0xff]
        %v2001 = vld [vmem:[%s1940 + $0x20] sm:$0xff]
        %v2002 = vld [vmem:[%s1940 + $0x28] sm:$0xff]
        %v2003 = vld [vmem:[%s1940 + $0x30] sm:$0xff]
        %v2004 = vld [vmem:[%s1940 + $0x38] sm:$0xff]
        %v2005 = vmax.f32 %v1989, %v1997
        %v2006 = vmax.f32 %v1990, %v1998
        %v2007 = vmax.f32 %v1991, %v1999
        %v2008 = vmax.f32 %v1992, %v2000
        %v2009 = vmax.f32 %v1993, %v2001
        %v2010 = vmax.f32 %v1994, %v2002
        %v2011 = vmax.f32 %v1995, %v2003
        %v2012 = vmax.f32 %v1996, %v2004
        %v2013 = vsub.f32 %v1957, %v2005
        %v2014 = vsub.f32 %v1958, %v2006
        %v2015 = vsub.f32 %v1959, %v2007
        %v2016 = vsub.f32 %v1960, %v2008
        %v2017 = vsub.f32 %v1961, %v2009
        %v2018 = vsub.f32 %v1962, %v2010
        %v2019 = vsub.f32 %v1963, %v2011
        %v2020 = vsub.f32 %v1964, %v2012
        %v2021 = vmul.f32 %v2013, 1.442695
        %v2022 = vpow.pop %v2021
        %v2023 = vmul.f32 %v2014, 1.442695
        %v2024 = vpow.pop %v2023
        %v2025 = vmul.f32 %v2015, 1.442695
        %v2026 = vpow.pop %v2025
        %v2027 = vmul.f32 %v2016, 1.442695
        %v2028 = vpow.pop %v2027
        %v2029 = vmul.f32 %v2017, 1.442695
        %v2030 = vpow.pop %v2029
        %v2031 = vmul.f32 %v2018, 1.442695
        %v2032 = vpow.pop %v2031
        %v2033 = vmul.f32 %v2019, 1.442695
        %v2034 = vpow.pop %v2033
        %v2035 = vmul.f32 %v2020, 1.442695
        %v2036 = vpow.pop %v2035
        %v2037 = vsub.f32 %v1965, %v2005
        %v2038 = vsub.f32 %v1966, %v2006
        %v2039 = vsub.f32 %v1967, %v2007
        %v2040 = vsub.f32 %v1968, %v2008
        %v2041 = vsub.f32 %v1969, %v2009
        %v2042 = vsub.f32 %v1970, %v2010
        %v2043 = vsub.f32 %v1971, %v2011
        %v2044 = vsub.f32 %v1972, %v2012
        %v2045 = vmul.f32 %v2037, 1.442695
        %v2046 = vpow.pop %v2045
        %v2047 = vmul.f32 %v2038, 1.442695
        %v2048 = vpow.pop %v2047
        %v2049 = vmul.f32 %v2039, 1.442695
        %v2050 = vpow.pop %v2049
        %v2051 = vmul.f32 %v2040, 1.442695
        %v2052 = vpow.pop %v2051
        %v2053 = vmul.f32 %v2041, 1.442695
        %v2054 = vpow.pop %v2053
        %v2055 = vmul.f32 %v2042, 1.442695
        %v2056 = vpow.pop %v2055
        %v2057 = vmul.f32 %v2043, 1.442695
        %v2058 = vpow.pop %v2057
        %v2059 = vmul.f32 %v2044, 1.442695
        %v2060 = vpow.pop %v2059
        %v2061 = vadd.f32 %v2022, %v2046
        %v2062 = vadd.f32 %v2024, %v2048
        %v2063 = vadd.f32 %v2026, %v2050
        %v2064 = vadd.f32 %v2028, %v2052
        %v2065 = vadd.f32 %v2030, %v2054
        %v2066 = vadd.f32 %v2032, %v2056
        %v2067 = vadd.f32 %v2034, %v2058
        %v2068 = vadd.f32 %v2036, %v2060
        %v2069 = vsub.f32 %v1981, %v2005
        %v2070 = vsub.f32 %v1982, %v2006
        %v2071 = vsub.f32 %v1983, %v2007
        %v2072 = vsub.f32 %v1984, %v2008
        %v2073 = vsub.f32 %v1985, %v2009
        %v2074 = vsub.f32 %v1986, %v2010
        %v2075 = vsub.f32 %v1987, %v2011
        %v2076 = vsub.f32 %v1988, %v2012
        %v2077 = vmul.f32 %v2069, 1.442695
        %v2078 = vpow.pop %v2077
        %v2079 = vmul.f32 %v2070, 1.442695
        %v2080 = vpow.pop %v2079
        %v2081 = vmul.f32 %v2071, 1.442695
        %v2082 = vpow.pop %v2081
        %v2083 = vmul.f32 %v2072, 1.442695
        %v2084 = vpow.pop %v2083
        %v2085 = vmul.f32 %v2073, 1.442695
        %v2086 = vpow.pop %v2085
        %v2087 = vmul.f32 %v2074, 1.442695
        %v2088 = vpow.pop %v2087
        %v2089 = vmul.f32 %v2075, 1.442695
        %v2090 = vpow.pop %v2089
        %v2091 = vmul.f32 %v2076, 1.442695
        %v2092 = vpow.pop %v2091
        %v2093 = vadd.f32 %v2061, %v2078
        %v2094 = vadd.f32 %v2062, %v2080
        %v2095 = vadd.f32 %v2063, %v2082
        %v2096 = vadd.f32 %v2064, %v2084
        %v2097 = vadd.f32 %v2065, %v2086
        %v2098 = vadd.f32 %v2066, %v2088
        %v2099 = vadd.f32 %v2067, %v2090
        %v2100 = vadd.f32 %v2068, %v2092
        %v2101 = vsub.f32 %v1997, %v2005
        %v2102 = vsub.f32 %v1998, %v2006
        %v2103 = vsub.f32 %v1999, %v2007
        %v2104 = vsub.f32 %v2000, %v2008
        %v2105 = vsub.f32 %v2001, %v2009
        %v2106 = vsub.f32 %v2002, %v2010
        %v2107 = vsub.f32 %v2003, %v2011
        %v2108 = vsub.f32 %v2004, %v2012
        %v2109 = vmul.f32 %v2101, 1.442695
        %v2110 = vpow.pop %v2109
        %v2111 = vmul.f32 %v2102, 1.442695
        %v2112 = vpow.pop %v2111
        %v2113 = vmul.f32 %v2103, 1.442695
        %v2114 = vpow.pop %v2113
        %v2115 = vmul.f32 %v2104, 1.442695
        %v2116 = vpow.pop %v2115
        %v2117 = vmul.f32 %v2105, 1.442695
        %v2118 = vpow.pop %v2117
        %v2119 = vmul.f32 %v2106, 1.442695
        %v2120 = vpow.pop %v2119
        %v2121 = vmul.f32 %v2107, 1.442695
        %v2122 = vpow.pop %v2121
        %v2123 = vmul.f32 %v2108, 1.442695
        %v2124 = vpow.pop %v2123
        %v2125 = vadd.f32 %v2093, %v2110
        %v2126 = vadd.f32 %v2094, %v2112
        %v2127 = vadd.f32 %v2095, %v2114
        %v2128 = vadd.f32 %v2096, %v2116
        %v2129 = vadd.f32 %v2097, %v2118
        %v2130 = vadd.f32 %v2098, %v2120
        %v2131 = vadd.f32 %v2099, %v2122
        %v2132 = vadd.f32 %v2100, %v2124
        %v2133 = vlog2.pop %v2125
        %v2134 = vmul.f32 %v2133, 0.6931472
        %v2135 = vlog2.pop %v2126
        %v2136 = vmul.f32 %v2135, 0.6931472
        %v2137 = vlog2.pop %v2127
        %v2138 = vmul.f32 %v2137, 0.6931472
        %v2139 = vlog2.pop %v2128
        %v2140 = vmul.f32 %v2139, 0.6931472
        %v2141 = vlog2.pop %v2129
        %v2142 = vmul.f32 %v2141, 0.6931472
        %v2143 = vlog2.pop %v2130
        %v2144 = vmul.f32 %v2143, 0.6931472
        %v2145 = vlog2.pop %v2131
        %v2146 = vmul.f32 %v2145, 0.6931472
        %v2147 = vlog2.pop %v2132
        %v2148 = vmul.f32 %v2147, 0.6931472
        %v2149 = vadd.f32 %v2005, %v2134
        %v2150 = vadd.f32 %v2006, %v2136
        %v2151 = vadd.f32 %v2007, %v2138
        %v2152 = vadd.f32 %v2008, %v2140
        %v2153 = vadd.f32 %v2009, %v2142
        %v2154 = vadd.f32 %v2010, %v2144
        %v2155 = vadd.f32 %v2011, %v2146
        %v2156 = vadd.f32 %v2012, %v2148
        %v2157 = vsub.f32 %v1957, %v2149
        %v2158 = vsub.f32 %v1958, %v2150
        %v2159 = vsub.f32 %v1959, %v2151
        %v2160 = vsub.f32 %v1960, %v2152
        %v2161 = vsub.f32 %v1961, %v2153
        %v2162 = vsub.f32 %v1962, %v2154
        %v2163 = vsub.f32 %v1963, %v2155
        %v2164 = vsub.f32 %v1964, %v2156
        %2165 = vst [vmem:[%s245] sm:$0xff] %v2157
        %2166 = vst [vmem:[%s245 + $0x8] sm:$0xff] %v2158
        %2167 = vst [vmem:[%s245 + $0x10] sm:$0xff] %v2159
        %2168 = vst [vmem:[%s245 + $0x18] sm:$0xff] %v2160
        %2169 = vst [vmem:[%s245 + $0x20] sm:$0xff] %v2161
        %2170 = vst [vmem:[%s245 + $0x28] sm:$0xff] %v2162
        %2171 = vst [vmem:[%s245 + $0x30] sm:$0xff] %v2163
        %2172 = vst [vmem:[%s245 + $0x38] sm:$0xff] %v2164
        %v2173 = vld [vmem:[%s1192] sm:$0xff]
        %v2174 = vld [vmem:[%s1192 + $0x8] sm:$0xff]
        %v2175 = vld [vmem:[%s1192 + $0x10] sm:$0xff]
        %v2176 = vld [vmem:[%s1192 + $0x18] sm:$0xff]
        %v2177 = vld [vmem:[%s1192 + $0x20] sm:$0xff]
        %v2178 = vld [vmem:[%s1192 + $0x28] sm:$0xff]
        %v2179 = vld [vmem:[%s1192 + $0x30] sm:$0xff]
        %v2180 = vld [vmem:[%s1192 + $0x38] sm:$0xff]
        %v2181 = vsub.f32 %v2173, %v2149
        %v2182 = vsub.f32 %v2174, %v2150
        %v2183 = vsub.f32 %v2175, %v2151
        %v2184 = vsub.f32 %v2176, %v2152
        %v2185 = vsub.f32 %v2177, %v2153
        %v2186 = vsub.f32 %v2178, %v2154
        %v2187 = vsub.f32 %v2179, %v2155
        %v2188 = vsub.f32 %v2180, %v2156
        %s2189 = scalar_lea.vmem %s245, 128 [#allocation4]
        %2190 = vst [vmem:[%s2189] sm:$0xff] %v2181
        %2191 = vst [vmem:[%s2189 + $0x8] sm:$0xff] %v2182
        %2192 = vst [vmem:[%s2189 + $0x10] sm:$0xff] %v2183
        %2193 = vst [vmem:[%s2189 + $0x18] sm:$0xff] %v2184
        %2194 = vst [vmem:[%s2189 + $0x20] sm:$0xff] %v2185
        %2195 = vst [vmem:[%s2189 + $0x28] sm:$0xff] %v2186
        %2196 = vst [vmem:[%s2189 + $0x30] sm:$0xff] %v2187
        %2197 = vst [vmem:[%s2189 + $0x38] sm:$0xff] %v2188
        %v2198 = vld [vmem:[%s1566] sm:$0xff]
        %v2199 = vld [vmem:[%s1566 + $0x8] sm:$0xff]
        %v2200 = vld [vmem:[%s1566 + $0x10] sm:$0xff]
        %v2201 = vld [vmem:[%s1566 + $0x18] sm:$0xff]
        %v2202 = vld [vmem:[%s1566 + $0x20] sm:$0xff]
        %v2203 = vld [vmem:[%s1566 + $0x28] sm:$0xff]
        %v2204 = vld [vmem:[%s1566 + $0x30] sm:$0xff]
        %v2205 = vld [vmem:[%s1566 + $0x38] sm:$0xff]
        %v2206 = vsub.f32 %v2198, %v2149
        %v2207 = vsub.f32 %v2199, %v2150
        %v2208 = vsub.f32 %v2200, %v2151
        %v2209 = vsub.f32 %v2201, %v2152
        %v2210 = vsub.f32 %v2202, %v2153
        %v2211 = vsub.f32 %v2203, %v2154
        %v2212 = vsub.f32 %v2204, %v2155
        %v2213 = vsub.f32 %v2205, %v2156
        %s2214 = scalar_lea.vmem %s245, 256 [#allocation4]
        %2215 = vst [vmem:[%s2214] sm:$0xff] %v2206
        %2216 = vst [vmem:[%s2214 + $0x8] sm:$0xff] %v2207
        %2217 = vst [vmem:[%s2214 + $0x10] sm:$0xff] %v2208
        %2218 = vst [vmem:[%s2214 + $0x18] sm:$0xff] %v2209
        %2219 = vst [vmem:[%s2214 + $0x20] sm:$0xff] %v2210
        %2220 = vst [vmem:[%s2214 + $0x28] sm:$0xff] %v2211
        %2221 = vst [vmem:[%s2214 + $0x30] sm:$0xff] %v2212
        %2222 = vst [vmem:[%s2214 + $0x38] sm:$0xff] %v2213
        %v2223 = vld [vmem:[%s1940] sm:$0xff]
        %v2224 = vld [vmem:[%s1940 + $0x8] sm:$0xff]
        %v2225 = vld [vmem:[%s1940 + $0x10] sm:$0xff]
        %v2226 = vld [vmem:[%s1940 + $0x18] sm:$0xff]
        %v2227 = vld [vmem:[%s1940 + $0x20] sm:$0xff]
        %v2228 = vld [vmem:[%s1940 + $0x28] sm:$0xff]
        %v2229 = vld [vmem:[%s1940 + $0x30] sm:$0xff]
        %v2230 = vld [vmem:[%s1940 + $0x38] sm:$0xff]
        %v2231 = vsub.f32 %v2223, %v2149
        %v2232 = vsub.f32 %v2224, %v2150
        %v2233 = vsub.f32 %v2225, %v2151
        %v2234 = vsub.f32 %v2226, %v2152
        %v2235 = vsub.f32 %v2227, %v2153
        %v2236 = vsub.f32 %v2228, %v2154
        %v2237 = vsub.f32 %v2229, %v2155
        %v2238 = vsub.f32 %v2230, %v2156
        %s2239 = scalar_lea.vmem %s245, 384 [#allocation4]
        %2240 = vst [vmem:[%s2239] sm:$0xff] %v2231
        %2241 = vst [vmem:[%s2239 + $0x8] sm:$0xff] %v2232
        %2242 = vst [vmem:[%s2239 + $0x10] sm:$0xff] %v2233
        %2243 = vst [vmem:[%s2239 + $0x18] sm:$0xff] %v2234
        %2244 = vst [vmem:[%s2239 + $0x20] sm:$0xff] %v2235
        %2245 = vst [vmem:[%s2239 + $0x28] sm:$0xff] %v2236
        %2246 = vst [vmem:[%s2239 + $0x30] sm:$0xff] %v2237
        %2247 = vst [vmem:[%s2239 + $0x38] sm:$0xff] %v2238
        %v2248 = vld [vmem:[#allocation2 + $0x40] sm:$0xff]
        %v2249 = vld [vmem:[#allocation2 + $0x48] sm:$0xff]
        %v2250 = vld [vmem:[#allocation2 + $0x50] sm:$0xff]
        %v2251 = vld [vmem:[#allocation2 + $0x58] sm:$0xff]
        %v2252 = vld [vmem:[#allocation2 + $0x60] sm:$0xff]
        %v2253 = vld [vmem:[#allocation2 + $0x68] sm:$0xff]
        %v2254 = vld [vmem:[#allocation2 + $0x70] sm:$0xff]
        %v2255 = vld [vmem:[#allocation2 + $0x78] sm:$0xff]
        %v2256 = vld [vmem:[%s1192 + $0x40] sm:$0xff]
        %v2257 = vld [vmem:[%s1192 + $0x48] sm:$0xff]
        %v2258 = vld [vmem:[%s1192 + $0x50] sm:$0xff]
        %v2259 = vld [vmem:[%s1192 + $0x58] sm:$0xff]
        %v2260 = vld [vmem:[%s1192 + $0x60] sm:$0xff]
        %v2261 = vld [vmem:[%s1192 + $0x68] sm:$0xff]
        %v2262 = vld [vmem:[%s1192 + $0x70] sm:$0xff]
        %v2263 = vld [vmem:[%s1192 + $0x78] sm:$0xff]
        %v2264 = vmax.f32 %v2248, %v2256
        %v2265 = vmax.f32 %v2249, %v2257
        %v2266 = vmax.f32 %v2250, %v2258
        %v2267 = vmax.f32 %v2251, %v2259
        %v2268 = vmax.f32 %v2252, %v2260
        %v2269 = vmax.f32 %v2253, %v2261
        %v2270 = vmax.f32 %v2254, %v2262
        %v2271 = vmax.f32 %v2255, %v2263
        %v2272 = vld [vmem:[%s1566 + $0x40] sm:$0xff]
        %v2273 = vld [vmem:[%s1566 + $0x48] sm:$0xff]
        %v2274 = vld [vmem:[%s1566 + $0x50] sm:$0xff]
        %v2275 = vld [vmem:[%s1566 + $0x58] sm:$0xff]
        %v2276 = vld [vmem:[%s1566 + $0x60] sm:$0xff]
        %v2277 = vld [vmem:[%s1566 + $0x68] sm:$0xff]
        %v2278 = vld [vmem:[%s1566 + $0x70] sm:$0xff]
        %v2279 = vld [vmem:[%s1566 + $0x78] sm:$0xff]
        %v2280 = vmax.f32 %v2264, %v2272
        %v2281 = vmax.f32 %v2265, %v2273
        %v2282 = vmax.f32 %v2266, %v2274
        %v2283 = vmax.f32 %v2267, %v2275
        %v2284 = vmax.f32 %v2268, %v2276
        %v2285 = vmax.f32 %v2269, %v2277
        %v2286 = vmax.f32 %v2270, %v2278
        %v2287 = vmax.f32 %v2271, %v2279
        %v2288 = vld [vmem:[%s1940 + $0x40] sm:$0xff]
        %v2289 = vld [vmem:[%s1940 + $0x48] sm:$0xff]
        %v2290 = vld [vmem:[%s1940 + $0x50] sm:$0xff]
        %v2291 = vld [vmem:[%s1940 + $0x58] sm:$0xff]
        %v2292 = vld [vmem:[%s1940 + $0x60] sm:$0xff]
        %v2293 = vld [vmem:[%s1940 + $0x68] sm:$0xff]
        %v2294 = vld [vmem:[%s1940 + $0x70] sm:$0xff]
        %v2295 = vld [vmem:[%s1940 + $0x78] sm:$0xff]
        %v2296 = vmax.f32 %v2280, %v2288
        %v2297 = vmax.f32 %v2281, %v2289
        %v2298 = vmax.f32 %v2282, %v2290
        %v2299 = vmax.f32 %v2283, %v2291
        %v2300 = vmax.f32 %v2284, %v2292
        %v2301 = vmax.f32 %v2285, %v2293
        %v2302 = vmax.f32 %v2286, %v2294
        %v2303 = vmax.f32 %v2287, %v2295
        %v2304 = vsub.f32 %v2248, %v2296
        %v2305 = vsub.f32 %v2249, %v2297
        %v2306 = vsub.f32 %v2250, %v2298
        %v2307 = vsub.f32 %v2251, %v2299
        %v2308 = vsub.f32 %v2252, %v2300
        %v2309 = vsub.f32 %v2253, %v2301
        %v2310 = vsub.f32 %v2254, %v2302
        %v2311 = vsub.f32 %v2255, %v2303
        %v2312 = vmul.f32 %v2304, 1.442695
        %v2313 = vpow.pop %v2312
        %v2314 = vmul.f32 %v2305, 1.442695
        %v2315 = vpow.pop %v2314
        %v2316 = vmul.f32 %v2306, 1.442695
        %v2317 = vpow.pop %v2316
        %v2318 = vmul.f32 %v2307, 1.442695
        %v2319 = vpow.pop %v2318
        %v2320 = vmul.f32 %v2308, 1.442695
        %v2321 = vpow.pop %v2320
        %v2322 = vmul.f32 %v2309, 1.442695
        %v2323 = vpow.pop %v2322
        %v2324 = vmul.f32 %v2310, 1.442695
        %v2325 = vpow.pop %v2324
        %v2326 = vmul.f32 %v2311, 1.442695
        %v2327 = vpow.pop %v2326
        %v2328 = vsub.f32 %v2256, %v2296
        %v2329 = vsub.f32 %v2257, %v2297
        %v2330 = vsub.f32 %v2258, %v2298
        %v2331 = vsub.f32 %v2259, %v2299
        %v2332 = vsub.f32 %v2260, %v2300
        %v2333 = vsub.f32 %v2261, %v2301
        %v2334 = vsub.f32 %v2262, %v2302
        %v2335 = vsub.f32 %v2263, %v2303
        %v2336 = vmul.f32 %v2328, 1.442695
        %v2337 = vpow.pop %v2336
        %v2338 = vmul.f32 %v2329, 1.442695
        %v2339 = vpow.pop %v2338
        %v2340 = vmul.f32 %v2330, 1.442695
        %v2341 = vpow.pop %v2340
        %v2342 = vmul.f32 %v2331, 1.442695
        %v2343 = vpow.pop %v2342
        %v2344 = vmul.f32 %v2332, 1.442695
        %v2345 = vpow.pop %v2344
        %v2346 = vmul.f32 %v2333, 1.442695
        %v2347 = vpow.pop %v2346
        %v2348 = vmul.f32 %v2334, 1.442695
        %v2349 = vpow.pop %v2348
        %v2350 = vmul.f32 %v2335, 1.442695
        %v2351 = vpow.pop %v2350
        %v2352 = vadd.f32 %v2313, %v2337
        %v2353 = vadd.f32 %v2315, %v2339
        %v2354 = vadd.f32 %v2317, %v2341
        %v2355 = vadd.f32 %v2319, %v2343
        %v2356 = vadd.f32 %v2321, %v2345
        %v2357 = vadd.f32 %v2323, %v2347
        %v2358 = vadd.f32 %v2325, %v2349
        %v2359 = vadd.f32 %v2327, %v2351
        %v2360 = vsub.f32 %v2272, %v2296
        %v2361 = vsub.f32 %v2273, %v2297
        %v2362 = vsub.f32 %v2274, %v2298
        %v2363 = vsub.f32 %v2275, %v2299
        %v2364 = vsub.f32 %v2276, %v2300
        %v2365 = vsub.f32 %v2277, %v2301
        %v2366 = vsub.f32 %v2278, %v2302
        %v2367 = vsub.f32 %v2279, %v2303
        %v2368 = vmul.f32 %v2360, 1.442695
        %v2369 = vpow.pop %v2368
        %v2370 = vmul.f32 %v2361, 1.442695
        %v2371 = vpow.pop %v2370
        %v2372 = vmul.f32 %v2362, 1.442695
        %v2373 = vpow.pop %v2372
        %v2374 = vmul.f32 %v2363, 1.442695
        %v2375 = vpow.pop %v2374
        %v2376 = vmul.f32 %v2364, 1.442695
        %v2377 = vpow.pop %v2376
        %v2378 = vmul.f32 %v2365, 1.442695
        %v2379 = vpow.pop %v2378
        %v2380 = vmul.f32 %v2366, 1.442695
        %v2381 = vpow.pop %v2380
        %v2382 = vmul.f32 %v2367, 1.442695
        %v2383 = vpow.pop %v2382
        %v2384 = vadd.f32 %v2352, %v2369
        %v2385 = vadd.f32 %v2353, %v2371
        %v2386 = vadd.f32 %v2354, %v2373
        %v2387 = vadd.f32 %v2355, %v2375
        %v2388 = vadd.f32 %v2356, %v2377
        %v2389 = vadd.f32 %v2357, %v2379
        %v2390 = vadd.f32 %v2358, %v2381
        %v2391 = vadd.f32 %v2359, %v2383
        %v2392 = vsub.f32 %v2288, %v2296
        %v2393 = vsub.f32 %v2289, %v2297
        %v2394 = vsub.f32 %v2290, %v2298
        %v2395 = vsub.f32 %v2291, %v2299
        %v2396 = vsub.f32 %v2292, %v2300
        %v2397 = vsub.f32 %v2293, %v2301
        %v2398 = vsub.f32 %v2294, %v2302
        %v2399 = vsub.f32 %v2295, %v2303
        %v2400 = vmul.f32 %v2392, 1.442695
        %v2401 = vpow.pop %v2400
        %v2402 = vmul.f32 %v2393, 1.442695
        %v2403 = vpow.pop %v2402
        %v2404 = vmul.f32 %v2394, 1.442695
        %v2405 = vpow.pop %v2404
        %v2406 = vmul.f32 %v2395, 1.442695
        %v2407 = vpow.pop %v2406
        %v2408 = vmul.f32 %v2396, 1.442695
        %v2409 = vpow.pop %v2408
        %v2410 = vmul.f32 %v2397, 1.442695
        %v2411 = vpow.pop %v2410
        %v2412 = vmul.f32 %v2398, 1.442695
        %v2413 = vpow.pop %v2412
        %v2414 = vmul.f32 %v2399, 1.442695
        %v2415 = vpow.pop %v2414
        %v2416 = vadd.f32 %v2384, %v2401
        %v2417 = vadd.f32 %v2385, %v2403
        %v2418 = vadd.f32 %v2386, %v2405
        %v2419 = vadd.f32 %v2387, %v2407
        %v2420 = vadd.f32 %v2388, %v2409
        %v2421 = vadd.f32 %v2389, %v2411
        %v2422 = vadd.f32 %v2390, %v2413
        %v2423 = vadd.f32 %v2391, %v2415
        %v2424 = vlog2.pop %v2416
        %v2425 = vmul.f32 %v2424, 0.6931472
        %v2426 = vlog2.pop %v2417
        %v2427 = vmul.f32 %v2426, 0.6931472
        %v2428 = vlog2.pop %v2418
        %v2429 = vmul.f32 %v2428, 0.6931472
        %v2430 = vlog2.pop %v2419
        %v2431 = vmul.f32 %v2430, 0.6931472
        %v2432 = vlog2.pop %v2420
        %v2433 = vmul.f32 %v2432, 0.6931472
        %v2434 = vlog2.pop %v2421
        %v2435 = vmul.f32 %v2434, 0.6931472
        %v2436 = vlog2.pop %v2422
        %v2437 = vmul.f32 %v2436, 0.6931472
        %v2438 = vlog2.pop %v2423
        %v2439 = vmul.f32 %v2438, 0.6931472
        %v2440 = vadd.f32 %v2296, %v2425
        %v2441 = vadd.f32 %v2297, %v2427
        %v2442 = vadd.f32 %v2298, %v2429
        %v2443 = vadd.f32 %v2299, %v2431
        %v2444 = vadd.f32 %v2300, %v2433
        %v2445 = vadd.f32 %v2301, %v2435
        %v2446 = vadd.f32 %v2302, %v2437
        %v2447 = vadd.f32 %v2303, %v2439
        %v2448 = vsub.f32 %v2248, %v2440
        %v2449 = vsub.f32 %v2249, %v2441
        %v2450 = vsub.f32 %v2250, %v2442
        %v2451 = vsub.f32 %v2251, %v2443
        %v2452 = vsub.f32 %v2252, %v2444
        %v2453 = vsub.f32 %v2253, %v2445
        %v2454 = vsub.f32 %v2254, %v2446
        %v2455 = vsub.f32 %v2255, %v2447
        %2456 = vst [vmem:[%s245 + $0x40] sm:$0xff] %v2448
        %2457 = vst [vmem:[%s245 + $0x48] sm:$0xff] %v2449
        %2458 = vst [vmem:[%s245 + $0x50] sm:$0xff] %v2450
        %2459 = vst [vmem:[%s245 + $0x58] sm:$0xff] %v2451
        %2460 = vst [vmem:[%s245 + $0x60] sm:$0xff] %v2452
        %2461 = vst [vmem:[%s245 + $0x68] sm:$0xff] %v2453
        %2462 = vst [vmem:[%s245 + $0x70] sm:$0xff] %v2454
        %2463 = vst [vmem:[%s245 + $0x78] sm:$0xff] %v2455
        %v2464 = vld [vmem:[%s1192 + $0x40] sm:$0xff]
        %v2465 = vld [vmem:[%s1192 + $0x48] sm:$0xff]
        %v2466 = vld [vmem:[%s1192 + $0x50] sm:$0xff]
        %v2467 = vld [vmem:[%s1192 + $0x58] sm:$0xff]
        %v2468 = vld [vmem:[%s1192 + $0x60] sm:$0xff]
        %v2469 = vld [vmem:[%s1192 + $0x68] sm:$0xff]
        %v2470 = vld [vmem:[%s1192 + $0x70] sm:$0xff]
        %v2471 = vld [vmem:[%s1192 + $0x78] sm:$0xff]
        %v2472 = vsub.f32 %v2464, %v2440
        %v2473 = vsub.f32 %v2465, %v2441
        %v2474 = vsub.f32 %v2466, %v2442
        %v2475 = vsub.f32 %v2467, %v2443
        %v2476 = vsub.f32 %v2468, %v2444
        %v2477 = vsub.f32 %v2469, %v2445
        %v2478 = vsub.f32 %v2470, %v2446
        %v2479 = vsub.f32 %v2471, %v2447
        %2480 = vst [vmem:[%s2189 + $0x40] sm:$0xff] %v2472
        %2481 = vst [vmem:[%s2189 + $0x48] sm:$0xff] %v2473
        %2482 = vst [vmem:[%s2189 + $0x50] sm:$0xff] %v2474
        %2483 = vst [vmem:[%s2189 + $0x58] sm:$0xff] %v2475
        %2484 = vst [vmem:[%s2189 + $0x60] sm:$0xff] %v2476
        %2485 = vst [vmem:[%s2189 + $0x68] sm:$0xff] %v2477
        %2486 = vst [vmem:[%s2189 + $0x70] sm:$0xff] %v2478
        %2487 = vst [vmem:[%s2189 + $0x78] sm:$0xff] %v2479
        %v2488 = vld [vmem:[%s1566 + $0x40] sm:$0xff]
        %v2489 = vld [vmem:[%s1566 + $0x48] sm:$0xff]
        %v2490 = vld [vmem:[%s1566 + $0x50] sm:$0xff]
        %v2491 = vld [vmem:[%s1566 + $0x58] sm:$0xff]
        %v2492 = vld [vmem:[%s1566 + $0x60] sm:$0xff]
        %v2493 = vld [vmem:[%s1566 + $0x68] sm:$0xff]
        %v2494 = vld [vmem:[%s1566 + $0x70] sm:$0xff]
        %v2495 = vld [vmem:[%s1566 + $0x78] sm:$0xff]
        %v2496 = vsub.f32 %v2488, %v2440
        %v2497 = vsub.f32 %v2489, %v2441
        %v2498 = vsub.f32 %v2490, %v2442
        %v2499 = vsub.f32 %v2491, %v2443
        %v2500 = vsub.f32 %v2492, %v2444
        %v2501 = vsub.f32 %v2493, %v2445
        %v2502 = vsub.f32 %v2494, %v2446
        %v2503 = vsub.f32 %v2495, %v2447
        %2504 = vst [vmem:[%s2214 + $0x40] sm:$0xff] %v2496
        %2505 = vst [vmem:[%s2214 + $0x48] sm:$0xff] %v2497
        %2506 = vst [vmem:[%s2214 + $0x50] sm:$0xff] %v2498
        %2507 = vst [vmem:[%s2214 + $0x58] sm:$0xff] %v2499
        %2508 = vst [vmem:[%s2214 + $0x60] sm:$0xff] %v2500
        %2509 = vst [vmem:[%s2214 + $0x68] sm:$0xff] %v2501
        %2510 = vst [vmem:[%s2214 + $0x70] sm:$0xff] %v2502
        %2511 = vst [vmem:[%s2214 + $0x78] sm:$0xff] %v2503
        %v2512 = vld [vmem:[%s1940 + $0x40] sm:$0xff]
        %v2513 = vld [vmem:[%s1940 + $0x48] sm:$0xff]
        %v2514 = vld [vmem:[%s1940 + $0x50] sm:$0xff]
        %v2515 = vld [vmem:[%s1940 + $0x58] sm:$0xff]
        %v2516 = vld [vmem:[%s1940 + $0x60] sm:$0xff]
        %v2517 = vld [vmem:[%s1940 + $0x68] sm:$0xff]
        %v2518 = vld [vmem:[%s1940 + $0x70] sm:$0xff]
        %v2519 = vld [vmem:[%s1940 + $0x78] sm:$0xff]
        %v2520 = vsub.f32 %v2512, %v2440
        %v2521 = vsub.f32 %v2513, %v2441
        %v2522 = vsub.f32 %v2514, %v2442
        %v2523 = vsub.f32 %v2515, %v2443
        %v2524 = vsub.f32 %v2516, %v2444
        %v2525 = vsub.f32 %v2517, %v2445
        %v2526 = vsub.f32 %v2518, %v2446
        %v2527 = vsub.f32 %v2519, %v2447
        %2528 = vst [vmem:[%s2239 + $0x40] sm:$0xff] %v2520
        %2529 = vst [vmem:[%s2239 + $0x48] sm:$0xff] %v2521
        %2530 = vst [vmem:[%s2239 + $0x50] sm:$0xff] %v2522
        %2531 = vst [vmem:[%s2239 + $0x58] sm:$0xff] %v2523
        %2532 = vst [vmem:[%s2239 + $0x60] sm:$0xff] %v2524
        %2533 = vst [vmem:[%s2239 + $0x68] sm:$0xff] %v2525
        %2534 = vst [vmem:[%s2239 + $0x70] sm:$0xff] %v2526
        %2535 = vst [vmem:[%s2239 + $0x78] sm:$0xff] %v2527
        %s2536 = sand.u32 %s139, 1
        %s2537 = scalar_lea.sflag [#allocation5], %s2536
        %s2538 = sand.u32 %s139, 1
        %s2539 = smul.addr %s2538, 512
        %s2540 = scalar_lea.vmem [#allocation4], %s2539
        %p2541 = scmp.lt.s32.totalorder %s21, 1
        %s2542 = scalar_select %p2541, %s21, 1
        %s2543 = smul.addr %s2542, 2
        %s2544 = smul.addr %s2543, 4
        %s2545 = scalar_lea.vmem %s6, %s2544
        // Predicated region
        $region41: #{drnseg_forward.1} parent=39 // pred_check
          %p2546 = pneg %p149
        $region42: #{drnseg_forward.1} parent=39 // pred_check_branch
          %2548 = sbr.rel (%p2546) target = $region44
        $region43: #{drnseg_forward.1} parent=39 // pred_region
          %s2550 = ssub.s32 8192, 8192
          %2551 = vsyncadd %s2537, %s2550
          %s2552 = smul.addr %s21, 64
          %s2553 = smul.addr %s2552, 128
          %s2554 = scalar_lea.hbm %s5, %s2553
          %s2555 = sshll.u32 %s2540, 4
          %s2556 = int_to_ptr.vmem [resolvable:$true] %s2555
          %2561 = dma.vmem_to_hbm [thread:$0]  %s2556, 8192, %s2554, %s2537, 128, 128, 8
        $region44: #{drnseg_forward.1} parent=39 // pred_fallthru
          _
        // Predicated region
        $region45: #{drnseg_forward.1} parent=39 // pred_check
          %p2562 = pneg %p175
        $region46: #{drnseg_forward.1} parent=39 // pred_check_branch
          %2564 = sbr.rel (%p2562) target = $region48
        $region47: #{drnseg_forward.1} parent=39 // pred_region
          _
        $region48: #{drnseg_forward.1} parent=39 // pred_fallthru
          _
      $region40: #{drnseg_forward.1} parent=5 // pred_fallthru
        _
      %p2565 = scmp.le.s32.totalorder 2, %s16
      // Predicated region
      $region49: #{drnseg_forward.1} parent=5 // pred_check
        %p2566 = pneg %p2565
      $region50: #{drnseg_forward.1} parent=5 // pred_check_branch
        %2568 = sbr.rel (%p2566) target = $region52
      $region51: #{drnseg_forward.1} parent=5 // pred_region
        %s2569 = ssub.s32 %s16, 2
        // Predicated region
        $region53: #{drnseg_forward.1} parent=51 // pred_check
          %p2570 = pneg %p155
        $region54: #{drnseg_forward.1} parent=51 // pred_check_branch
          %2572 = sbr.rel (%p2570) target = $region56
        $region55: #{drnseg_forward.1} parent=51 // pred_region
          %s2573 = sand.u32 %s140, 1
          %s2574 = scalar_lea.sflag [#allocation5], %s2573
          %s2575 = sand.u32 %s140, 1
          %s2576 = smul.addr %s2575, 512
          %s2577 = scalar_lea.vmem [#allocation4], %s2576
          %2578 = dma.done %s2574, 8192
        $region56: #{drnseg_forward.1} parent=51 // pred_fallthru
          _
        // Predicated region
        $region57: #{drnseg_forward.1} parent=51 // pred_check
          %p2579 = pneg %p181
        $region58: #{drnseg_forward.1} parent=51 // pred_check_branch
          %2581 = sbr.rel (%p2579) target = $region60
        $region59: #{drnseg_forward.1} parent=51 // pred_region
          %p2582 = scmp.lt.s32.totalorder %s22, 1
          %s2583 = scalar_select %p2582, %s22, 1
          %s2584 = smul.addr %s2583, 2
          %s2585 = smul.addr %s2584, 4
          %s2586 = scalar_lea.vmem %s6, %s2585
        $region60: #{drnseg_forward.1} parent=51 // pred_fallthru
          _
      $region52: #{drnseg_forward.1} parent=5 // pred_fallthru
        _
    $region6: #{drnseg_forward.1} parent=1 // loop_footer
      %s20 = sadd.s32 1, %s16
    $region7: #{drnseg_forward.1} parent=1 // loop_footer_branch
      %15 = sbr.rel target = $region3
    $region8: #{drnseg_forward.1} parent=1 // loop_exit
      _
    %2587 = vsyncpa [#allocation5], 1
    %s2588 = scalar_lea.sflag [#allocation5], 1
    %2589 = vsyncpa %s2588, 1

</llo_original>
